<compile_context>
chip_gen: v7x
topology: tpu7x:2x2x1
jax: 0.10.0
libtpu: 0.0.40
codegen_flags: <defaults>
</compile_context>

<pallas_src>
import functools

import jax
import jax.numpy as jnp
from jax.experimental import pallas as pl
from jax.experimental.pallas import tpu as pltpu

# ---- synthetic "config" (small shapes) -------------------------------------
VOCAB = 64
MAX_POS = 16
HIDDEN = 32          # config.hidden_size
N_HEADS = 4
HEAD_DIM = HIDDEN // N_HEADS
INTERMEDIATE = 64
N_LAYERS = 2
BATCH = 2
SEQ = 8
LN_EPS = 1e-12
N_CLASSES = 2
OUT_PAD = 128        # classifier columns padded to a full lane tile


def _layernorm(x, g, b, eps):
    mu = jnp.mean(x, axis=-1, keepdims=True)
    xc = x - mu
    var = jnp.mean(xc * xc, axis=-1, keepdims=True)
    return xc * jax.lax.rsqrt(var + eps) * g + b


# ---------------------------------------------------------------------------
# Fused Pallas kernel: one program, whole forward in VMEM.
# ---------------------------------------------------------------------------
def _bert_fe_kernel(emb_ref, bias_ref, wqkv_ref, wo_ref, w1_ref, w2_ref,
                    small_ref, wl1_ref, wl2_ref, misc_ref,
                    o_ref, heads_scr, merge_scr, *,
                    n_layers, n_heads, head_dim, batch, seq, eps):
    H = n_heads * head_dim
    M = batch * seq
    scale = 1.0 / (head_dim ** 0.5)

    misc = misc_ref[...]                                   # (4, OUT_PAD) f32
    # embedding LayerNorm (no zero-residual add)
    h = _layernorm(emb_ref[...], misc[0:1, :H], misc[1:2, :H], eps)   # (M, H) f32

    # block-diagonal + key-padding additive bias, broadcast hoisted once
    bias_h = jnp.broadcast_to(bias_ref[...][None, :, :], (n_heads, M, M))

    # --- transformer encoder layers (static unroll; N_LAYERS is tiny) --------
    for l in range(n_layers):
        sv = small_ref[l]                                   # (10, INTER) f32
        wqkv_l = wqkv_ref[l]                                # (3, H, H) bf16
        hb = h.astype(jnp.bfloat16)

        # lane-aligned Q/K/V: three (M,H)@(H,H) dots, each output starts at lane 0
        for i in range(3):                                  # 0:q 1:k 2:v
            proj = jnp.dot(hb, wqkv_l[i],
                           preferred_element_type=jnp.float32) + sv[i:i + 1, :H]
            if i == 0:
                proj = proj * scale                         # fold 1/sqrt(dh) into q
            pb = proj.astype(jnp.bfloat16)
            for hd in range(n_heads):                       # stage per-head slabs
                heads_scr[i * n_heads + hd] = pb[:, hd * head_dim:(hd + 1) * head_dim]

        q3 = heads_scr[0:n_heads]                           # (NH, M, HD) bf16
        k3 = heads_scr[n_heads:2 * n_heads]
        v3 = heads_scr[2 * n_heads:3 * n_heads]

        # head-batched attention: one score einsum + one context einsum
        s = jnp.einsum("hqd,hkd->hqk", q3, k3,
                       preferred_element_type=jnp.float32) + bias_h     # (NH, M, M)
        m = jnp.max(s, axis=-1, keepdims=True)
        p = jnp.exp(s - m)
        p = p * pl.reciprocal(jnp.sum(p, axis=-1, keepdims=True), approx=True)
        ctx = jnp.einsum("hqk,hkd->hqd", p.astype(jnp.bfloat16), v3,
                         preferred_element_type=jnp.float32)            # (NH, M, HD)
        ctxb = ctx.astype(jnp.bfloat16)
        for hd in range(n_heads):                           # merge heads in VMEM
            merge_scr[:, hd * head_dim:(hd + 1) * head_dim] = ctxb[hd]

        # single full output projection
        attn = jnp.dot(merge_scr[...], wo_ref[l],
                       preferred_element_type=jnp.float32) + sv[3:4, :H]
        h = _layernorm(attn + h, sv[4:5, :H], sv[5:6, :H], eps)

        ffn = jnp.dot(h.astype(jnp.bfloat16), w1_ref[l],
                      preferred_element_type=jnp.float32) + sv[6:7, :]
        # TODO(synk): HF BERT uses erf-GELU; tanh-approx GELU used for robust lowering.
        ffn = jax.nn.gelu(ffn, approximate=True)
        ffn = jnp.dot(ffn.astype(jnp.bfloat16), w2_ref[l],
                      preferred_element_type=jnp.float32) + sv[7:8, :H]
        h = _layernorm(ffn + h, sv[8:9, :H], sv[9:10, :H], eps)

    # --- [CLS] pooling + head: linear1 -> relu -> dropout -> linear2 -> log_softmax
    pooled = jnp.concatenate([h[b * seq:b * seq + 1, :] for b in range(batch)],
                             axis=0)                        # (B, H)
    z1 = jnp.dot(pooled.astype(jnp.bfloat16), wl1_ref[...],
                 preferred_element_type=jnp.float32) + misc[2:3, :H // 2]
    z1 = jnp.maximum(z1, 0.0)
    # TODO(synk): nn.Dropout(config.dropout) applied as identity (eval mode).
    logits = jnp.dot(z1.astype(jnp.bfloat16), wl2_ref[...],
                     preferred_element_type=jnp.float32) + misc[3:4, :]  # (B, OUT_PAD)
    zmax = jnp.max(logits, axis=-1, keepdims=True)
    zc = logits - zmax
    lse = jnp.log(jnp.sum(jnp.exp(zc), axis=-1, keepdims=True))
    o_ref[...] = (zc - lse).astype(o_ref.dtype)             # one lane-dense store


def _full_spec(a):
    nd = a.ndim
    return pl.BlockSpec(a.shape, lambda i, _nd=nd: (0,) * _nd)


def bert_fe_forward(params, x, att_mask):
    # matches: if len(x.shape) < 2: x = x.unsqueeze(0); att_mask = att_mask.unsqueeze(0)
    if x.ndim < 2:
        x = x[None, :]
        att_mask = att_mask[None, :]
    B, S = x.shape
    H, M = HIDDEN, B * S

    # embedding gather + sum (glue; table gather stays in plain JAX)
    emb = (params["word_emb"][x]
           + params["pos_emb"][:S][None, :, :]
           + params["type_emb"][0][None, None, :]).astype(jnp.float32)
    emb = emb.reshape(M, H)                                  # batch folded into M

    # block-diagonal (per-example) + key-padding additive attention bias
    mask_flat = att_mask.reshape(M).astype(jnp.float32)
    batch_ids = jnp.repeat(jnp.arange(B), S)
    keep = (batch_ids[:, None] == batch_ids[None, :]) & (mask_flat[None, :] > 0.5)
    attn_bias = jnp.where(keep, 0.0, -10000.0).astype(jnp.float32)   # (M, M)

    inputs = (emb, attn_bias,
              params["wqkv"], params["wo"], params["w1"], params["w2"],
              params["small"], params["w_l1"], params["w_l2p"], params["misc"])

    kernel = functools.partial(_bert_fe_kernel, n_layers=N_LAYERS,
                               n_heads=N_HEADS, head_dim=HEAD_DIM,
                               batch=B, seq=S, eps=LN_EPS)

    out = pl.pallas_call(
        kernel,
        out_shape=jax.ShapeDtypeStruct((B, OUT_PAD), jnp.float32),
        grid=(1,),
        in_specs=[_full_spec(a) for a in inputs],
        out_specs=pl.BlockSpec((B, OUT_PAD), lambda i: (0, 0)),
        scratch_shapes=[
            pltpu.VMEM((3 * N_HEADS, M, HEAD_DIM), jnp.bfloat16),  # q/k/v head slabs
            pltpu.VMEM((M, H), jnp.bfloat16),                      # merged-heads ctx
        ],
        compiler_params=pltpu.CompilerParams(
            dimension_semantics=("arbitrary",)),
    )(*inputs)
    return out[:, :N_CLASSES]


# ---------------------------------------------------------------------------
# Deterministic synthetic parameters (pretrained weights are not loadable here)
# ---------------------------------------------------------------------------
def init_params(key):
    H, H2, INTER, C = HIDDEN, HIDDEN // 2, INTERMEDIATE, N_CLASSES
    keys = iter(jax.random.split(key, 12))
    std = 0.02

    def w(shape, dtype=jnp.float32):
        return (std * jax.random.normal(next(keys), shape)).astype(dtype)

    # per-layer vector params packed into ONE f32 array:
    # rows: 0 bq, 1 bk, 2 bv, 3 bo, 4 ln1_g, 5 ln1_b, 6 b1, 7 b2, 8 ln2_g, 9 ln2_b
    small = jnp.zeros((N_LAYERS, 10, INTER), jnp.float32)
    small = small.at[:, 4, :H].set(1.0).at[:, 8, :H].set(1.0)

    # misc: 0 emb_ln_g, 1 emb_ln_b, 2 b_l1, 3 b_l2 (classes padded to 128 w/ -30000)
    misc = jnp.zeros((4, OUT_PAD), jnp.float32)
    misc = misc.at[0, :H].set(1.0)
    misc = misc.at[3, C:].set(-30000.0)

    w_l2 = w((H2, C))
    w_l2p = jnp.zeros((H2, OUT_PAD), jnp.float32).at[:, :C].set(w_l2).astype(jnp.bfloat16)

    return {
        # embeddings (gathered in plain JAX before the fused kernel)
        "word_emb": w((VOCAB, H)),
        "pos_emb": w((MAX_POS, H)),
        "type_emb": w((2, H)),
        # encoder weights, bf16, stacked along a leading N_LAYERS axis
        "wqkv": w((N_LAYERS, 3, H, H), jnp.bfloat16),   # lane-aligned Q|K|V
        "wo": w((N_LAYERS, H, H), jnp.bfloat16),
        "w1": w((N_LAYERS, H, INTER), jnp.bfloat16),
        "w2": w((N_LAYERS, INTER, H), jnp.bfloat16),
        "small": small,
        # BertFE head
        "w_l1": w((H, H2), jnp.bfloat16),
        "w_l2p": w_l2p,
        "misc": misc,
    }


if __name__ == "__main__":
    key = jax.random.PRNGKey(0)
    pkey, xkey = jax.random.split(key, 2)

    params = init_params(pkey)
    x = jax.random.randint(xkey, (BATCH, SEQ), 0, VOCAB, dtype=jnp.int32)
    att_mask = jnp.ones((BATCH, SEQ), dtype=jnp.float32)
    att_mask = att_mask.at[1, -2:].set(0.0)   # pad the tail of the second example

    fwd = jax.jit(bert_fe_forward)
    out = jax.block_until_ready(fwd(params, x, att_mask))

    assert out.shape == (BATCH, N_CLASSES)
    assert bool(jnp.all(jnp.isfinite(out)))
    # rows of log_softmax must exp-sum to 1
    assert bool(jnp.allclose(jnp.sum(jnp.exp(out), axis=1), 1.0, atol=1e-5))
    print("KERNEL_OK")
</pallas_src>

<mosaic_0001>
module attributes {stable_mosaic.version = 11 : i64} {
  func.func @_bert_fe_kernel(%arg0: i32, %arg1: memref<16x32xf32, #tpu.memory_space<vmem>>, %arg2: memref<16x16xf32, #tpu.memory_space<vmem>>, %arg3: memref<2x3x32x32xbf16, #tpu.memory_space<vmem>>, %arg4: memref<2x32x32xbf16, #tpu.memory_space<vmem>>, %arg5: memref<2x32x64xbf16, #tpu.memory_space<vmem>>, %arg6: memref<2x64x32xbf16, #tpu.memory_space<vmem>>, %arg7: memref<2x10x64xf32, #tpu.memory_space<vmem>>, %arg8: memref<32x16xbf16, #tpu.memory_space<vmem>>, %arg9: memref<16x128xbf16, #tpu.memory_space<vmem>>, %arg10: memref<4x128xf32, #tpu.memory_space<vmem>>, %arg11: memref<2x128xf32, #tpu.memory_space<vmem>>, %arg12: memref<12x16x8xbf16, #tpu.memory_space<vmem>>, %arg13: memref<16x32xbf16, #tpu.memory_space<vmem>>) attributes {dimension_semantics = [#tpu.dimension_semantics<arbitrary>], iteration_bounds = array<i64: 1>, scalar_prefetch = 0 : i64, scratch_operands = 2 : i64, tpu.core_type = #tpu.core_type<tc>, window_params = [{pipeline_mode = #tpu.pipeline_mode<synchronous>, transform_indices = @transform_0, window_bounds = array<i64: 16, 32>}, {pipeline_mode = #tpu.pipeline_mode<synchronous>, transform_indices = @transform_1, window_bounds = array<i64: 16, 16>}, {pipeline_mode = #tpu.pipeline_mode<synchronous>, transform_indices = @transform_2, window_bounds = array<i64: 2, 3, 32, 32>}, {pipeline_mode = #tpu.pipeline_mode<synchronous>, transform_indices = @transform_3, window_bounds = array<i64: 2, 32, 32>}, {pipeline_mode = #tpu.pipeline_mode<synchronous>, transform_indices = @transform_4, window_bounds = array<i64: 2, 32, 64>}, {pipeline_mode = #tpu.pipeline_mode<synchronous>, transform_indices = @transform_5, window_bounds = array<i64: 2, 64, 32>}, {pipeline_mode = #tpu.pipeline_mode<synchronous>, transform_indices = @transform_6, window_bounds = array<i64: 2, 10, 64>}, {pipeline_mode = #tpu.pipeline_mode<synchronous>, transform_indices = @transform_7, window_bounds = array<i64: 32, 16>}, {pipeline_mode = #tpu.pipeline_mode<synchronous>, transform_indices = @transform_8, window_bounds = array<i64: 16, 128>}, {pipeline_mode = #tpu.pipeline_mode<synchronous>, transform_indices = @transform_9, window_bounds = array<i64: 4, 128>}, {pipeline_mode = #tpu.pipeline_mode<synchronous>, transform_indices = @transform_10, window_bounds = array<i64: 2, 128>}]} {
    %c0 = arith.constant 0 : index
    %c0_0 = arith.constant 0 : index
    %0 = vector.load %arg10[%c0, %c0_0] : memref<4x128xf32, #tpu.memory_space<vmem>>, vector<4x128xf32>
    %c0_1 = arith.constant 0 : index
    %c0_2 = arith.constant 0 : index
    %1 = vector.load %arg1[%c0_1, %c0_2] : memref<16x32xf32, #tpu.memory_space<vmem>>, vector<16x32xf32>
    %2 = vector.extract_strided_slice %0 {offsets = [0, 0], sizes = [1, 32], strides = [1, 1]} : vector<4x128xf32> to vector<1x32xf32>
    %3 = vector.extract_strided_slice %0 {offsets = [1, 0], sizes = [1, 32], strides = [1, 1]} : vector<4x128xf32> to vector<1x32xf32>
    %cst = arith.constant dense<0.000000e+00> : vector<16xf32>
    %4 = vector.multi_reduction <add>, %1, %cst [1] : vector<16x32xf32> to vector<16xf32>
    %5 = vector.shape_cast %4 : vector<16xf32> to vector<16x1xf32>
    %cst_3 = arith.constant 3.200000e+01 : f32
    %6 = vector.broadcast %cst_3 : f32 to vector<16x1xf32>
    %7 = arith.divf %5, %6 : vector<16x1xf32>
    %8 = vector.broadcast %7 : vector<16x1xf32> to vector<16x32xf32>
    %9 = arith.subf %1, %8 : vector<16x32xf32>
    %10 = arith.mulf %9, %9 : vector<16x32xf32>
    %cst_4 = arith.constant dense<0.000000e+00> : vector<16xf32>
    %11 = vector.multi_reduction <add>, %10, %cst_4 [1] : vector<16x32xf32> to vector<16xf32>
    %12 = vector.shape_cast %11 : vector<16xf32> to vector<16x1xf32>
    %cst_5 = arith.constant 3.200000e+01 : f32
    %13 = vector.broadcast %cst_5 : f32 to vector<16x1xf32>
    %14 = arith.divf %12, %13 : vector<16x1xf32>
    %cst_6 = arith.constant 9.99999996E-13 : f32
    %15 = vector.broadcast %cst_6 : f32 to vector<16x1xf32>
    %16 = arith.addf %14, %15 : vector<16x1xf32>
    %17 = math.rsqrt %16 : vector<16x1xf32>
    %18 = vector.broadcast %17 : vector<16x1xf32> to vector<16x32xf32>
    %19 = arith.mulf %9, %18 : vector<16x32xf32>
    %20 = vector.broadcast %2 : vector<1x32xf32> to vector<16x32xf32>
    %21 = arith.mulf %19, %20 : vector<16x32xf32>
    %22 = vector.broadcast %3 : vector<1x32xf32> to vector<16x32xf32>
    %23 = arith.addf %21, %22 : vector<16x32xf32>
    %c0_7 = arith.constant 0 : index
    %c0_8 = arith.constant 0 : index
    %24 = vector.load %arg2[%c0_7, %c0_8] : memref<16x16xf32, #tpu.memory_space<vmem>>, vector<16x16xf32>
    %25 = vector.shape_cast %24 : vector<16x16xf32> to vector<1x16x16xf32>
    %26 = vector.shape_cast %25 : vector<1x16x16xf32> to vector<1x16x16xf32>
    %27 = vector.broadcast %26 : vector<1x16x16xf32> to vector<4x16x16xf32>
    %c0_9 = arith.constant 0 : index
    %c0_10 = arith.constant 0 : index
    %c0_11 = arith.constant 0 : index
    %28 = vector.load %arg7[%c0_9, %c0_10, %c0_11] : memref<2x10x64xf32, #tpu.memory_space<vmem>>, vector<1x10x64xf32>
    %29 = vector.shape_cast %28 : vector<1x10x64xf32> to vector<10x64xf32>
    %c0_12 = arith.constant 0 : index
    %c0_13 = arith.constant 0 : index
    %c0_14 = arith.constant 0 : index
    %c0_15 = arith.constant 0 : index
    %30 = vector.load %arg3[%c0_12, %c0_13, %c0_14, %c0_15] : memref<2x3x32x32xbf16, #tpu.memory_space<vmem>>, vector<1x3x32x32xbf16>
    %31 = vector.shape_cast %30 : vector<1x3x32x32xbf16> to vector<3x32x32xbf16>
    %32 = arith.truncf %23 : vector<16x32xf32> to vector<16x32xbf16>
    %33 = vector.extract_strided_slice %31 {offsets = [0, 0, 0], sizes = [1, 32, 32], strides = [1, 1, 1]} : vector<3x32x32xbf16> to vector<1x32x32xbf16>
    %34 = vector.shape_cast %33 : vector<1x32x32xbf16> to vector<32x32xbf16>
    %cst_16 = arith.constant dense<0.000000e+00> : vector<16x32xf32>
    %35 = tpu.matmul %32, %34, %cst_16 {dimension_numbers = #tpu.dot_dimension_numbers<[1], [0], [0], [1], [0, 0, 1, 1], [], []>} : vector<16x32xbf16>, vector<32x32xbf16>, vector<16x32xf32> -> vector<16x32xf32>
    %36 = vector.extract_strided_slice %29 {offsets = [0, 0], sizes = [1, 32], strides = [1, 1]} : vector<10x64xf32> to vector<1x32xf32>
    %37 = vector.broadcast %36 : vector<1x32xf32> to vector<16x32xf32>
    %38 = arith.addf %35, %37 : vector<16x32xf32>
    %cst_17 = arith.constant 0.353553385 : f32
    %39 = vector.broadcast %cst_17 : f32 to vector<16x32xf32>
    %40 = arith.mulf %38, %39 : vector<16x32xf32>
    %41 = arith.truncf %40 : vector<16x32xf32> to vector<16x32xbf16>
    %42 = vector.extract_strided_slice %41 {offsets = [0, 0], sizes = [16, 8], strides = [1, 1]} : vector<16x32xbf16> to vector<16x8xbf16>
    %c0_18 = arith.constant 0 : index
    %c0_19 = arith.constant 0 : index
    %c0_20 = arith.constant 0 : index
    %43 = vector.load %arg12[%c0_18, %c0_19, %c0_20] : memref<12x16x8xbf16, #tpu.memory_space<vmem>>, vector<1x16x8xbf16>
    %44 = vector.shape_cast %43 : vector<1x16x8xbf16> to vector<16x8xbf16>
    %45 = vector.shape_cast %42 : vector<16x8xbf16> to vector<1x16x8xbf16>
    tpu.vector_store %arg12[%c0_18, %c0_19, %c0_20], %45 {strides = array<i32>} : memref<12x16x8xbf16, #tpu.memory_space<vmem>>, vector<1x16x8xbf16>,
    %46 = vector.extract_strided_slice %41 {offsets = [0, 8], sizes = [16, 8], strides = [1, 1]} : vector<16x32xbf16> to vector<16x8xbf16>
    %c1 = arith.constant 1 : index
    %c0_21 = arith.constant 0 : index
    %c0_22 = arith.constant 0 : index
    %47 = vector.load %arg12[%c1, %c0_21, %c0_22] : memref<12x16x8xbf16, #tpu.memory_space<vmem>>, vector<1x16x8xbf16>
    %48 = vector.shape_cast %47 : vector<1x16x8xbf16> to vector<16x8xbf16>
    %49 = vector.shape_cast %46 : vector<16x8xbf16> to vector<1x16x8xbf16>
    tpu.vector_store %arg12[%c1, %c0_21, %c0_22], %49 {strides = array<i32>} : memref<12x16x8xbf16, #tpu.memory_space<vmem>>, vector<1x16x8xbf16>,
    %50 = vector.extract_strided_slice %41 {offsets = [0, 16], sizes = [16, 8], strides = [1, 1]} : vector<16x32xbf16> to vector<16x8xbf16>
    %c2 = arith.constant 2 : index
    %c0_23 = arith.constant 0 : index
    %c0_24 = arith.constant 0 : index
    %51 = vector.load %arg12[%c2, %c0_23, %c0_24] : memref<12x16x8xbf16, #tpu.memory_space<vmem>>, vector<1x16x8xbf16>
    %52 = vector.shape_cast %51 : vector<1x16x8xbf16> to vector<16x8xbf16>
    %53 = vector.shape_cast %50 : vector<16x8xbf16> to vector<1x16x8xbf16>
    tpu.vector_store %arg12[%c2, %c0_23, %c0_24], %53 {strides = array<i32>} : memref<12x16x8xbf16, #tpu.memory_space<vmem>>, vector<1x16x8xbf16>,
    %54 = vector.extract_strided_slice %41 {offsets = [0, 24], sizes = [16, 8], strides = [1, 1]} : vector<16x32xbf16> to vector<16x8xbf16>
    %c3 = arith.constant 3 : index
    %c0_25 = arith.constant 0 : index
    %c0_26 = arith.constant 0 : index
    %55 = vector.load %arg12[%c3, %c0_25, %c0_26] : memref<12x16x8xbf16, #tpu.memory_space<vmem>>, vector<1x16x8xbf16>
    %56 = vector.shape_cast %55 : vector<1x16x8xbf16> to vector<16x8xbf16>
    %57 = vector.shape_cast %54 : vector<16x8xbf16> to vector<1x16x8xbf16>
    tpu.vector_store %arg12[%c3, %c0_25, %c0_26], %57 {strides = array<i32>} : memref<12x16x8xbf16, #tpu.memory_space<vmem>>, vector<1x16x8xbf16>,
    %58 = vector.extract_strided_slice %31 {offsets = [1, 0, 0], sizes = [1, 32, 32], strides = [1, 1, 1]} : vector<3x32x32xbf16> to vector<1x32x32xbf16>
    %59 = vector.shape_cast %58 : vector<1x32x32xbf16> to vector<32x32xbf16>
    %cst_27 = arith.constant dense<0.000000e+00> : vector<16x32xf32>
    %60 = tpu.matmul %32, %59, %cst_27 {dimension_numbers = #tpu.dot_dimension_numbers<[1], [0], [0], [1], [0, 0, 1, 1], [], []>} : vector<16x32xbf16>, vector<32x32xbf16>, vector<16x32xf32> -> vector<16x32xf32>
    %61 = vector.extract_strided_slice %29 {offsets = [1, 0], sizes = [1, 32], strides = [1, 1]} : vector<10x64xf32> to vector<1x32xf32>
    %62 = vector.broadcast %61 : vector<1x32xf32> to vector<16x32xf32>
    %63 = arith.addf %60, %62 : vector<16x32xf32>
    %64 = arith.truncf %63 : vector<16x32xf32> to vector<16x32xbf16>
    %65 = vector.extract_strided_slice %64 {offsets = [0, 0], sizes = [16, 8], strides = [1, 1]} : vector<16x32xbf16> to vector<16x8xbf16>
    %c4 = arith.constant 4 : index
    %c0_28 = arith.constant 0 : index
    %c0_29 = arith.constant 0 : index
    %66 = vector.load %arg12[%c4, %c0_28, %c0_29] : memref<12x16x8xbf16, #tpu.memory_space<vmem>>, vector<1x16x8xbf16>
    %67 = vector.shape_cast %66 : vector<1x16x8xbf16> to vector<16x8xbf16>
    %68 = vector.shape_cast %65 : vector<16x8xbf16> to vector<1x16x8xbf16>
    tpu.vector_store %arg12[%c4, %c0_28, %c0_29], %68 {strides = array<i32>} : memref<12x16x8xbf16, #tpu.memory_space<vmem>>, vector<1x16x8xbf16>,
    %69 = vector.extract_strided_slice %64 {offsets = [0, 8], sizes = [16, 8], strides = [1, 1]} : vector<16x32xbf16> to vector<16x8xbf16>
    %c5 = arith.constant 5 : index
    %c0_30 = arith.constant 0 : index
    %c0_31 = arith.constant 0 : index
    %70 = vector.load %arg12[%c5, %c0_30, %c0_31] : memref<12x16x8xbf16, #tpu.memory_space<vmem>>, vector<1x16x8xbf16>
    %71 = vector.shape_cast %70 : vector<1x16x8xbf16> to vector<16x8xbf16>
    %72 = vector.shape_cast %69 : vector<16x8xbf16> to vector<1x16x8xbf16>
    tpu.vector_store %arg12[%c5, %c0_30, %c0_31], %72 {strides = array<i32>} : memref<12x16x8xbf16, #tpu.memory_space<vmem>>, vector<1x16x8xbf16>,
    %73 = vector.extract_strided_slice %64 {offsets = [0, 16], sizes = [16, 8], strides = [1, 1]} : vector<16x32xbf16> to vector<16x8xbf16>
    %c6 = arith.constant 6 : index
    %c0_32 = arith.constant 0 : index
    %c0_33 = arith.constant 0 : index
    %74 = vector.load %arg12[%c6, %c0_32, %c0_33] : memref<12x16x8xbf16, #tpu.memory_space<vmem>>, vector<1x16x8xbf16>
    %75 = vector.shape_cast %74 : vector<1x16x8xbf16> to vector<16x8xbf16>
    %76 = vector.shape_cast %73 : vector<16x8xbf16> to vector<1x16x8xbf16>
    tpu.vector_store %arg12[%c6, %c0_32, %c0_33], %76 {strides = array<i32>} : memref<12x16x8xbf16, #tpu.memory_space<vmem>>, vector<1x16x8xbf16>,
    %77 = vector.extract_strided_slice %64 {offsets = [0, 24], sizes = [16, 8], strides = [1, 1]} : vector<16x32xbf16> to vector<16x8xbf16>
    %c7 = arith.constant 7 : index
    %c0_34 = arith.constant 0 : index
    %c0_35 = arith.constant 0 : index
    %78 = vector.load %arg12[%c7, %c0_34, %c0_35] : memref<12x16x8xbf16, #tpu.memory_space<vmem>>, vector<1x16x8xbf16>
    %79 = vector.shape_cast %78 : vector<1x16x8xbf16> to vector<16x8xbf16>
    %80 = vector.shape_cast %77 : vector<16x8xbf16> to vector<1x16x8xbf16>
    tpu.vector_store %arg12[%c7, %c0_34, %c0_35], %80 {strides = array<i32>} : memref<12x16x8xbf16, #tpu.memory_space<vmem>>, vector<1x16x8xbf16>,
    %81 = vector.extract_strided_slice %31 {offsets = [2, 0, 0], sizes = [1, 32, 32], strides = [1, 1, 1]} : vector<3x32x32xbf16> to vector<1x32x32xbf16>
    %82 = vector.shape_cast %81 : vector<1x32x32xbf16> to vector<32x32xbf16>
    %cst_36 = arith.constant dense<0.000000e+00> : vector<16x32xf32>
    %83 = tpu.matmul %32, %82, %cst_36 {dimension_numbers = #tpu.dot_dimension_numbers<[1], [0], [0], [1], [0, 0, 1, 1], [], []>} : vector<16x32xbf16>, vector<32x32xbf16>, vector<16x32xf32> -> vector<16x32xf32>
    %84 = vector.extract_strided_slice %29 {offsets = [2, 0], sizes = [1, 32], strides = [1, 1]} : vector<10x64xf32> to vector<1x32xf32>
    %85 = vector.broadcast %84 : vector<1x32xf32> to vector<16x32xf32>
    %86 = arith.addf %83, %85 : vector<16x32xf32>
    %87 = arith.truncf %86 : vector<16x32xf32> to vector<16x32xbf16>
    %88 = vector.extract_strided_slice %87 {offsets = [0, 0], sizes = [16, 8], strides = [1, 1]} : vector<16x32xbf16> to vector<16x8xbf16>
    %c8 = arith.constant 8 : index
    %c0_37 = arith.constant 0 : index
    %c0_38 = arith.constant 0 : index
    %89 = vector.load %arg12[%c8, %c0_37, %c0_38] : memref<12x16x8xbf16, #tpu.memory_space<vmem>>, vector<1x16x8xbf16>
    %90 = vector.shape_cast %89 : vector<1x16x8xbf16> to vector<16x8xbf16>
    %91 = vector.shape_cast %88 : vector<16x8xbf16> to vector<1x16x8xbf16>
    tpu.vector_store %arg12[%c8, %c0_37, %c0_38], %91 {strides = array<i32>} : memref<12x16x8xbf16, #tpu.memory_space<vmem>>, vector<1x16x8xbf16>,
    %92 = vector.extract_strided_slice %87 {offsets = [0, 8], sizes = [16, 8], strides = [1, 1]} : vector<16x32xbf16> to vector<16x8xbf16>
    %c9 = arith.constant 9 : index
    %c0_39 = arith.constant 0 : index
    %c0_40 = arith.constant 0 : index
    %93 = vector.load %arg12[%c9, %c0_39, %c0_40] : memref<12x16x8xbf16, #tpu.memory_space<vmem>>, vector<1x16x8xbf16>
    %94 = vector.shape_cast %93 : vector<1x16x8xbf16> to vector<16x8xbf16>
    %95 = vector.shape_cast %92 : vector<16x8xbf16> to vector<1x16x8xbf16>
    tpu.vector_store %arg12[%c9, %c0_39, %c0_40], %95 {strides = array<i32>} : memref<12x16x8xbf16, #tpu.memory_space<vmem>>, vector<1x16x8xbf16>,
    %96 = vector.extract_strided_slice %87 {offsets = [0, 16], sizes = [16, 8], strides = [1, 1]} : vector<16x32xbf16> to vector<16x8xbf16>
    %c10 = arith.constant 10 : index
    %c0_41 = arith.constant 0 : index
    %c0_42 = arith.constant 0 : index
    %97 = vector.load %arg12[%c10, %c0_41, %c0_42] : memref<12x16x8xbf16, #tpu.memory_space<vmem>>, vector<1x16x8xbf16>
    %98 = vector.shape_cast %97 : vector<1x16x8xbf16> to vector<16x8xbf16>
    %99 = vector.shape_cast %96 : vector<16x8xbf16> to vector<1x16x8xbf16>
    tpu.vector_store %arg12[%c10, %c0_41, %c0_42], %99 {strides = array<i32>} : memref<12x16x8xbf16, #tpu.memory_space<vmem>>, vector<1x16x8xbf16>,
    %100 = vector.extract_strided_slice %87 {offsets = [0, 24], sizes = [16, 8], strides = [1, 1]} : vector<16x32xbf16> to vector<16x8xbf16>
    %c11 = arith.constant 11 : index
    %c0_43 = arith.constant 0 : index
    %c0_44 = arith.constant 0 : index
    %101 = vector.load %arg12[%c11, %c0_43, %c0_44] : memref<12x16x8xbf16, #tpu.memory_space<vmem>>, vector<1x16x8xbf16>
    %102 = vector.shape_cast %101 : vector<1x16x8xbf16> to vector<16x8xbf16>
    %103 = vector.shape_cast %100 : vector<16x8xbf16> to vector<1x16x8xbf16>
    tpu.vector_store %arg12[%c11, %c0_43, %c0_44], %103 {strides = array<i32>} : memref<12x16x8xbf16, #tpu.memory_space<vmem>>, vector<1x16x8xbf16>,
    %c0_45 = arith.constant 0 : index
    %c0_46 = arith.constant 0 : index
    %c0_47 = arith.constant 0 : index
    %104 = vector.load %arg12[%c0_45, %c0_46, %c0_47] : memref<12x16x8xbf16, #tpu.memory_space<vmem>>, vector<4x16x8xbf16>
    %c4_48 = arith.constant 4 : index
    %c0_49 = arith.constant 0 : index
    %c0_50 = arith.constant 0 : index
    %105 = vector.load %arg12[%c4_48, %c0_49, %c0_50] : memref<12x16x8xbf16, #tpu.memory_space<vmem>>, vector<4x16x8xbf16>
    %c8_51 = arith.constant 8 : index
    %c0_52 = arith.constant 0 : index
    %c0_53 = arith.constant 0 : index
    %106 = vector.load %arg12[%c8_51, %c0_52, %c0_53] : memref<12x16x8xbf16, #tpu.memory_space<vmem>>, vector<4x16x8xbf16>
    "tpu.trace_start"() <{level = 10 : i32, message = "hqd,hkd->hqk"}> : () -> ()
    %cst_54 = arith.constant dense<0.000000e+00> : vector<4x16x16xf32>
    %107 = tpu.matmul %104, %105, %cst_54 {dimension_numbers = #tpu.dot_dimension_numbers<[2], [2], [1], [1], [0, 0, 0, 1, 1, 1], [0], [0]>} : vector<4x16x8xbf16>, vector<4x16x8xbf16>, vector<4x16x16xf32> -> vector<4x16x16xf32>
    "tpu.trace_stop"() : () -> ()
    %108 = arith.addf %107, %27 : vector<4x16x16xf32>
    %cst_55 = arith.constant dense<0xFF800000> : vector<4x16xf32>
    %109 = vector.multi_reduction <maximumf>, %108, %cst_55 [2] : vector<4x16x16xf32> to vector<4x16xf32>
    %110 = vector.shape_cast %109 : vector<4x16xf32> to vector<4x16x1xf32>
    %111 = vector.broadcast %110 : vector<4x16x1xf32> to vector<4x16x16xf32>
    %112 = arith.subf %108, %111 : vector<4x16x16xf32>
    %113 = math.exp %112 : vector<4x16x16xf32>
    %cst_56 = arith.constant dense<0.000000e+00> : vector<4x16xf32>
    %114 = vector.multi_reduction <add>, %113, %cst_56 [2] : vector<4x16x16xf32> to vector<4x16xf32>
    %115 = vector.shape_cast %114 : vector<4x16xf32> to vector<4x16x1xf32>
    %116 = tpu.reciprocal %115 {approx = true} : vector<4x16x1xf32> -> vector<4x16x1xf32>
    %117 = vector.broadcast %116 : vector<4x16x1xf32> to vector<4x16x16xf32>
    %118 = arith.mulf %113, %117 : vector<4x16x16xf32>
    %119 = arith.truncf %118 : vector<4x16x16xf32> to vector<4x16x16xbf16>
    "tpu.trace_start"() <{level = 10 : i32, message = "hqk,hkd->hqd"}> : () -> ()
    %cst_57 = arith.constant dense<0.000000e+00> : vector<4x16x8xf32>
    %120 = tpu.matmul %119, %106, %cst_57 {dimension_numbers = #tpu.dot_dimension_numbers<[2], [1], [1], [2], [0, 0, 0, 1, 1, 2], [0], [0]>} : vector<4x16x16xbf16>, vector<4x16x8xbf16>, vector<4x16x8xf32> -> vector<4x16x8xf32>
    "tpu.trace_stop"() : () -> ()
    %121 = arith.truncf %120 : vector<4x16x8xf32> to vector<4x16x8xbf16>
    %122 = vector.extract_strided_slice %121 {offsets = [0, 0, 0], sizes = [1, 16, 8], strides = [1, 1, 1]} : vector<4x16x8xbf16> to vector<1x16x8xbf16>
    %123 = vector.shape_cast %122 : vector<1x16x8xbf16> to vector<16x8xbf16>
    %c0_58 = arith.constant 0 : index
    %c0_59 = arith.constant 0 : index
    %124 = vector.load %arg13[%c0_58, %c0_59] : memref<16x32xbf16, #tpu.memory_space<vmem>>, vector<16x8xbf16>
    tpu.vector_store %arg13[%c0_58, %c0_59], %123 {strides = array<i32>} : memref<16x32xbf16, #tpu.memory_space<vmem>>, vector<16x8xbf16>,
    %125 = vector.extract_strided_slice %121 {offsets = [1, 0, 0], sizes = [1, 16, 8], strides = [1, 1, 1]} : vector<4x16x8xbf16> to vector<1x16x8xbf16>
    %126 = vector.shape_cast %125 : vector<1x16x8xbf16> to vector<16x8xbf16>
    %c0_60 = arith.constant 0 : index
    %c8_61 = arith.constant 8 : index
    %127 = vector.load %arg13[%c0_60, %c8_61] : memref<16x32xbf16, #tpu.memory_space<vmem>>, vector<16x8xbf16>
    tpu.vector_store %arg13[%c0_60, %c8_61], %126 {strides = array<i32>} : memref<16x32xbf16, #tpu.memory_space<vmem>>, vector<16x8xbf16>,
    %128 = vector.extract_strided_slice %121 {offsets = [2, 0, 0], sizes = [1, 16, 8], strides = [1, 1, 1]} : vector<4x16x8xbf16> to vector<1x16x8xbf16>
    %129 = vector.shape_cast %128 : vector<1x16x8xbf16> to vector<16x8xbf16>
    %c0_62 = arith.constant 0 : index
    %c16 = arith.constant 16 : index
    %130 = vector.load %arg13[%c0_62, %c16] : memref<16x32xbf16, #tpu.memory_space<vmem>>, vector<16x8xbf16>
    tpu.vector_store %arg13[%c0_62, %c16], %129 {strides = array<i32>} : memref<16x32xbf16, #tpu.memory_space<vmem>>, vector<16x8xbf16>,
    %131 = vector.extract_strided_slice %121 {offsets = [3, 0, 0], sizes = [1, 16, 8], strides = [1, 1, 1]} : vector<4x16x8xbf16> to vector<1x16x8xbf16>
    %132 = vector.shape_cast %131 : vector<1x16x8xbf16> to vector<16x8xbf16>
    %c0_63 = arith.constant 0 : index
    %c24 = arith.constant 24 : index
    %133 = vector.load %arg13[%c0_63, %c24] : memref<16x32xbf16, #tpu.memory_space<vmem>>, vector<16x8xbf16>
    tpu.vector_store %arg13[%c0_63, %c24], %132 {strides = array<i32>} : memref<16x32xbf16, #tpu.memory_space<vmem>>, vector<16x8xbf16>,
    %c0_64 = arith.constant 0 : index
    %c0_65 = arith.constant 0 : index
    %134 = vector.load %arg13[%c0_64, %c0_65] : memref<16x32xbf16, #tpu.memory_space<vmem>>, vector<16x32xbf16>
    %c0_66 = arith.constant 0 : index
    %c0_67 = arith.constant 0 : index
    %c0_68 = arith.constant 0 : index
    %135 = vector.load %arg4[%c0_66, %c0_67, %c0_68] : memref<2x32x32xbf16, #tpu.memory_space<vmem>>, vector<1x32x32xbf16>
    %136 = vector.shape_cast %135 : vector<1x32x32xbf16> to vector<32x32xbf16>
    %cst_69 = arith.constant dense<0.000000e+00> : vector<16x32xf32>
    %137 = tpu.matmul %134, %136, %cst_69 {dimension_numbers = #tpu.dot_dimension_numbers<[1], [0], [0], [1], [0, 0, 1, 1], [], []>} : vector<16x32xbf16>, vector<32x32xbf16>, vector<16x32xf32> -> vector<16x32xf32>
    %138 = vector.extract_strided_slice %29 {offsets = [3, 0], sizes = [1, 32], strides = [1, 1]} : vector<10x64xf32> to vector<1x32xf32>
    %139 = vector.broadcast %138 : vector<1x32xf32> to vector<16x32xf32>
    %140 = arith.addf %137, %139 : vector<16x32xf32>
    %141 = arith.addf %140, %23 : vector<16x32xf32>
    %142 = vector.extract_strided_slice %29 {offsets = [4, 0], sizes = [1, 32], strides = [1, 1]} : vector<10x64xf32> to vector<1x32xf32>
    %143 = vector.extract_strided_slice %29 {offsets = [5, 0], sizes = [1, 32], strides = [1, 1]} : vector<10x64xf32> to vector<1x32xf32>
    %cst_70 = arith.constant dense<0.000000e+00> : vector<16xf32>
    %144 = vector.multi_reduction <add>, %141, %cst_70 [1] : vector<16x32xf32> to vector<16xf32>
    %145 = vector.shape_cast %144 : vector<16xf32> to vector<16x1xf32>
    %cst_71 = arith.constant 3.200000e+01 : f32
    %146 = vector.broadcast %cst_71 : f32 to vector<16x1xf32>
    %147 = arith.divf %145, %146 : vector<16x1xf32>
    %148 = vector.broadcast %147 : vector<16x1xf32> to vector<16x32xf32>
    %149 = arith.subf %141, %148 : vector<16x32xf32>
    %150 = arith.mulf %149, %149 : vector<16x32xf32>
    %cst_72 = arith.constant dense<0.000000e+00> : vector<16xf32>
    %151 = vector.multi_reduction <add>, %150, %cst_72 [1] : vector<16x32xf32> to vector<16xf32>
    %152 = vector.shape_cast %151 : vector<16xf32> to vector<16x1xf32>
    %cst_73 = arith.constant 3.200000e+01 : f32
    %153 = vector.broadcast %cst_73 : f32 to vector<16x1xf32>
    %154 = arith.divf %152, %153 : vector<16x1xf32>
    %cst_74 = arith.constant 9.99999996E-13 : f32
    %155 = vector.broadcast %cst_74 : f32 to vector<16x1xf32>
    %156 = arith.addf %154, %155 : vector<16x1xf32>
    %157 = math.rsqrt %156 : vector<16x1xf32>
    %158 = vector.broadcast %157 : vector<16x1xf32> to vector<16x32xf32>
    %159 = arith.mulf %149, %158 : vector<16x32xf32>
    %160 = vector.broadcast %142 : vector<1x32xf32> to vector<16x32xf32>
    %161 = arith.mulf %159, %160 : vector<16x32xf32>
    %162 = vector.broadcast %143 : vector<1x32xf32> to vector<16x32xf32>
    %163 = arith.addf %161, %162 : vector<16x32xf32>
    %164 = arith.truncf %163 : vector<16x32xf32> to vector<16x32xbf16>
    %c0_75 = arith.constant 0 : index
    %c0_76 = arith.constant 0 : index
    %c0_77 = arith.constant 0 : index
    %165 = vector.load %arg5[%c0_75, %c0_76, %c0_77] : memref<2x32x64xbf16, #tpu.memory_space<vmem>>, vector<1x32x64xbf16>
    %166 = vector.shape_cast %165 : vector<1x32x64xbf16> to vector<32x64xbf16>
    %cst_78 = arith.constant dense<0.000000e+00> : vector<16x64xf32>
    %167 = tpu.matmul %164, %166, %cst_78 {dimension_numbers = #tpu.dot_dimension_numbers<[1], [0], [0], [1], [0, 0, 1, 1], [], []>} : vector<16x32xbf16>, vector<32x64xbf16>, vector<16x64xf32> -> vector<16x64xf32>
    %168 = vector.extract_strided_slice %29 {offsets = [6, 0], sizes = [1, 64], strides = [1, 1]} : vector<10x64xf32> to vector<1x64xf32>
    %169 = vector.broadcast %168 : vector<1x64xf32> to vector<16x64xf32>
    %170 = arith.addf %167, %169 : vector<16x64xf32>
    %171 = arith.mulf %170, %170 : vector<16x64xf32>
    %172 = arith.mulf %170, %171 : vector<16x64xf32>
    %cst_79 = arith.constant 4.471500e-02 : f32
    %173 = vector.broadcast %cst_79 : f32 to vector<16x64xf32>
    %174 = arith.mulf %173, %172 : vector<16x64xf32>
    %175 = arith.addf %170, %174 : vector<16x64xf32>
    %cst_80 = arith.constant 0.797884583 : f32
    %176 = vector.broadcast %cst_80 : f32 to vector<16x64xf32>
    %177 = arith.mulf %176, %175 : vector<16x64xf32>
    %178 = math.tanh %177 : vector<16x64xf32>
    %cst_81 = arith.constant 1.000000e+00 : f32
    %179 = vector.broadcast %cst_81 : f32 to vector<16x64xf32>
    %180 = arith.addf %179, %178 : vector<16x64xf32>
    %cst_82 = arith.constant 5.000000e-01 : f32
    %181 = vector.broadcast %cst_82 : f32 to vector<16x64xf32>
    %182 = arith.mulf %181, %180 : vector<16x64xf32>
    %183 = arith.mulf %170, %182 : vector<16x64xf32>
    %184 = arith.truncf %183 : vector<16x64xf32> to vector<16x64xbf16>
    %c0_83 = arith.constant 0 : index
    %c0_84 = arith.constant 0 : index
    %c0_85 = arith.constant 0 : index
    %185 = vector.load %arg6[%c0_83, %c0_84, %c0_85] : memref<2x64x32xbf16, #tpu.memory_space<vmem>>, vector<1x64x32xbf16>
    %186 = vector.shape_cast %185 : vector<1x64x32xbf16> to vector<64x32xbf16>
    %cst_86 = arith.constant dense<0.000000e+00> : vector<16x32xf32>
    %187 = tpu.matmul %184, %186, %cst_86 {dimension_numbers = #tpu.dot_dimension_numbers<[1], [0], [0], [1], [0, 0, 1, 1], [], []>} : vector<16x64xbf16>, vector<64x32xbf16>, vector<16x32xf32> -> vector<16x32xf32>
    %188 = vector.extract_strided_slice %29 {offsets = [7, 0], sizes = [1, 32], strides = [1, 1]} : vector<10x64xf32> to vector<1x32xf32>
    %189 = vector.broadcast %188 : vector<1x32xf32> to vector<16x32xf32>
    %190 = arith.addf %187, %189 : vector<16x32xf32>
    %191 = arith.addf %190, %163 : vector<16x32xf32>
    %192 = vector.extract_strided_slice %29 {offsets = [8, 0], sizes = [1, 32], strides = [1, 1]} : vector<10x64xf32> to vector<1x32xf32>
    %193 = vector.extract_strided_slice %29 {offsets = [9, 0], sizes = [1, 32], strides = [1, 1]} : vector<10x64xf32> to vector<1x32xf32>
    %cst_87 = arith.constant dense<0.000000e+00> : vector<16xf32>
    %194 = vector.multi_reduction <add>, %191, %cst_87 [1] : vector<16x32xf32> to vector<16xf32>
    %195 = vector.shape_cast %194 : vector<16xf32> to vector<16x1xf32>
    %cst_88 = arith.constant 3.200000e+01 : f32
    %196 = vector.broadcast %cst_88 : f32 to vector<16x1xf32>
    %197 = arith.divf %195, %196 : vector<16x1xf32>
    %198 = vector.broadcast %197 : vector<16x1xf32> to vector<16x32xf32>
    %199 = arith.subf %191, %198 : vector<16x32xf32>
    %200 = arith.mulf %199, %199 : vector<16x32xf32>
    %cst_89 = arith.constant dense<0.000000e+00> : vector<16xf32>
    %201 = vector.multi_reduction <add>, %200, %cst_89 [1] : vector<16x32xf32> to vector<16xf32>
    %202 = vector.shape_cast %201 : vector<16xf32> to vector<16x1xf32>
    %cst_90 = arith.constant 3.200000e+01 : f32
    %203 = vector.broadcast %cst_90 : f32 to vector<16x1xf32>
    %204 = arith.divf %202, %203 : vector<16x1xf32>
    %cst_91 = arith.constant 9.99999996E-13 : f32
    %205 = vector.broadcast %cst_91 : f32 to vector<16x1xf32>
    %206 = arith.addf %204, %205 : vector<16x1xf32>
    %207 = math.rsqrt %206 : vector<16x1xf32>
    %208 = vector.broadcast %207 : vector<16x1xf32> to vector<16x32xf32>
    %209 = arith.mulf %199, %208 : vector<16x32xf32>
    %210 = vector.broadcast %192 : vector<1x32xf32> to vector<16x32xf32>
    %211 = arith.mulf %209, %210 : vector<16x32xf32>
    %212 = vector.broadcast %193 : vector<1x32xf32> to vector<16x32xf32>
    %213 = arith.addf %211, %212 : vector<16x32xf32>
    %c1_92 = arith.constant 1 : index
    %c0_93 = arith.constant 0 : index
    %c0_94 = arith.constant 0 : index
    %214 = vector.load %arg7[%c1_92, %c0_93, %c0_94] : memref<2x10x64xf32, #tpu.memory_space<vmem>>, vector<1x10x64xf32>
    %215 = vector.shape_cast %214 : vector<1x10x64xf32> to vector<10x64xf32>
    %c1_95 = arith.constant 1 : index
    %c0_96 = arith.constant 0 : index
    %c0_97 = arith.constant 0 : index
    %c0_98 = arith.constant 0 : index
    %216 = vector.load %arg3[%c1_95, %c0_96, %c0_97, %c0_98] : memref<2x3x32x32xbf16, #tpu.memory_space<vmem>>, vector<1x3x32x32xbf16>
    %217 = vector.shape_cast %216 : vector<1x3x32x32xbf16> to vector<3x32x32xbf16>
    %218 = arith.truncf %213 : vector<16x32xf32> to vector<16x32xbf16>
    %219 = vector.extract_strided_slice %217 {offsets = [0, 0, 0], sizes = [1, 32, 32], strides = [1, 1, 1]} : vector<3x32x32xbf16> to vector<1x32x32xbf16>
    %220 = vector.shape_cast %219 : vector<1x32x32xbf16> to vector<32x32xbf16>
    %cst_99 = arith.constant dense<0.000000e+00> : vector<16x32xf32>
    %221 = tpu.matmul %218, %220, %cst_99 {dimension_numbers = #tpu.dot_dimension_numbers<[1], [0], [0], [1], [0, 0, 1, 1], [], []>} : vector<16x32xbf16>, vector<32x32xbf16>, vector<16x32xf32> -> vector<16x32xf32>
    %222 = vector.extract_strided_slice %215 {offsets = [0, 0], sizes = [1, 32], strides = [1, 1]} : vector<10x64xf32> to vector<1x32xf32>
    %223 = vector.broadcast %222 : vector<1x32xf32> to vector<16x32xf32>
    %224 = arith.addf %221, %223 : vector<16x32xf32>
    %cst_100 = arith.constant 0.353553385 : f32
    %225 = vector.broadcast %cst_100 : f32 to vector<16x32xf32>
    %226 = arith.mulf %224, %225 : vector<16x32xf32>
    %227 = arith.truncf %226 : vector<16x32xf32> to vector<16x32xbf16>
    %228 = vector.extract_strided_slice %227 {offsets = [0, 0], sizes = [16, 8], strides = [1, 1]} : vector<16x32xbf16> to vector<16x8xbf16>
    %c0_101 = arith.constant 0 : index
    %c0_102 = arith.constant 0 : index
    %c0_103 = arith.constant 0 : index
    %229 = vector.load %arg12[%c0_101, %c0_102, %c0_103] : memref<12x16x8xbf16, #tpu.memory_space<vmem>>, vector<1x16x8xbf16>
    %230 = vector.shape_cast %229 : vector<1x16x8xbf16> to vector<16x8xbf16>
    %231 = vector.shape_cast %228 : vector<16x8xbf16> to vector<1x16x8xbf16>
    tpu.vector_store %arg12[%c0_101, %c0_102, %c0_103], %231 {strides = array<i32>} : memref<12x16x8xbf16, #tpu.memory_space<vmem>>, vector<1x16x8xbf16>,
    %232 = vector.extract_strided_slice %227 {offsets = [0, 8], sizes = [16, 8], strides = [1, 1]} : vector<16x32xbf16> to vector<16x8xbf16>
    %c1_104 = arith.constant 1 : index
    %c0_105 = arith.constant 0 : index
    %c0_106 = arith.constant 0 : index
    %233 = vector.load %arg12[%c1_104, %c0_105, %c0_106] : memref<12x16x8xbf16, #tpu.memory_space<vmem>>, vector<1x16x8xbf16>
    %234 = vector.shape_cast %233 : vector<1x16x8xbf16> to vector<16x8xbf16>
    %235 = vector.shape_cast %232 : vector<16x8xbf16> to vector<1x16x8xbf16>
    tpu.vector_store %arg12[%c1_104, %c0_105, %c0_106], %235 {strides = array<i32>} : memref<12x16x8xbf16, #tpu.memory_space<vmem>>, vector<1x16x8xbf16>,
    %236 = vector.extract_strided_slice %227 {offsets = [0, 16], sizes = [16, 8], strides = [1, 1]} : vector<16x32xbf16> to vector<16x8xbf16>
    %c2_107 = arith.constant 2 : index
    %c0_108 = arith.constant 0 : index
    %c0_109 = arith.constant 0 : index
    %237 = vector.load %arg12[%c2_107, %c0_108, %c0_109] : memref<12x16x8xbf16, #tpu.memory_space<vmem>>, vector<1x16x8xbf16>
    %238 = vector.shape_cast %237 : vector<1x16x8xbf16> to vector<16x8xbf16>
    %239 = vector.shape_cast %236 : vector<16x8xbf16> to vector<1x16x8xbf16>
    tpu.vector_store %arg12[%c2_107, %c0_108, %c0_109], %239 {strides = array<i32>} : memref<12x16x8xbf16, #tpu.memory_space<vmem>>, vector<1x16x8xbf16>,
    %240 = vector.extract_strided_slice %227 {offsets = [0, 24], sizes = [16, 8], strides = [1, 1]} : vector<16x32xbf16> to vector<16x8xbf16>
    %c3_110 = arith.constant 3 : index
    %c0_111 = arith.constant 0 : index
    %c0_112 = arith.constant 0 : index
    %241 = vector.load %arg12[%c3_110, %c0_111, %c0_112] : memref<12x16x8xbf16, #tpu.memory_space<vmem>>, vector<1x16x8xbf16>
    %242 = vector.shape_cast %241 : vector<1x16x8xbf16> to vector<16x8xbf16>
    %243 = vector.shape_cast %240 : vector<16x8xbf16> to vector<1x16x8xbf16>
    tpu.vector_store %arg12[%c3_110, %c0_111, %c0_112], %243 {strides = array<i32>} : memref<12x16x8xbf16, #tpu.memory_space<vmem>>, vector<1x16x8xbf16>,
    %244 = vector.extract_strided_slice %217 {offsets = [1, 0, 0], sizes = [1, 32, 32], strides = [1, 1, 1]} : vector<3x32x32xbf16> to vector<1x32x32xbf16>
    %245 = vector.shape_cast %244 : vector<1x32x32xbf16> to vector<32x32xbf16>
    %cst_113 = arith.constant dense<0.000000e+00> : vector<16x32xf32>
    %246 = tpu.matmul %218, %245, %cst_113 {dimension_numbers = #tpu.dot_dimension_numbers<[1], [0], [0], [1], [0, 0, 1, 1], [], []>} : vector<16x32xbf16>, vector<32x32xbf16>, vector<16x32xf32> -> vector<16x32xf32>
    %247 = vector.extract_strided_slice %215 {offsets = [1, 0], sizes = [1, 32], strides = [1, 1]} : vector<10x64xf32> to vector<1x32xf32>
    %248 = vector.broadcast %247 : vector<1x32xf32> to vector<16x32xf32>
    %249 = arith.addf %246, %248 : vector<16x32xf32>
    %250 = arith.truncf %249 : vector<16x32xf32> to vector<16x32xbf16>
    %251 = vector.extract_strided_slice %250 {offsets = [0, 0], sizes = [16, 8], strides = [1, 1]} : vector<16x32xbf16> to vector<16x8xbf16>
    %c4_114 = arith.constant 4 : index
    %c0_115 = arith.constant 0 : index
    %c0_116 = arith.constant 0 : index
    %252 = vector.load %arg12[%c4_114, %c0_115, %c0_116] : memref<12x16x8xbf16, #tpu.memory_space<vmem>>, vector<1x16x8xbf16>
    %253 = vector.shape_cast %252 : vector<1x16x8xbf16> to vector<16x8xbf16>
    %254 = vector.shape_cast %251 : vector<16x8xbf16> to vector<1x16x8xbf16>
    tpu.vector_store %arg12[%c4_114, %c0_115, %c0_116], %254 {strides = array<i32>} : memref<12x16x8xbf16, #tpu.memory_space<vmem>>, vector<1x16x8xbf16>,
    %255 = vector.extract_strided_slice %250 {offsets = [0, 8], sizes = [16, 8], strides = [1, 1]} : vector<16x32xbf16> to vector<16x8xbf16>
    %c5_117 = arith.constant 5 : index
    %c0_118 = arith.constant 0 : index
    %c0_119 = arith.constant 0 : index
    %256 = vector.load %arg12[%c5_117, %c0_118, %c0_119] : memref<12x16x8xbf16, #tpu.memory_space<vmem>>, vector<1x16x8xbf16>
    %257 = vector.shape_cast %256 : vector<1x16x8xbf16> to vector<16x8xbf16>
    %258 = vector.shape_cast %255 : vector<16x8xbf16> to vector<1x16x8xbf16>
    tpu.vector_store %arg12[%c5_117, %c0_118, %c0_119], %258 {strides = array<i32>} : memref<12x16x8xbf16, #tpu.memory_space<vmem>>, vector<1x16x8xbf16>,
    %259 = vector.extract_strided_slice %250 {offsets = [0, 16], sizes = [16, 8], strides = [1, 1]} : vector<16x32xbf16> to vector<16x8xbf16>
    %c6_120 = arith.constant 6 : index
    %c0_121 = arith.constant 0 : index
    %c0_122 = arith.constant 0 : index
    %260 = vector.load %arg12[%c6_120, %c0_121, %c0_122] : memref<12x16x8xbf16, #tpu.memory_space<vmem>>, vector<1x16x8xbf16>
    %261 = vector.shape_cast %260 : vector<1x16x8xbf16> to vector<16x8xbf16>
    %262 = vector.shape_cast %259 : vector<16x8xbf16> to vector<1x16x8xbf16>
    tpu.vector_store %arg12[%c6_120, %c0_121, %c0_122], %262 {strides = array<i32>} : memref<12x16x8xbf16, #tpu.memory_space<vmem>>, vector<1x16x8xbf16>,
    %263 = vector.extract_strided_slice %250 {offsets = [0, 24], sizes = [16, 8], strides = [1, 1]} : vector<16x32xbf16> to vector<16x8xbf16>
    %c7_123 = arith.constant 7 : index
    %c0_124 = arith.constant 0 : index
    %c0_125 = arith.constant 0 : index
    %264 = vector.load %arg12[%c7_123, %c0_124, %c0_125] : memref<12x16x8xbf16, #tpu.memory_space<vmem>>, vector<1x16x8xbf16>
    %265 = vector.shape_cast %264 : vector<1x16x8xbf16> to vector<16x8xbf16>
    %266 = vector.shape_cast %263 : vector<16x8xbf16> to vector<1x16x8xbf16>
    tpu.vector_store %arg12[%c7_123, %c0_124, %c0_125], %266 {strides = array<i32>} : memref<12x16x8xbf16, #tpu.memory_space<vmem>>, vector<1x16x8xbf16>,
    %267 = vector.extract_strided_slice %217 {offsets = [2, 0, 0], sizes = [1, 32, 32], strides = [1, 1, 1]} : vector<3x32x32xbf16> to vector<1x32x32xbf16>
    %268 = vector.shape_cast %267 : vector<1x32x32xbf16> to vector<32x32xbf16>
    %cst_126 = arith.constant dense<0.000000e+00> : vector<16x32xf32>
    %269 = tpu.matmul %218, %268, %cst_126 {dimension_numbers = #tpu.dot_dimension_numbers<[1], [0], [0], [1], [0, 0, 1, 1], [], []>} : vector<16x32xbf16>, vector<32x32xbf16>, vector<16x32xf32> -> vector<16x32xf32>
    %270 = vector.extract_strided_slice %215 {offsets = [2, 0], sizes = [1, 32], strides = [1, 1]} : vector<10x64xf32> to vector<1x32xf32>
    %271 = vector.broadcast %270 : vector<1x32xf32> to vector<16x32xf32>
    %272 = arith.addf %269, %271 : vector<16x32xf32>
    %273 = arith.truncf %272 : vector<16x32xf32> to vector<16x32xbf16>
    %274 = vector.extract_strided_slice %273 {offsets = [0, 0], sizes = [16, 8], strides = [1, 1]} : vector<16x32xbf16> to vector<16x8xbf16>
    %c8_127 = arith.constant 8 : index
    %c0_128 = arith.constant 0 : index
    %c0_129 = arith.constant 0 : index
    %275 = vector.load %arg12[%c8_127, %c0_128, %c0_129] : memref<12x16x8xbf16, #tpu.memory_space<vmem>>, vector<1x16x8xbf16>
    %276 = vector.shape_cast %275 : vector<1x16x8xbf16> to vector<16x8xbf16>
    %277 = vector.shape_cast %274 : vector<16x8xbf16> to vector<1x16x8xbf16>
    tpu.vector_store %arg12[%c8_127, %c0_128, %c0_129], %277 {strides = array<i32>} : memref<12x16x8xbf16, #tpu.memory_space<vmem>>, vector<1x16x8xbf16>,
    %278 = vector.extract_strided_slice %273 {offsets = [0, 8], sizes = [16, 8], strides = [1, 1]} : vector<16x32xbf16> to vector<16x8xbf16>
    %c9_130 = arith.constant 9 : index
    %c0_131 = arith.constant 0 : index
    %c0_132 = arith.constant 0 : index
    %279 = vector.load %arg12[%c9_130, %c0_131, %c0_132] : memref<12x16x8xbf16, #tpu.memory_space<vmem>>, vector<1x16x8xbf16>
    %280 = vector.shape_cast %279 : vector<1x16x8xbf16> to vector<16x8xbf16>
    %281 = vector.shape_cast %278 : vector<16x8xbf16> to vector<1x16x8xbf16>
    tpu.vector_store %arg12[%c9_130, %c0_131, %c0_132], %281 {strides = array<i32>} : memref<12x16x8xbf16, #tpu.memory_space<vmem>>, vector<1x16x8xbf16>,
    %282 = vector.extract_strided_slice %273 {offsets = [0, 16], sizes = [16, 8], strides = [1, 1]} : vector<16x32xbf16> to vector<16x8xbf16>
    %c10_133 = arith.constant 10 : index
    %c0_134 = arith.constant 0 : index
    %c0_135 = arith.constant 0 : index
    %283 = vector.load %arg12[%c10_133, %c0_134, %c0_135] : memref<12x16x8xbf16, #tpu.memory_space<vmem>>, vector<1x16x8xbf16>
    %284 = vector.shape_cast %283 : vector<1x16x8xbf16> to vector<16x8xbf16>
    %285 = vector.shape_cast %282 : vector<16x8xbf16> to vector<1x16x8xbf16>
    tpu.vector_store %arg12[%c10_133, %c0_134, %c0_135], %285 {strides = array<i32>} : memref<12x16x8xbf16, #tpu.memory_space<vmem>>, vector<1x16x8xbf16>,
    %286 = vector.extract_strided_slice %273 {offsets = [0, 24], sizes = [16, 8], strides = [1, 1]} : vector<16x32xbf16> to vector<16x8xbf16>
    %c11_136 = arith.constant 11 : index
    %c0_137 = arith.constant 0 : index
    %c0_138 = arith.constant 0 : index
    %287 = vector.load %arg12[%c11_136, %c0_137, %c0_138] : memref<12x16x8xbf16, #tpu.memory_space<vmem>>, vector<1x16x8xbf16>
    %288 = vector.shape_cast %287 : vector<1x16x8xbf16> to vector<16x8xbf16>
    %289 = vector.shape_cast %286 : vector<16x8xbf16> to vector<1x16x8xbf16>
    tpu.vector_store %arg12[%c11_136, %c0_137, %c0_138], %289 {strides = array<i32>} : memref<12x16x8xbf16, #tpu.memory_space<vmem>>, vector<1x16x8xbf16>,
    %c0_139 = arith.constant 0 : index
    %c0_140 = arith.constant 0 : index
    %c0_141 = arith.constant 0 : index
    %290 = vector.load %arg12[%c0_139, %c0_140, %c0_141] : memref<12x16x8xbf16, #tpu.memory_space<vmem>>, vector<4x16x8xbf16>
    %c4_142 = arith.constant 4 : index
    %c0_143 = arith.constant 0 : index
    %c0_144 = arith.constant 0 : index
    %291 = vector.load %arg12[%c4_142, %c0_143, %c0_144] : memref<12x16x8xbf16, #tpu.memory_space<vmem>>, vector<4x16x8xbf16>
    %c8_145 = arith.constant 8 : index
    %c0_146 = arith.constant 0 : index
    %c0_147 = arith.constant 0 : index
    %292 = vector.load %arg12[%c8_145, %c0_146, %c0_147] : memref<12x16x8xbf16, #tpu.memory_space<vmem>>, vector<4x16x8xbf16>
    "tpu.trace_start"() <{level = 10 : i32, message = "hqd,hkd->hqk"}> : () -> ()
    %cst_148 = arith.constant dense<0.000000e+00> : vector<4x16x16xf32>
    %293 = tpu.matmul %290, %291, %cst_148 {dimension_numbers = #tpu.dot_dimension_numbers<[2], [2], [1], [1], [0, 0, 0, 1, 1, 1], [0], [0]>} : vector<4x16x8xbf16>, vector<4x16x8xbf16>, vector<4x16x16xf32> -> vector<4x16x16xf32>
    "tpu.trace_stop"() : () -> ()
    %294 = arith.addf %293, %27 : vector<4x16x16xf32>
    %cst_149 = arith.constant dense<0xFF800000> : vector<4x16xf32>
    %295 = vector.multi_reduction <maximumf>, %294, %cst_149 [2] : vector<4x16x16xf32> to vector<4x16xf32>
    %296 = vector.shape_cast %295 : vector<4x16xf32> to vector<4x16x1xf32>
    %297 = vector.broadcast %296 : vector<4x16x1xf32> to vector<4x16x16xf32>
    %298 = arith.subf %294, %297 : vector<4x16x16xf32>
    %299 = math.exp %298 : vector<4x16x16xf32>
    %cst_150 = arith.constant dense<0.000000e+00> : vector<4x16xf32>
    %300 = vector.multi_reduction <add>, %299, %cst_150 [2] : vector<4x16x16xf32> to vector<4x16xf32>
    %301 = vector.shape_cast %300 : vector<4x16xf32> to vector<4x16x1xf32>
    %302 = tpu.reciprocal %301 {approx = true} : vector<4x16x1xf32> -> vector<4x16x1xf32>
    %303 = vector.broadcast %302 : vector<4x16x1xf32> to vector<4x16x16xf32>
    %304 = arith.mulf %299, %303 : vector<4x16x16xf32>
    %305 = arith.truncf %304 : vector<4x16x16xf32> to vector<4x16x16xbf16>
    "tpu.trace_start"() <{level = 10 : i32, message = "hqk,hkd->hqd"}> : () -> ()
    %cst_151 = arith.constant dense<0.000000e+00> : vector<4x16x8xf32>
    %306 = tpu.matmul %305, %292, %cst_151 {dimension_numbers = #tpu.dot_dimension_numbers<[2], [1], [1], [2], [0, 0, 0, 1, 1, 2], [0], [0]>} : vector<4x16x16xbf16>, vector<4x16x8xbf16>, vector<4x16x8xf32> -> vector<4x16x8xf32>
    "tpu.trace_stop"() : () -> ()
    %307 = arith.truncf %306 : vector<4x16x8xf32> to vector<4x16x8xbf16>
    %308 = vector.extract_strided_slice %307 {offsets = [0, 0, 0], sizes = [1, 16, 8], strides = [1, 1, 1]} : vector<4x16x8xbf16> to vector<1x16x8xbf16>
    %309 = vector.shape_cast %308 : vector<1x16x8xbf16> to vector<16x8xbf16>
    %c0_152 = arith.constant 0 : index
    %c0_153 = arith.constant 0 : index
    %310 = vector.load %arg13[%c0_152, %c0_153] : memref<16x32xbf16, #tpu.memory_space<vmem>>, vector<16x8xbf16>
    tpu.vector_store %arg13[%c0_152, %c0_153], %309 {strides = array<i32>} : memref<16x32xbf16, #tpu.memory_space<vmem>>, vector<16x8xbf16>,
    %311 = vector.extract_strided_slice %307 {offsets = [1, 0, 0], sizes = [1, 16, 8], strides = [1, 1, 1]} : vector<4x16x8xbf16> to vector<1x16x8xbf16>
    %312 = vector.shape_cast %311 : vector<1x16x8xbf16> to vector<16x8xbf16>
    %c0_154 = arith.constant 0 : index
    %c8_155 = arith.constant 8 : index
    %313 = vector.load %arg13[%c0_154, %c8_155] : memref<16x32xbf16, #tpu.memory_space<vmem>>, vector<16x8xbf16>
    tpu.vector_store %arg13[%c0_154, %c8_155], %312 {strides = array<i32>} : memref<16x32xbf16, #tpu.memory_space<vmem>>, vector<16x8xbf16>,
    %314 = vector.extract_strided_slice %307 {offsets = [2, 0, 0], sizes = [1, 16, 8], strides = [1, 1, 1]} : vector<4x16x8xbf16> to vector<1x16x8xbf16>
    %315 = vector.shape_cast %314 : vector<1x16x8xbf16> to vector<16x8xbf16>
    %c0_156 = arith.constant 0 : index
    %c16_157 = arith.constant 16 : index
    %316 = vector.load %arg13[%c0_156, %c16_157] : memref<16x32xbf16, #tpu.memory_space<vmem>>, vector<16x8xbf16>
    tpu.vector_store %arg13[%c0_156, %c16_157], %315 {strides = array<i32>} : memref<16x32xbf16, #tpu.memory_space<vmem>>, vector<16x8xbf16>,
    %317 = vector.extract_strided_slice %307 {offsets = [3, 0, 0], sizes = [1, 16, 8], strides = [1, 1, 1]} : vector<4x16x8xbf16> to vector<1x16x8xbf16>
    %318 = vector.shape_cast %317 : vector<1x16x8xbf16> to vector<16x8xbf16>
    %c0_158 = arith.constant 0 : index
    %c24_159 = arith.constant 24 : index
    %319 = vector.load %arg13[%c0_158, %c24_159] : memref<16x32xbf16, #tpu.memory_space<vmem>>, vector<16x8xbf16>
    tpu.vector_store %arg13[%c0_158, %c24_159], %318 {strides = array<i32>} : memref<16x32xbf16, #tpu.memory_space<vmem>>, vector<16x8xbf16>,
    %c0_160 = arith.constant 0 : index
    %c0_161 = arith.constant 0 : index
    %320 = vector.load %arg13[%c0_160, %c0_161] : memref<16x32xbf16, #tpu.memory_space<vmem>>, vector<16x32xbf16>
    %c1_162 = arith.constant 1 : index
    %c0_163 = arith.constant 0 : index
    %c0_164 = arith.constant 0 : index
    %321 = vector.load %arg4[%c1_162, %c0_163, %c0_164] : memref<2x32x32xbf16, #tpu.memory_space<vmem>>, vector<1x32x32xbf16>
    %322 = vector.shape_cast %321 : vector<1x32x32xbf16> to vector<32x32xbf16>
    %cst_165 = arith.constant dense<0.000000e+00> : vector<16x32xf32>
    %323 = tpu.matmul %320, %322, %cst_165 {dimension_numbers = #tpu.dot_dimension_numbers<[1], [0], [0], [1], [0, 0, 1, 1], [], []>} : vector<16x32xbf16>, vector<32x32xbf16>, vector<16x32xf32> -> vector<16x32xf32>
    %324 = vector.extract_strided_slice %215 {offsets = [3, 0], sizes = [1, 32], strides = [1, 1]} : vector<10x64xf32> to vector<1x32xf32>
    %325 = vector.broadcast %324 : vector<1x32xf32> to vector<16x32xf32>
    %326 = arith.addf %323, %325 : vector<16x32xf32>
    %327 = arith.addf %326, %213 : vector<16x32xf32>
    %328 = vector.extract_strided_slice %215 {offsets = [4, 0], sizes = [1, 32], strides = [1, 1]} : vector<10x64xf32> to vector<1x32xf32>
    %329 = vector.extract_strided_slice %215 {offsets = [5, 0], sizes = [1, 32], strides = [1, 1]} : vector<10x64xf32> to vector<1x32xf32>
    %cst_166 = arith.constant dense<0.000000e+00> : vector<16xf32>
    %330 = vector.multi_reduction <add>, %327, %cst_166 [1] : vector<16x32xf32> to vector<16xf32>
    %331 = vector.shape_cast %330 : vector<16xf32> to vector<16x1xf32>
    %cst_167 = arith.constant 3.200000e+01 : f32
    %332 = vector.broadcast %cst_167 : f32 to vector<16x1xf32>
    %333 = arith.divf %331, %332 : vector<16x1xf32>
    %334 = vector.broadcast %333 : vector<16x1xf32> to vector<16x32xf32>
    %335 = arith.subf %327, %334 : vector<16x32xf32>
    %336 = arith.mulf %335, %335 : vector<16x32xf32>
    %cst_168 = arith.constant dense<0.000000e+00> : vector<16xf32>
    %337 = vector.multi_reduction <add>, %336, %cst_168 [1] : vector<16x32xf32> to vector<16xf32>
    %338 = vector.shape_cast %337 : vector<16xf32> to vector<16x1xf32>
    %cst_169 = arith.constant 3.200000e+01 : f32
    %339 = vector.broadcast %cst_169 : f32 to vector<16x1xf32>
    %340 = arith.divf %338, %339 : vector<16x1xf32>
    %cst_170 = arith.constant 9.99999996E-13 : f32
    %341 = vector.broadcast %cst_170 : f32 to vector<16x1xf32>
    %342 = arith.addf %340, %341 : vector<16x1xf32>
    %343 = math.rsqrt %342 : vector<16x1xf32>
    %344 = vector.broadcast %343 : vector<16x1xf32> to vector<16x32xf32>
    %345 = arith.mulf %335, %344 : vector<16x32xf32>
    %346 = vector.broadcast %328 : vector<1x32xf32> to vector<16x32xf32>
    %347 = arith.mulf %345, %346 : vector<16x32xf32>
    %348 = vector.broadcast %329 : vector<1x32xf32> to vector<16x32xf32>
    %349 = arith.addf %347, %348 : vector<16x32xf32>
    %350 = arith.truncf %349 : vector<16x32xf32> to vector<16x32xbf16>
    %c1_171 = arith.constant 1 : index
    %c0_172 = arith.constant 0 : index
    %c0_173 = arith.constant 0 : index
    %351 = vector.load %arg5[%c1_171, %c0_172, %c0_173] : memref<2x32x64xbf16, #tpu.memory_space<vmem>>, vector<1x32x64xbf16>
    %352 = vector.shape_cast %351 : vector<1x32x64xbf16> to vector<32x64xbf16>
    %cst_174 = arith.constant dense<0.000000e+00> : vector<16x64xf32>
    %353 = tpu.matmul %350, %352, %cst_174 {dimension_numbers = #tpu.dot_dimension_numbers<[1], [0], [0], [1], [0, 0, 1, 1], [], []>} : vector<16x32xbf16>, vector<32x64xbf16>, vector<16x64xf32> -> vector<16x64xf32>
    %354 = vector.extract_strided_slice %215 {offsets = [6, 0], sizes = [1, 64], strides = [1, 1]} : vector<10x64xf32> to vector<1x64xf32>
    %355 = vector.broadcast %354 : vector<1x64xf32> to vector<16x64xf32>
    %356 = arith.addf %353, %355 : vector<16x64xf32>
    %357 = arith.mulf %356, %356 : vector<16x64xf32>
    %358 = arith.mulf %356, %357 : vector<16x64xf32>
    %cst_175 = arith.constant 4.471500e-02 : f32
    %359 = vector.broadcast %cst_175 : f32 to vector<16x64xf32>
    %360 = arith.mulf %359, %358 : vector<16x64xf32>
    %361 = arith.addf %356, %360 : vector<16x64xf32>
    %cst_176 = arith.constant 0.797884583 : f32
    %362 = vector.broadcast %cst_176 : f32 to vector<16x64xf32>
    %363 = arith.mulf %362, %361 : vector<16x64xf32>
    %364 = math.tanh %363 : vector<16x64xf32>
    %cst_177 = arith.constant 1.000000e+00 : f32
    %365 = vector.broadcast %cst_177 : f32 to vector<16x64xf32>
    %366 = arith.addf %365, %364 : vector<16x64xf32>
    %cst_178 = arith.constant 5.000000e-01 : f32
    %367 = vector.broadcast %cst_178 : f32 to vector<16x64xf32>
    %368 = arith.mulf %367, %366 : vector<16x64xf32>
    %369 = arith.mulf %356, %368 : vector<16x64xf32>
    %370 = arith.truncf %369 : vector<16x64xf32> to vector<16x64xbf16>
    %c1_179 = arith.constant 1 : index
    %c0_180 = arith.constant 0 : index
    %c0_181 = arith.constant 0 : index
    %371 = vector.load %arg6[%c1_179, %c0_180, %c0_181] : memref<2x64x32xbf16, #tpu.memory_space<vmem>>, vector<1x64x32xbf16>
    %372 = vector.shape_cast %371 : vector<1x64x32xbf16> to vector<64x32xbf16>
    %cst_182 = arith.constant dense<0.000000e+00> : vector<16x32xf32>
    %373 = tpu.matmul %370, %372, %cst_182 {dimension_numbers = #tpu.dot_dimension_numbers<[1], [0], [0], [1], [0, 0, 1, 1], [], []>} : vector<16x64xbf16>, vector<64x32xbf16>, vector<16x32xf32> -> vector<16x32xf32>
    %374 = vector.extract_strided_slice %215 {offsets = [7, 0], sizes = [1, 32], strides = [1, 1]} : vector<10x64xf32> to vector<1x32xf32>
    %375 = vector.broadcast %374 : vector<1x32xf32> to vector<16x32xf32>
    %376 = arith.addf %373, %375 : vector<16x32xf32>
    %377 = arith.addf %376, %349 : vector<16x32xf32>
    %378 = vector.extract_strided_slice %215 {offsets = [8, 0], sizes = [1, 32], strides = [1, 1]} : vector<10x64xf32> to vector<1x32xf32>
    %379 = vector.extract_strided_slice %215 {offsets = [9, 0], sizes = [1, 32], strides = [1, 1]} : vector<10x64xf32> to vector<1x32xf32>
    %cst_183 = arith.constant dense<0.000000e+00> : vector<16xf32>
    %380 = vector.multi_reduction <add>, %377, %cst_183 [1] : vector<16x32xf32> to vector<16xf32>
    %381 = vector.shape_cast %380 : vector<16xf32> to vector<16x1xf32>
    %cst_184 = arith.constant 3.200000e+01 : f32
    %382 = vector.broadcast %cst_184 : f32 to vector<16x1xf32>
    %383 = arith.divf %381, %382 : vector<16x1xf32>
    %384 = vector.broadcast %383 : vector<16x1xf32> to vector<16x32xf32>
    %385 = arith.subf %377, %384 : vector<16x32xf32>
    %386 = arith.mulf %385, %385 : vector<16x32xf32>
    %cst_185 = arith.constant dense<0.000000e+00> : vector<16xf32>
    %387 = vector.multi_reduction <add>, %386, %cst_185 [1] : vector<16x32xf32> to vector<16xf32>
    %388 = vector.shape_cast %387 : vector<16xf32> to vector<16x1xf32>
    %cst_186 = arith.constant 3.200000e+01 : f32
    %389 = vector.broadcast %cst_186 : f32 to vector<16x1xf32>
    %390 = arith.divf %388, %389 : vector<16x1xf32>
    %cst_187 = arith.constant 9.99999996E-13 : f32
    %391 = vector.broadcast %cst_187 : f32 to vector<16x1xf32>
    %392 = arith.addf %390, %391 : vector<16x1xf32>
    %393 = math.rsqrt %392 : vector<16x1xf32>
    %394 = vector.broadcast %393 : vector<16x1xf32> to vector<16x32xf32>
    %395 = arith.mulf %385, %394 : vector<16x32xf32>
    %396 = vector.broadcast %378 : vector<1x32xf32> to vector<16x32xf32>
    %397 = arith.mulf %395, %396 : vector<16x32xf32>
    %398 = vector.broadcast %379 : vector<1x32xf32> to vector<16x32xf32>
    %399 = arith.addf %397, %398 : vector<16x32xf32>
    %400 = vector.extract_strided_slice %399 {offsets = [0, 0], sizes = [1, 32], strides = [1, 1]} : vector<16x32xf32> to vector<1x32xf32>
    %401 = vector.extract_strided_slice %399 {offsets = [8, 0], sizes = [1, 32], strides = [1, 1]} : vector<16x32xf32> to vector<1x32xf32>
    %402 = tpu.concatenate %400, %401 in 0 : vector<1x32xf32>, vector<1x32xf32> -> vector<2x32xf32>
    %403 = arith.truncf %402 : vector<2x32xf32> to vector<2x32xbf16>
    %c0_188 = arith.constant 0 : index
    %c0_189 = arith.constant 0 : index
    %404 = vector.load %arg8[%c0_188, %c0_189] : memref<32x16xbf16, #tpu.memory_space<vmem>>, vector<32x16xbf16>
    %cst_190 = arith.constant dense<0.000000e+00> : vector<2x16xf32>
    %405 = tpu.matmul %403, %404, %cst_190 {dimension_numbers = #tpu.dot_dimension_numbers<[1], [0], [0], [1], [0, 0, 1, 1], [], []>} : vector<2x32xbf16>, vector<32x16xbf16>, vector<2x16xf32> -> vector<2x16xf32>
    %406 = vector.extract_strided_slice %0 {offsets = [2, 0], sizes = [1, 16], strides = [1, 1]} : vector<4x128xf32> to vector<1x16xf32>
    %407 = vector.broadcast %406 : vector<1x16xf32> to vector<2x16xf32>
    %408 = arith.addf %405, %407 : vector<2x16xf32>
    %cst_191 = arith.constant 0.000000e+00 : f32
    %409 = vector.broadcast %cst_191 : f32 to vector<2x16xf32>
    %410 = arith.maximumf %408, %409 : vector<2x16xf32>
    %411 = arith.truncf %410 : vector<2x16xf32> to vector<2x16xbf16>
    %c0_192 = arith.constant 0 : index
    %c0_193 = arith.constant 0 : index
    %412 = vector.load %arg9[%c0_192, %c0_193] : memref<16x128xbf16, #tpu.memory_space<vmem>>, vector<16x128xbf16>
    %cst_194 = arith.constant dense<0.000000e+00> : vector<2x128xf32>
    %413 = tpu.matmul %411, %412, %cst_194 {dimension_numbers = #tpu.dot_dimension_numbers<[1], [0], [0], [1], [0, 0, 1, 1], [], []>} : vector<2x16xbf16>, vector<16x128xbf16>, vector<2x128xf32> -> vector<2x128xf32>
    %414 = vector.extract_strided_slice %0 {offsets = [3, 0], sizes = [1, 128], strides = [1, 1]} : vector<4x128xf32> to vector<1x128xf32>
    %415 = vector.broadcast %414 : vector<1x128xf32> to vector<2x128xf32>
    %416 = arith.addf %413, %415 : vector<2x128xf32>
    %cst_195 = arith.constant dense<0xFF800000> : vector<2xf32>
    %417 = vector.multi_reduction <maximumf>, %416, %cst_195 [1] : vector<2x128xf32> to vector<2xf32>
    %418 = vector.shape_cast %417 : vector<2xf32> to vector<2x1xf32>
    %419 = vector.broadcast %418 : vector<2x1xf32> to vector<2x128xf32>
    %420 = arith.subf %416, %419 : vector<2x128xf32>
    %421 = math.exp %420 : vector<2x128xf32>
    %cst_196 = arith.constant dense<0.000000e+00> : vector<2xf32>
    %422 = vector.multi_reduction <add>, %421, %cst_196 [1] : vector<2x128xf32> to vector<2xf32>
    %423 = vector.shape_cast %422 : vector<2xf32> to vector<2x1xf32>
    %424 = math.log %423 : vector<2x1xf32>
    %425 = vector.broadcast %424 : vector<2x1xf32> to vector<2x128xf32>
    %426 = arith.subf %420, %425 : vector<2x128xf32>
    %c0_197 = arith.constant 0 : index
    %c0_198 = arith.constant 0 : index
    %427 = vector.load %arg11[%c0_197, %c0_198] : memref<2x128xf32, #tpu.memory_space<vmem>>, vector<2x128xf32>
    tpu.vector_store %arg11[%c0_197, %c0_198], %426 {strides = array<i32>} : memref<2x128xf32, #tpu.memory_space<vmem>>, vector<2x128xf32>,
    return
  }
  func.func @transform_0(%arg0: i32) -> (i32, i32) {
    %c0_i32 = arith.constant 0 : i32
    %c0_i32_0 = arith.constant 0 : i32
    %c0_i32_1 = arith.constant 0 : i32
    return %c0_i32, %c0_i32_0 : i32, i32
  }
  func.func @transform_1(%arg0: i32) -> (i32, i32) {
    %c0_i32 = arith.constant 0 : i32
    %c0_i32_0 = arith.constant 0 : i32
    %c0_i32_1 = arith.constant 0 : i32
    return %c0_i32, %c0_i32_0 : i32, i32
  }
  func.func @transform_2(%arg0: i32) -> (i32, i32, i32, i32) {
    %c0_i32 = arith.constant 0 : i32
    %c0_i32_0 = arith.constant 0 : i32
    %c0_i32_1 = arith.constant 0 : i32
    %c0_i32_2 = arith.constant 0 : i32
    %c0_i32_3 = arith.constant 0 : i32
    return %c0_i32, %c0_i32_0, %c0_i32_1, %c0_i32_2 : i32, i32, i32, i32
  }
  func.func @transform_3(%arg0: i32) -> (i32, i32, i32) {
    %c0_i32 = arith.constant 0 : i32
    %c0_i32_0 = arith.constant 0 : i32
    %c0_i32_1 = arith.constant 0 : i32
    %c0_i32_2 = arith.constant 0 : i32
    return %c0_i32, %c0_i32_0, %c0_i32_1 : i32, i32, i32
  }
  func.func @transform_4(%arg0: i32) -> (i32, i32, i32) {
    %c0_i32 = arith.constant 0 : i32
    %c0_i32_0 = arith.constant 0 : i32
    %c0_i32_1 = arith.constant 0 : i32
    %c0_i32_2 = arith.constant 0 : i32
    return %c0_i32, %c0_i32_0, %c0_i32_1 : i32, i32, i32
  }
  func.func @transform_5(%arg0: i32) -> (i32, i32, i32) {
    %c0_i32 = arith.constant 0 : i32
    %c0_i32_0 = arith.constant 0 : i32
    %c0_i32_1 = arith.constant 0 : i32
    %c0_i32_2 = arith.constant 0 : i32
    return %c0_i32, %c0_i32_0, %c0_i32_1 : i32, i32, i32
  }
  func.func @transform_6(%arg0: i32) -> (i32, i32, i32) {
    %c0_i32 = arith.constant 0 : i32
    %c0_i32_0 = arith.constant 0 : i32
    %c0_i32_1 = arith.constant 0 : i32
    %c0_i32_2 = arith.constant 0 : i32
    return %c0_i32, %c0_i32_0, %c0_i32_1 : i32, i32, i32
  }
  func.func @transform_7(%arg0: i32) -> (i32, i32) {
    %c0_i32 = arith.constant 0 : i32
    %c0_i32_0 = arith.constant 0 : i32
    %c0_i32_1 = arith.constant 0 : i32
    return %c0_i32, %c0_i32_0 : i32, i32
  }
  func.func @transform_8(%arg0: i32) -> (i32, i32) {
    %c0_i32 = arith.constant 0 : i32
    %c0_i32_0 = arith.constant 0 : i32
    %c0_i32_1 = arith.constant 0 : i32
    return %c0_i32, %c0_i32_0 : i32, i32
  }
  func.func @transform_9(%arg0: i32) -> (i32, i32) {
    %c0_i32 = arith.constant 0 : i32
    %c0_i32_0 = arith.constant 0 : i32
    %c0_i32_1 = arith.constant 0 : i32
    return %c0_i32, %c0_i32_0 : i32, i32
  }
  func.func @transform_10(%arg0: i32) -> (i32, i32) {
    %c0_i32 = arith.constant 0 : i32
    %c0_i32_0 = arith.constant 0 : i32
    %c0_i32_1 = arith.constant 0 : i32
    return %c0_i32, %c0_i32_0 : i32, i32
  }
}

</mosaic_0001>

<llo_original>
// kernel: bert_fe_forward.1
$region0: #{bert_fe_forward.1}
  #allocation0 [shape = 'u32[]', space=smem, size = 0x4, offset = 0x4, fixed_abs, tag = 'smem constant byte address 0x4 - core index']
  #allocation1 [shape = 'u32[144,128]{1,0:T(1,128)}', space=vmem, size = 0x12000, scoped, tag = 'internal scratch']
  #allocation2 [shape = 'bf16[12,16,8]{2,1,0:T(16,128)(2,1)}', space=vmem, size = 0xc000, scoped, tag = 'scratch operand']
  #allocation3 [shape = 'bf16[16,32]{1,0:T(16,128)(2,1)}', space=vmem, size = 0x1000, scoped, tag = 'scratch operand']
  %s0 = inlined_call_operand.vmem [shape: f32[16,32], index: 0, kind: input, shape index: {}]
  %s1 = inlined_call_operand.vmem [shape: f32[16,16], index: 1, kind: input, shape index: {}]
  %s2 = inlined_call_operand.vmem [shape: bf16[2,3,32,32], index: 2, kind: input, shape index: {}]
  %s3 = inlined_call_operand.vmem [shape: bf16[2,32,32], index: 3, kind: input, shape index: {}]
  %s4 = inlined_call_operand.vmem [shape: bf16[2,32,64], index: 4, kind: input, shape index: {}]
  %s5 = inlined_call_operand.vmem [shape: bf16[2,64,32], index: 5, kind: input, shape index: {}]
  %s6 = inlined_call_operand.vmem [shape: f32[2,10,64], index: 6, kind: input, shape index: {}]
  %s7 = inlined_call_operand.vmem [shape: bf16[32,16], index: 7, kind: input, shape index: {}]
  %s8 = inlined_call_operand.vmem [shape: bf16[16,128], index: 8, kind: input, shape index: {}]
  %s9 = inlined_call_operand.vmem [shape: f32[4,128], index: 9, kind: input, shape index: {}]
  %s10 = inlined_call_operand.hbm [shape: f32[2,128], index: 10, kind: output, shape index: {}]
  %s11 = sld [smem:[#allocation0]]
  $region50: #{bert_fe_forward.1} parent=0
    _
  %s13 = ssub.s32 1, %s11
  %s14 = scalar_select 0, %s13, %s11
  $region1: #{bert_fe_forward.1} parent=0
    #allocation4 [shape = 'u8[1024]{0}', space=vmem, size = 0x400, scoped, tag = 'output window, operand 0, single buffered']
    #allocation5 [shape = 's32[1]{0}', space=sflag, size = 0x4, scoped, tag = 'scoped memory for bert_fe_forward.1']
    %15 = vsyncpa [#allocation5], 0
    // Predicated region
    $region2: #{bert_fe_forward.1} parent=1 // pred_check
      _
    $region3: #{bert_fe_forward.1} parent=1 // pred_check_branch
      %17 = sbr.rel (0) target = $region5
    $region4: #{bert_fe_forward.1} parent=1 // pred_region
      _
    $region5: #{bert_fe_forward.1} parent=1 // pred_fallthru
      _
    // Predicated region
    $region6: #{bert_fe_forward.1} parent=1 // pred_check
      _
    $region7: #{bert_fe_forward.1} parent=1 // pred_check_branch
      %19 = sbr.rel (0) target = $region9
    $region8: #{bert_fe_forward.1} parent=1 // pred_region
      _
    $region9: #{bert_fe_forward.1} parent=1 // pred_fallthru
      _
    // Predicated region
    $region10: #{bert_fe_forward.1} parent=1 // pred_check
      _
    $region11: #{bert_fe_forward.1} parent=1 // pred_check_branch
      %21 = sbr.rel (0) target = $region13
    $region12: #{bert_fe_forward.1} parent=1 // pred_region
      _
    $region13: #{bert_fe_forward.1} parent=1 // pred_fallthru
      _
    // Predicated region
    $region14: #{bert_fe_forward.1} parent=1 // pred_check
      _
    $region15: #{bert_fe_forward.1} parent=1 // pred_check_branch
      %23 = sbr.rel (0) target = $region17
    $region16: #{bert_fe_forward.1} parent=1 // pred_region
      _
    $region17: #{bert_fe_forward.1} parent=1 // pred_fallthru
      _
    // Predicated region
    $region18: #{bert_fe_forward.1} parent=1 // pred_check
      _
    $region19: #{bert_fe_forward.1} parent=1 // pred_check_branch
      %25 = sbr.rel (0) target = $region21
    $region20: #{bert_fe_forward.1} parent=1 // pred_region
      _
    $region21: #{bert_fe_forward.1} parent=1 // pred_fallthru
      _
    // Predicated region
    $region22: #{bert_fe_forward.1} parent=1 // pred_check
      _
    $region23: #{bert_fe_forward.1} parent=1 // pred_check_branch
      %27 = sbr.rel (0) target = $region25
    $region24: #{bert_fe_forward.1} parent=1 // pred_region
      _
    $region25: #{bert_fe_forward.1} parent=1 // pred_fallthru
      _
    // Predicated region
    $region26: #{bert_fe_forward.1} parent=1 // pred_check
      _
    $region27: #{bert_fe_forward.1} parent=1 // pred_check_branch
      %29 = sbr.rel (0) target = $region29
    $region28: #{bert_fe_forward.1} parent=1 // pred_region
      _
    $region29: #{bert_fe_forward.1} parent=1 // pred_fallthru
      _
    // Predicated region
    $region30: #{bert_fe_forward.1} parent=1 // pred_check
      _
    $region31: #{bert_fe_forward.1} parent=1 // pred_check_branch
      %31 = sbr.rel (0) target = $region33
    $region32: #{bert_fe_forward.1} parent=1 // pred_region
      _
    $region33: #{bert_fe_forward.1} parent=1 // pred_fallthru
      _
    // Predicated region
    $region34: #{bert_fe_forward.1} parent=1 // pred_check
      _
    $region35: #{bert_fe_forward.1} parent=1 // pred_check_branch
      %33 = sbr.rel (0) target = $region37
    $region36: #{bert_fe_forward.1} parent=1 // pred_region
      _
    $region37: #{bert_fe_forward.1} parent=1 // pred_fallthru
      _
    // Predicated region
    $region38: #{bert_fe_forward.1} parent=1 // pred_check
      _
    $region39: #{bert_fe_forward.1} parent=1 // pred_check_branch
      %35 = sbr.rel (0) target = $region41
    $region40: #{bert_fe_forward.1} parent=1 // pred_region
      _
    $region41: #{bert_fe_forward.1} parent=1 // pred_fallthru
      _
    %v37 = vld [vmem:[%s9] sm:$0xf]
    %v38 = vld [vmem:[%s0] sm:$0xff]
    %v39 = vld [vmem:[%s0 + $0x8] sm:$0xff]
    %vm40 = vcmask 261120
    %v41 = vsel %vm40, %v38, 0.0
    %42 = vadd.xlane.f32.xlu0 %v41
    %v43 = vpop.xlane.xlu0 %42
    %v44 = vsel %vm40, %v39, 0.0
    %45 = vadd.xlane.f32.xlu0 %v44
    %v46 = vpop.xlane.xlu0 %45
    %v47 = vrcp.pop 32.0
    %v48 = vmul.f32 %v43, %v47
    %v49 = vmul.f32 %v46, %v47
    %v50 = vsub.f32 %v38, %v48
    %v51 = vsub.f32 %v39, %v49
    %v52 = vmul.f32 %v50, %v50
    %v53 = vmul.f32 %v51, %v51
    %v54 = vsel %vm40, %v52, 0.0
    %55 = vadd.xlane.f32.xlu0 %v54
    %v56 = vpop.xlane.xlu0 %55
    %v57 = vsel %vm40, %v53, 0.0
    %58 = vadd.xlane.f32.xlu0 %v57
    %v59 = vpop.xlane.xlu0 %58
    %v60 = vmul.f32 %v56, %v47
    %v61 = vmul.f32 %v59, %v47
    %v62 = vadd.f32 %v60, 1e-12
    %v63 = vadd.f32 %v61, 1e-12
    %v64 = vrsqrt.pop %v62
    %v65 = vrsqrt.pop %v63
    %v66 = vmul.f32 %v50, %v64
    %v67 = vmul.f32 %v51, %v65
    %v68 = vlaneseq
    %v69 = vshrl.u32 %v68, 7
    %v70 = vsub.s32 0, %v69
    %v71 = vrot.slane %v37, %v70
    %v72 = vmul.f32 %v66, %v71
    %v73 = vmul.f32 %v67, %v71
    %v74 = vlaneseq
    %v75 = vshrl.u32 %v74, 7
    %v76 = vsub.s32 1, %v75
    %v77 = vrot.slane %v37, %v76
    %v78 = vadd.f32 %v72, %v77
    %v79 = vadd.f32 %v73, %v77
    %v80 = vld [vmem:[%s1] sm:$0xff]
    %v81 = vld [vmem:[%s1 + $0x8] sm:$0xff]
    %v82 = vld [vmem:[%s6] sm:$0xff]
    %v83 = vld [vmem:[%s6 + $0x8] sm:$0x3]
    %v84 = vld [vmem:[%s2] sm:$0xf]
    %v85 = vld [vmem:[%s2 + $0x4] sm:$0xf]
    %v86 = vld [vmem:[%s2 + $0x8] sm:$0xf]
    %v87 = vld [vmem:[%s2 + $0xc] sm:$0xf]
    %v88 = vld [vmem:[%s2 + $0x10] sm:$0xf]
    %v89 = vld [vmem:[%s2 + $0x14] sm:$0xf]
    %v90 = vld [vmem:[%s2 + $0x18] sm:$0xf]
    %v91 = vld [vmem:[%s2 + $0x1c] sm:$0xf]
    %v92 = vld [vmem:[%s2 + $0x20] sm:$0xf]
    %v93 = vld [vmem:[%s2 + $0x24] sm:$0xf]
    %v94 = vld [vmem:[%s2 + $0x28] sm:$0xf]
    %v95 = vld [vmem:[%s2 + $0x2c] sm:$0xf]
    %v96 = vpack.c.bf16 %v79, %v78
    %v97 = vlaneseq
    %v98 = vshrl.u32 %v97, 7
    %v99 = vsub.s32 0, %v98
    %v100 = vrot.slane %v82, %v99
    %v105 = vunpack.c.l.b16 %v84
    %v106 = vunpack.c.l.b16 %v85
    %v107 = vunpack.c.l.b16 %v86
    %v108 = vunpack.c.l.b16 %v87
    %v109 = vpack.c.b16 %v106, %v105
    %v110 = vpack.c.b16 %v108, %v107
    %v114 = vsel %vm40, %v96, 0
    %116 = vmatprep.subr.bf16.mxu0 0
    %117 = vmatpush1.bf16.msra.mxu0 %v109
    %118 = vmatprep.subr.bf16.mxu0 0
    %119 = vmatpush1.bf16.msra.mxu0 %v110
    %120 = vmatprep.subr.bf16.mxu0 0
    %121 = vmatpush1.bf16.msra.mxu0 0
    %122 = vmatprep.subr.bf16.mxu0 0
    %123 = vmatpush1.bf16.msra.mxu0 0
    %124 = vmatprep.subr.bf16.mxu0 0
    %125 = vmatpush1.bf16.msra.mxu0 0
    %126 = vmatprep.subr.bf16.mxu0 0
    %127 = vmatpush1.bf16.msra.mxu0 0
    %128 = vmatprep.subr.bf16.mxu0 0
    %129 = vmatpush1.bf16.msra.mxu0 0
    %130 = vmatprep.subr.bf16.mxu0 0
    %131 = vmatpush1.bf16.msra.mxu0 0
    %132 = vmatprep.subr.bf16.mxu0 0
    %133 = vmatpush1.bf16.msra.mxu0 0
    %134 = vmatprep.subr.bf16.mxu0 0
    %135 = vmatpush1.bf16.msra.mxu0 0
    %136 = vmatprep.subr.bf16.mxu0 0
    %137 = vmatpush1.bf16.msra.mxu0 0
    %138 = vmatprep.subr.bf16.mxu0 0
    %139 = vmatpush1.bf16.msra.mxu0 0
    %140 = vmatprep.subr.bf16.mxu0 0
    %141 = vmatpush1.bf16.msra.mxu0 0
    %142 = vmatprep.subr.bf16.mxu0 0
    %143 = vmatpush1.bf16.msra.mxu0 0
    %144 = vmatprep.subr.bf16.mxu0 0
    %145 = vmatpush1.bf16.msra.mxu0 0
    %146 = vmatprep.subr.bf16.mxu0 0
    %147 = vmatpush1.bf16.msra.mxu0 0
    %148 = vmatprep.mubr.bf16.mxu0 0
    %149 = vmatmul.mubr.bf16.gmra.mrb[0].mxu0 %v114
    %v150 = vpop.f32.mrb[0].mxu0
    %v151 = vadd.f32 %v100, %v150
    %v152 = vpop.f32.mrb[0].mxu0
    %v153 = vpop.f32.mrb[0].mxu0
    %v154 = vadd.f32 %v100, %v153
    %v155 = vpop.f32.mrb[0].mxu0
    %156 = vdwg.mxu0
    %v157 = vmul.f32 %v151, 0.35355338
    %v158 = vmul.f32 %v154, 0.35355338
    %v159 = vpack.c.bf16 %v158, %v157
    %vm160 = vcmask 64512
    %161 = vst.msk [vmem:[#allocation2] sm:$0xff] %vm160, %v159
    %163 = vrot.lane.b32.xlu0 %v159, 120
    %v164 = vpop.permute.xlu0 %163
    %s166 = scalar_lea.vmem [#allocation2], 8
    %167 = vst.msk [vmem:[%s166] sm:$0xff] %vm160, %v164
    %168 = vrot.lane.b32.xlu0 %v159, 112
    %v169 = vpop.permute.xlu0 %168
    %s171 = scalar_lea.vmem [#allocation2], 16
    %172 = vst.msk [vmem:[%s171] sm:$0xff] %vm160, %v169
    %173 = vrot.lane.b32.xlu0 %v159, 104
    %v174 = vpop.permute.xlu0 %173
    %s176 = scalar_lea.vmem [#allocation2], 24
    %177 = vst.msk [vmem:[%s176] sm:$0xff] %vm160, %v174
    %v178 = vlaneseq
    %v179 = vshrl.u32 %v178, 7
    %v180 = vsub.s32 1, %v179
    %v181 = vrot.slane %v82, %v180
    %v186 = vunpack.c.l.b16 %v88
    %v187 = vunpack.c.l.b16 %v89
    %v188 = vunpack.c.l.b16 %v90
    %v189 = vunpack.c.l.b16 %v91
    %v190 = vpack.c.b16 %v187, %v186
    %v191 = vpack.c.b16 %v189, %v188
    %194 = vmatprep.subr.bf16.mxu0 0
    %195 = vmatpush1.bf16.msra.mxu0 %v190
    %196 = vmatprep.subr.bf16.mxu0 0
    %197 = vmatpush1.bf16.msra.mxu0 %v191
    %198 = vmatprep.subr.bf16.mxu0 0
    %199 = vmatpush1.bf16.msra.mxu0 0
    %200 = vmatprep.subr.bf16.mxu0 0
    %201 = vmatpush1.bf16.msra.mxu0 0
    %202 = vmatprep.subr.bf16.mxu0 0
    %203 = vmatpush1.bf16.msra.mxu0 0
    %204 = vmatprep.subr.bf16.mxu0 0
    %205 = vmatpush1.bf16.msra.mxu0 0
    %206 = vmatprep.subr.bf16.mxu0 0
    %207 = vmatpush1.bf16.msra.mxu0 0
    %208 = vmatprep.subr.bf16.mxu0 0
    %209 = vmatpush1.bf16.msra.mxu0 0
    %210 = vmatprep.subr.bf16.mxu0 0
    %211 = vmatpush1.bf16.msra.mxu0 0
    %212 = vmatprep.subr.bf16.mxu0 0
    %213 = vmatpush1.bf16.msra.mxu0 0
    %214 = vmatprep.subr.bf16.mxu0 0
    %215 = vmatpush1.bf16.msra.mxu0 0
    %216 = vmatprep.subr.bf16.mxu0 0
    %217 = vmatpush1.bf16.msra.mxu0 0
    %218 = vmatprep.subr.bf16.mxu0 0
    %219 = vmatpush1.bf16.msra.mxu0 0
    %220 = vmatprep.subr.bf16.mxu0 0
    %221 = vmatpush1.bf16.msra.mxu0 0
    %222 = vmatprep.subr.bf16.mxu0 0
    %223 = vmatpush1.bf16.msra.mxu0 0
    %224 = vmatprep.subr.bf16.mxu0 0
    %225 = vmatpush1.bf16.msra.mxu0 0
    %226 = vmatprep.mubr.bf16.mxu0 0
    %227 = vmatmul.mubr.bf16.gmra.mrb[0].mxu0 %v114
    %v228 = vpop.f32.mrb[0].mxu0
    %v229 = vadd.f32 %v181, %v228
    %v230 = vpop.f32.mrb[0].mxu0
    %v231 = vpop.f32.mrb[0].mxu0
    %v232 = vadd.f32 %v181, %v231
    %v233 = vpop.f32.mrb[0].mxu0
    %234 = vdwg.mxu0
    %v235 = vpack.c.bf16 %v232, %v229
    %s236 = scalar_lea.vmem [#allocation2], 32
    %237 = vst.msk [vmem:[%s236] sm:$0xff] %vm160, %v235
    %239 = vrot.lane.b32.xlu0 %v235, 120
    %v240 = vpop.permute.xlu0 %239
    %s242 = scalar_lea.vmem [#allocation2], 40
    %243 = vst.msk [vmem:[%s242] sm:$0xff] %vm160, %v240
    %244 = vrot.lane.b32.xlu0 %v235, 112
    %v245 = vpop.permute.xlu0 %244
    %s247 = scalar_lea.vmem [#allocation2], 48
    %248 = vst.msk [vmem:[%s247] sm:$0xff] %vm160, %v245
    %249 = vrot.lane.b32.xlu0 %v235, 104
    %v250 = vpop.permute.xlu0 %249
    %s252 = scalar_lea.vmem [#allocation2], 56
    %253 = vst.msk [vmem:[%s252] sm:$0xff] %vm160, %v250
    %v254 = vlaneseq
    %v255 = vshrl.u32 %v254, 7
    %v256 = vsub.s32 2, %v255
    %v257 = vrot.slane %v82, %v256
    %v262 = vunpack.c.l.b16 %v92
    %v263 = vunpack.c.l.b16 %v93
    %v264 = vunpack.c.l.b16 %v94
    %v265 = vunpack.c.l.b16 %v95
    %v266 = vpack.c.b16 %v263, %v262
    %v267 = vpack.c.b16 %v265, %v264
    %270 = vmatprep.subr.bf16.mxu0 0
    %271 = vmatpush1.bf16.msra.mxu0 %v266
    %272 = vmatprep.subr.bf16.mxu0 0
    %273 = vmatpush1.bf16.msra.mxu0 %v267
    %274 = vmatprep.subr.bf16.mxu0 0
    %275 = vmatpush1.bf16.msra.mxu0 0
    %276 = vmatprep.subr.bf16.mxu0 0
    %277 = vmatpush1.bf16.msra.mxu0 0
    %278 = vmatprep.subr.bf16.mxu0 0
    %279 = vmatpush1.bf16.msra.mxu0 0
    %280 = vmatprep.subr.bf16.mxu0 0
    %281 = vmatpush1.bf16.msra.mxu0 0
    %282 = vmatprep.subr.bf16.mxu0 0
    %283 = vmatpush1.bf16.msra.mxu0 0
    %284 = vmatprep.subr.bf16.mxu0 0
    %285 = vmatpush1.bf16.msra.mxu0 0
    %286 = vmatprep.subr.bf16.mxu0 0
    %287 = vmatpush1.bf16.msra.mxu0 0
    %288 = vmatprep.subr.bf16.mxu0 0
    %289 = vmatpush1.bf16.msra.mxu0 0
    %290 = vmatprep.subr.bf16.mxu0 0
    %291 = vmatpush1.bf16.msra.mxu0 0
    %292 = vmatprep.subr.bf16.mxu0 0
    %293 = vmatpush1.bf16.msra.mxu0 0
    %294 = vmatprep.subr.bf16.mxu0 0
    %295 = vmatpush1.bf16.msra.mxu0 0
    %296 = vmatprep.subr.bf16.mxu0 0
    %297 = vmatpush1.bf16.msra.mxu0 0
    %298 = vmatprep.subr.bf16.mxu0 0
    %299 = vmatpush1.bf16.msra.mxu0 0
    %300 = vmatprep.subr.bf16.mxu0 0
    %301 = vmatpush1.bf16.msra.mxu0 0
    %302 = vmatprep.mubr.bf16.mxu0 0
    %303 = vmatmul.mubr.bf16.gmra.mrb[0].mxu0 %v114
    %v304 = vpop.f32.mrb[0].mxu0
    %v305 = vadd.f32 %v257, %v304
    %v306 = vpop.f32.mrb[0].mxu0
    %v307 = vpop.f32.mrb[0].mxu0
    %v308 = vadd.f32 %v257, %v307
    %v309 = vpop.f32.mrb[0].mxu0
    %310 = vdwg.mxu0
    %v311 = vpack.c.bf16 %v308, %v305
    %s312 = scalar_lea.vmem [#allocation2], 64
    %313 = vst.msk [vmem:[%s312] sm:$0xff] %vm160, %v311
    %315 = vrot.lane.b32.xlu0 %v311, 120
    %v316 = vpop.permute.xlu0 %315
    %s318 = scalar_lea.vmem [#allocation2], 72
    %319 = vst.msk [vmem:[%s318] sm:$0xff] %vm160, %v316
    %320 = vrot.lane.b32.xlu0 %v311, 112
    %v321 = vpop.permute.xlu0 %320
    %s323 = scalar_lea.vmem [#allocation2], 80
    %324 = vst.msk [vmem:[%s323] sm:$0xff] %vm160, %v321
    %325 = vrot.lane.b32.xlu0 %v311, 104
    %v326 = vpop.permute.xlu0 %325
    %s328 = scalar_lea.vmem [#allocation2], 88
    %329 = vst.msk [vmem:[%s328] sm:$0xff] %vm160, %v326
    %v330 = vld [vmem:[#allocation2] sm:$0xff]
    %v331 = vld [vmem:[#allocation2 + $0x8] sm:$0xff]
    %v332 = vld [vmem:[#allocation2 + $0x10] sm:$0xff]
    %v333 = vld [vmem:[#allocation2 + $0x18] sm:$0xff]
    %v334 = vld [vmem:[%s236] sm:$0xff]
    %v335 = vld [vmem:[%s236 + $0x8] sm:$0xff]
    %v336 = vld [vmem:[%s236 + $0x10] sm:$0xff]
    %v337 = vld [vmem:[%s236 + $0x18] sm:$0xff]
    %v338 = vld [vmem:[%s312] sm:$0xff]
    %v339 = vld [vmem:[%s312 + $0x8] sm:$0xff]
    %v340 = vld [vmem:[%s312 + $0x10] sm:$0xff]
    %v341 = vld [vmem:[%s312 + $0x18] sm:$0xff]
    %v343 = vsel %vm160, %v330, 0
    %v346 = vsel %vm160, %v334, 0
    %348 = vmatprep.subr.bf16.mxu0 0
    %349 = vmatpush1.bf16.xpose.msra.mxu0 %v346
    %350 = vmatprep.subr.bf16.mxu0 0
    %351 = vmatpush1.bf16.xpose.msra.mxu0 0
    %352 = vmatprep.subr.bf16.mxu0 0
    %353 = vmatpush1.bf16.xpose.msra.mxu0 0
    %354 = vmatprep.subr.bf16.mxu0 0
    %355 = vmatpush1.bf16.xpose.msra.mxu0 0
    %356 = vmatprep.subr.bf16.mxu0 0
    %357 = vmatpush1.bf16.xpose.msra.mxu0 0
    %358 = vmatprep.subr.bf16.mxu0 0
    %359 = vmatpush1.bf16.xpose.msra.mxu0 0
    %360 = vmatprep.subr.bf16.mxu0 0
    %361 = vmatpush1.bf16.xpose.msra.mxu0 0
    %362 = vmatprep.subr.bf16.mxu0 0
    %363 = vmatpush1.bf16.xpose.msra.mxu0 0
    %364 = vmatprep.subr.bf16.mxu0 0
    %365 = vmatpush1.bf16.xpose.msra.mxu0 0
    %366 = vmatprep.subr.bf16.mxu0 0
    %367 = vmatpush1.bf16.xpose.msra.mxu0 0
    %368 = vmatprep.subr.bf16.mxu0 0
    %369 = vmatpush1.bf16.xpose.msra.mxu0 0
    %370 = vmatprep.subr.bf16.mxu0 0
    %371 = vmatpush1.bf16.xpose.msra.mxu0 0
    %372 = vmatprep.subr.bf16.mxu0 0
    %373 = vmatpush1.bf16.xpose.msra.mxu0 0
    %374 = vmatprep.subr.bf16.mxu0 0
    %375 = vmatpush1.bf16.xpose.msra.mxu0 0
    %376 = vmatprep.subr.bf16.mxu0 0
    %377 = vmatpush1.bf16.xpose.msra.mxu0 0
    %378 = vmatprep.subr.bf16.mxu0 0
    %379 = vmatpush1.bf16.xpose.msra.mxu0 0
    %380 = vmatprep.mubr.bf16.mxu0 0
    %381 = vmatmul.mubr.bf16.gmra.mrb[0].mxu0 %v343
    %v382 = vpop.f32.mrb[0].mxu0
    %v383 = vadd.f32 %v80, %v382
    %v384 = vpop.f32.mrb[0].mxu0
    %v385 = vpop.f32.mrb[0].mxu0
    %v386 = vadd.f32 %v81, %v385
    %v387 = vpop.f32.mrb[0].mxu0
    %388 = vdwg.mxu0
    %v390 = vsel %vm160, %v331, 0
    %v393 = vsel %vm160, %v335, 0
    %395 = vmatprep.subr.bf16.mxu0 0
    %396 = vmatpush1.bf16.xpose.msra.mxu0 %v393
    %397 = vmatprep.subr.bf16.mxu0 0
    %398 = vmatpush1.bf16.xpose.msra.mxu0 0
    %399 = vmatprep.subr.bf16.mxu0 0
    %400 = vmatpush1.bf16.xpose.msra.mxu0 0
    %401 = vmatprep.subr.bf16.mxu0 0
    %402 = vmatpush1.bf16.xpose.msra.mxu0 0
    %403 = vmatprep.subr.bf16.mxu0 0
    %404 = vmatpush1.bf16.xpose.msra.mxu0 0
    %405 = vmatprep.subr.bf16.mxu0 0
    %406 = vmatpush1.bf16.xpose.msra.mxu0 0
    %407 = vmatprep.subr.bf16.mxu0 0
    %408 = vmatpush1.bf16.xpose.msra.mxu0 0
    %409 = vmatprep.subr.bf16.mxu0 0
    %410 = vmatpush1.bf16.xpose.msra.mxu0 0
    %411 = vmatprep.subr.bf16.mxu0 0
    %412 = vmatpush1.bf16.xpose.msra.mxu0 0
    %413 = vmatprep.subr.bf16.mxu0 0
    %414 = vmatpush1.bf16.xpose.msra.mxu0 0
    %415 = vmatprep.subr.bf16.mxu0 0
    %416 = vmatpush1.bf16.xpose.msra.mxu0 0
    %417 = vmatprep.subr.bf16.mxu0 0
    %418 = vmatpush1.bf16.xpose.msra.mxu0 0
    %419 = vmatprep.subr.bf16.mxu0 0
    %420 = vmatpush1.bf16.xpose.msra.mxu0 0
    %421 = vmatprep.subr.bf16.mxu0 0
    %422 = vmatpush1.bf16.xpose.msra.mxu0 0
    %423 = vmatprep.subr.bf16.mxu0 0
    %424 = vmatpush1.bf16.xpose.msra.mxu0 0
    %425 = vmatprep.subr.bf16.mxu0 0
    %426 = vmatpush1.bf16.xpose.msra.mxu0 0
    %427 = vmatprep.mubr.bf16.mxu0 0
    %428 = vmatmul.mubr.bf16.gmra.mrb[0].mxu0 %v390
    %v429 = vpop.f32.mrb[0].mxu0
    %v430 = vadd.f32 %v80, %v429
    %v431 = vpop.f32.mrb[0].mxu0
    %v432 = vpop.f32.mrb[0].mxu0
    %v433 = vadd.f32 %v81, %v432
    %v434 = vpop.f32.mrb[0].mxu0
    %435 = vdwg.mxu0
    %v437 = vsel %vm160, %v332, 0
    %v440 = vsel %vm160, %v336, 0
    %442 = vmatprep.subr.bf16.mxu0 0
    %443 = vmatpush1.bf16.xpose.msra.mxu0 %v440
    %444 = vmatprep.subr.bf16.mxu0 0
    %445 = vmatpush1.bf16.xpose.msra.mxu0 0
    %446 = vmatprep.subr.bf16.mxu0 0
    %447 = vmatpush1.bf16.xpose.msra.mxu0 0
    %448 = vmatprep.subr.bf16.mxu0 0
    %449 = vmatpush1.bf16.xpose.msra.mxu0 0
    %450 = vmatprep.subr.bf16.mxu0 0
    %451 = vmatpush1.bf16.xpose.msra.mxu0 0
    %452 = vmatprep.subr.bf16.mxu0 0
    %453 = vmatpush1.bf16.xpose.msra.mxu0 0
    %454 = vmatprep.subr.bf16.mxu0 0
    %455 = vmatpush1.bf16.xpose.msra.mxu0 0
    %456 = vmatprep.subr.bf16.mxu0 0
    %457 = vmatpush1.bf16.xpose.msra.mxu0 0
    %458 = vmatprep.subr.bf16.mxu0 0
    %459 = vmatpush1.bf16.xpose.msra.mxu0 0
    %460 = vmatprep.subr.bf16.mxu0 0
    %461 = vmatpush1.bf16.xpose.msra.mxu0 0
    %462 = vmatprep.subr.bf16.mxu0 0
    %463 = vmatpush1.bf16.xpose.msra.mxu0 0
    %464 = vmatprep.subr.bf16.mxu0 0
    %465 = vmatpush1.bf16.xpose.msra.mxu0 0
    %466 = vmatprep.subr.bf16.mxu0 0
    %467 = vmatpush1.bf16.xpose.msra.mxu0 0
    %468 = vmatprep.subr.bf16.mxu0 0
    %469 = vmatpush1.bf16.xpose.msra.mxu0 0
    %470 = vmatprep.subr.bf16.mxu0 0
    %471 = vmatpush1.bf16.xpose.msra.mxu0 0
    %472 = vmatprep.subr.bf16.mxu0 0
    %473 = vmatpush1.bf16.xpose.msra.mxu0 0
    %474 = vmatprep.mubr.bf16.mxu0 0
    %475 = vmatmul.mubr.bf16.gmra.mrb[0].mxu0 %v437
    %v476 = vpop.f32.mrb[0].mxu0
    %v477 = vadd.f32 %v80, %v476
    %v478 = vpop.f32.mrb[0].mxu0
    %v479 = vpop.f32.mrb[0].mxu0
    %v480 = vadd.f32 %v81, %v479
    %v481 = vpop.f32.mrb[0].mxu0
    %482 = vdwg.mxu0
    %v484 = vsel %vm160, %v333, 0
    %v487 = vsel %vm160, %v337, 0
    %489 = vmatprep.subr.bf16.mxu0 0
    %490 = vmatpush1.bf16.xpose.msra.mxu0 %v487
    %491 = vmatprep.subr.bf16.mxu0 0
    %492 = vmatpush1.bf16.xpose.msra.mxu0 0
    %493 = vmatprep.subr.bf16.mxu0 0
    %494 = vmatpush1.bf16.xpose.msra.mxu0 0
    %495 = vmatprep.subr.bf16.mxu0 0
    %496 = vmatpush1.bf16.xpose.msra.mxu0 0
    %497 = vmatprep.subr.bf16.mxu0 0
    %498 = vmatpush1.bf16.xpose.msra.mxu0 0
    %499 = vmatprep.subr.bf16.mxu0 0
    %500 = vmatpush1.bf16.xpose.msra.mxu0 0
    %501 = vmatprep.subr.bf16.mxu0 0
    %502 = vmatpush1.bf16.xpose.msra.mxu0 0
    %503 = vmatprep.subr.bf16.mxu0 0
    %504 = vmatpush1.bf16.xpose.msra.mxu0 0
    %505 = vmatprep.subr.bf16.mxu0 0
    %506 = vmatpush1.bf16.xpose.msra.mxu0 0
    %507 = vmatprep.subr.bf16.mxu0 0
    %508 = vmatpush1.bf16.xpose.msra.mxu0 0
    %509 = vmatprep.subr.bf16.mxu0 0
    %510 = vmatpush1.bf16.xpose.msra.mxu0 0
    %511 = vmatprep.subr.bf16.mxu0 0
    %512 = vmatpush1.bf16.xpose.msra.mxu0 0
    %513 = vmatprep.subr.bf16.mxu0 0
    %514 = vmatpush1.bf16.xpose.msra.mxu0 0
    %515 = vmatprep.subr.bf16.mxu0 0
    %516 = vmatpush1.bf16.xpose.msra.mxu0 0
    %517 = vmatprep.subr.bf16.mxu0 0
    %518 = vmatpush1.bf16.xpose.msra.mxu0 0
    %519 = vmatprep.subr.bf16.mxu0 0
    %520 = vmatpush1.bf16.xpose.msra.mxu0 0
    %521 = vmatprep.mubr.bf16.mxu0 0
    %522 = vmatmul.mubr.bf16.gmra.mrb[0].mxu0 %v484
    %v523 = vpop.f32.mrb[0].mxu0
    %v524 = vadd.f32 %v80, %v523
    %v525 = vpop.f32.mrb[0].mxu0
    %v526 = vpop.f32.mrb[0].mxu0
    %v527 = vadd.f32 %v81, %v526
    %v528 = vpop.f32.mrb[0].mxu0
    %529 = vdwg.mxu0
    %vm530 = vcmask 130048
    %v531 = vsel %vm530, %v383, -inf
    %532 = vmax.xlane.f32.xlu0 %v531
    %v533 = vpop.xlane.xlu0 %532
    %v534 = vsel %vm530, %v386, -inf
    %535 = vmax.xlane.f32.xlu0 %v534
    %v536 = vpop.xlane.xlu0 %535
    %v537 = vsel %vm530, %v430, -inf
    %538 = vmax.xlane.f32.xlu0 %v537
    %v539 = vpop.xlane.xlu0 %538
    %v540 = vsel %vm530, %v433, -inf
    %541 = vmax.xlane.f32.xlu0 %v540
    %v542 = vpop.xlane.xlu0 %541
    %v543 = vsel %vm530, %v477, -inf
    %544 = vmax.xlane.f32.xlu0 %v543
    %v545 = vpop.xlane.xlu0 %544
    %v546 = vsel %vm530, %v480, -inf
    %547 = vmax.xlane.f32.xlu0 %v546
    %v548 = vpop.xlane.xlu0 %547
    %v549 = vsel %vm530, %v524, -inf
    %550 = vmax.xlane.f32.xlu0 %v549
    %v551 = vpop.xlane.xlu0 %550
    %v552 = vsel %vm530, %v527, -inf
    %553 = vmax.xlane.f32.xlu0 %v552
    %v554 = vpop.xlane.xlu0 %553
    %v555 = vsub.f32 %v383, %v533
    %v556 = vsub.f32 %v386, %v536
    %v557 = vsub.f32 %v430, %v539
    %v558 = vsub.f32 %v433, %v542
    %v559 = vsub.f32 %v477, %v545
    %v560 = vsub.f32 %v480, %v548
    %v561 = vsub.f32 %v524, %v551
    %v562 = vsub.f32 %v527, %v554
    %v563 = vmul.f32 %v555, 1.442695
    %v564 = vpow.pop %v563
    %v565 = vmul.f32 %v556, 1.442695
    %v566 = vpow.pop %v565
    %v567 = vmul.f32 %v557, 1.442695
    %v568 = vpow.pop %v567
    %v569 = vmul.f32 %v558, 1.442695
    %v570 = vpow.pop %v569
    %v571 = vmul.f32 %v559, 1.442695
    %v572 = vpow.pop %v571
    %v573 = vmul.f32 %v560, 1.442695
    %v574 = vpow.pop %v573
    %v575 = vmul.f32 %v561, 1.442695
    %v576 = vpow.pop %v575
    %v577 = vmul.f32 %v562, 1.442695
    %v578 = vpow.pop %v577
    %v579 = vsel %vm530, %v564, 0.0
    %580 = vadd.xlane.f32.xlu0 %v579
    %v581 = vpop.xlane.xlu0 %580
    %v582 = vsel %vm530, %v566, 0.0
    %583 = vadd.xlane.f32.xlu0 %v582
    %v584 = vpop.xlane.xlu0 %583
    %v585 = vsel %vm530, %v568, 0.0
    %586 = vadd.xlane.f32.xlu0 %v585
    %v587 = vpop.xlane.xlu0 %586
    %v588 = vsel %vm530, %v570, 0.0
    %589 = vadd.xlane.f32.xlu0 %v588
    %v590 = vpop.xlane.xlu0 %589
    %v591 = vsel %vm530, %v572, 0.0
    %592 = vadd.xlane.f32.xlu0 %v591
    %v593 = vpop.xlane.xlu0 %592
    %v594 = vsel %vm530, %v574, 0.0
    %595 = vadd.xlane.f32.xlu0 %v594
    %v596 = vpop.xlane.xlu0 %595
    %v597 = vsel %vm530, %v576, 0.0
    %598 = vadd.xlane.f32.xlu0 %v597
    %v599 = vpop.xlane.xlu0 %598
    %v600 = vsel %vm530, %v578, 0.0
    %601 = vadd.xlane.f32.xlu0 %v600
    %v602 = vpop.xlane.xlu0 %601
    %v603 = vrcp.pop %v581
    %v604 = vrcp.pop %v584
    %v605 = vrcp.pop %v587
    %v606 = vrcp.pop %v590
    %v607 = vrcp.pop %v593
    %v608 = vrcp.pop %v596
    %v609 = vrcp.pop %v599
    %v610 = vrcp.pop %v602
    %v611 = vmul.f32 %v564, %v603
    %v612 = vmul.f32 %v566, %v604
    %v613 = vmul.f32 %v568, %v605
    %v614 = vmul.f32 %v570, %v606
    %v615 = vmul.f32 %v572, %v607
    %v616 = vmul.f32 %v574, %v608
    %v617 = vmul.f32 %v576, %v609
    %v618 = vmul.f32 %v578, %v610
    %v619 = vpack.c.bf16 %v612, %v611
    %v620 = vpack.c.bf16 %v614, %v613
    %v621 = vpack.c.bf16 %v616, %v615
    %v622 = vpack.c.bf16 %v618, %v617
    %v624 = vsel %vm530, %v619, 0
    %626 = vmatprep.subr.bf16.mxu0 0
    %627 = vmatpush1.bf16.msra.mxu0 %v338
    %628 = vmatprep.subr.bf16.mxu0 0
    %629 = vmatpush1.bf16.msra.mxu0 0
    %630 = vmatprep.subr.bf16.mxu0 0
    %631 = vmatpush1.bf16.msra.mxu0 0
    %632 = vmatprep.subr.bf16.mxu0 0
    %633 = vmatpush1.bf16.msra.mxu0 0
    %634 = vmatprep.subr.bf16.mxu0 0
    %635 = vmatpush1.bf16.msra.mxu0 0
    %636 = vmatprep.subr.bf16.mxu0 0
    %637 = vmatpush1.bf16.msra.mxu0 0
    %638 = vmatprep.subr.bf16.mxu0 0
    %639 = vmatpush1.bf16.msra.mxu0 0
    %640 = vmatprep.subr.bf16.mxu0 0
    %641 = vmatpush1.bf16.msra.mxu0 0
    %642 = vmatprep.subr.bf16.mxu0 0
    %643 = vmatpush1.bf16.msra.mxu0 0
    %644 = vmatprep.subr.bf16.mxu0 0
    %645 = vmatpush1.bf16.msra.mxu0 0
    %646 = vmatprep.subr.bf16.mxu0 0
    %647 = vmatpush1.bf16.msra.mxu0 0
    %648 = vmatprep.subr.bf16.mxu0 0
    %649 = vmatpush1.bf16.msra.mxu0 0
    %650 = vmatprep.subr.bf16.mxu0 0
    %651 = vmatpush1.bf16.msra.mxu0 0
    %652 = vmatprep.subr.bf16.mxu0 0
    %653 = vmatpush1.bf16.msra.mxu0 0
    %654 = vmatprep.subr.bf16.mxu0 0
    %655 = vmatpush1.bf16.msra.mxu0 0
    %656 = vmatprep.subr.bf16.mxu0 0
    %657 = vmatpush1.bf16.msra.mxu0 0
    %658 = vmatprep.mubr.bf16.mxu0 0
    %659 = vmatmul.mubr.bf16.gmra.mrb[0].mxu0 %v624
    %v660 = vpop.f32.mrb[0].mxu0
    %v661 = vadd.f32 0.0, %v660
    %v662 = vpop.f32.mrb[0].mxu0
    %v663 = vpop.f32.mrb[0].mxu0
    %v664 = vadd.f32 0.0, %v663
    %v665 = vpop.f32.mrb[0].mxu0
    %666 = vdwg.mxu0
    %v668 = vsel %vm530, %v620, 0
    %670 = vmatprep.subr.bf16.mxu0 0
    %671 = vmatpush1.bf16.msra.mxu0 %v339
    %672 = vmatprep.subr.bf16.mxu0 0
    %673 = vmatpush1.bf16.msra.mxu0 0
    %674 = vmatprep.subr.bf16.mxu0 0
    %675 = vmatpush1.bf16.msra.mxu0 0
    %676 = vmatprep.subr.bf16.mxu0 0
    %677 = vmatpush1.bf16.msra.mxu0 0
    %678 = vmatprep.subr.bf16.mxu0 0
    %679 = vmatpush1.bf16.msra.mxu0 0
    %680 = vmatprep.subr.bf16.mxu0 0
    %681 = vmatpush1.bf16.msra.mxu0 0
    %682 = vmatprep.subr.bf16.mxu0 0
    %683 = vmatpush1.bf16.msra.mxu0 0
    %684 = vmatprep.subr.bf16.mxu0 0
    %685 = vmatpush1.bf16.msra.mxu0 0
    %686 = vmatprep.subr.bf16.mxu0 0
    %687 = vmatpush1.bf16.msra.mxu0 0
    %688 = vmatprep.subr.bf16.mxu0 0
    %689 = vmatpush1.bf16.msra.mxu0 0
    %690 = vmatprep.subr.bf16.mxu0 0
    %691 = vmatpush1.bf16.msra.mxu0 0
    %692 = vmatprep.subr.bf16.mxu0 0
    %693 = vmatpush1.bf16.msra.mxu0 0
    %694 = vmatprep.subr.bf16.mxu0 0
    %695 = vmatpush1.bf16.msra.mxu0 0
    %696 = vmatprep.subr.bf16.mxu0 0
    %697 = vmatpush1.bf16.msra.mxu0 0
    %698 = vmatprep.subr.bf16.mxu0 0
    %699 = vmatpush1.bf16.msra.mxu0 0
    %700 = vmatprep.subr.bf16.mxu0 0
    %701 = vmatpush1.bf16.msra.mxu0 0
    %702 = vmatprep.mubr.bf16.mxu0 0
    %703 = vmatmul.mubr.bf16.gmra.mrb[0].mxu0 %v668
    %v704 = vpop.f32.mrb[0].mxu0
    %v705 = vadd.f32 0.0, %v704
    %v706 = vpop.f32.mrb[0].mxu0
    %v707 = vpop.f32.mrb[0].mxu0
    %v708 = vadd.f32 0.0, %v707
    %v709 = vpop.f32.mrb[0].mxu0
    %710 = vdwg.mxu0
    %v712 = vsel %vm530, %v621, 0
    %714 = vmatprep.subr.bf16.mxu0 0
    %715 = vmatpush1.bf16.msra.mxu0 %v340
    %716 = vmatprep.subr.bf16.mxu0 0
    %717 = vmatpush1.bf16.msra.mxu0 0
    %718 = vmatprep.subr.bf16.mxu0 0
    %719 = vmatpush1.bf16.msra.mxu0 0
    %720 = vmatprep.subr.bf16.mxu0 0
    %721 = vmatpush1.bf16.msra.mxu0 0
    %722 = vmatprep.subr.bf16.mxu0 0
    %723 = vmatpush1.bf16.msra.mxu0 0
    %724 = vmatprep.subr.bf16.mxu0 0
    %725 = vmatpush1.bf16.msra.mxu0 0
    %726 = vmatprep.subr.bf16.mxu0 0
    %727 = vmatpush1.bf16.msra.mxu0 0
    %728 = vmatprep.subr.bf16.mxu0 0
    %729 = vmatpush1.bf16.msra.mxu0 0
    %730 = vmatprep.subr.bf16.mxu0 0
    %731 = vmatpush1.bf16.msra.mxu0 0
    %732 = vmatprep.subr.bf16.mxu0 0
    %733 = vmatpush1.bf16.msra.mxu0 0
    %734 = vmatprep.subr.bf16.mxu0 0
    %735 = vmatpush1.bf16.msra.mxu0 0
    %736 = vmatprep.subr.bf16.mxu0 0
    %737 = vmatpush1.bf16.msra.mxu0 0
    %738 = vmatprep.subr.bf16.mxu0 0
    %739 = vmatpush1.bf16.msra.mxu0 0
    %740 = vmatprep.subr.bf16.mxu0 0
    %741 = vmatpush1.bf16.msra.mxu0 0
    %742 = vmatprep.subr.bf16.mxu0 0
    %743 = vmatpush1.bf16.msra.mxu0 0
    %744 = vmatprep.subr.bf16.mxu0 0
    %745 = vmatpush1.bf16.msra.mxu0 0
    %746 = vmatprep.mubr.bf16.mxu0 0
    %747 = vmatmul.mubr.bf16.gmra.mrb[0].mxu0 %v712
    %v748 = vpop.f32.mrb[0].mxu0
    %v749 = vadd.f32 0.0, %v748
    %v750 = vpop.f32.mrb[0].mxu0
    %v751 = vpop.f32.mrb[0].mxu0
    %v752 = vadd.f32 0.0, %v751
    %v753 = vpop.f32.mrb[0].mxu0
    %754 = vdwg.mxu0
    %v756 = vsel %vm530, %v622, 0
    %758 = vmatprep.subr.bf16.mxu0 0
    %759 = vmatpush1.bf16.msra.mxu0 %v341
    %760 = vmatprep.subr.bf16.mxu0 0
    %761 = vmatpush1.bf16.msra.mxu0 0
    %762 = vmatprep.subr.bf16.mxu0 0
    %763 = vmatpush1.bf16.msra.mxu0 0
    %764 = vmatprep.subr.bf16.mxu0 0
    %765 = vmatpush1.bf16.msra.mxu0 0
    %766 = vmatprep.subr.bf16.mxu0 0
    %767 = vmatpush1.bf16.msra.mxu0 0
    %768 = vmatprep.subr.bf16.mxu0 0
    %769 = vmatpush1.bf16.msra.mxu0 0
    %770 = vmatprep.subr.bf16.mxu0 0
    %771 = vmatpush1.bf16.msra.mxu0 0
    %772 = vmatprep.subr.bf16.mxu0 0
    %773 = vmatpush1.bf16.msra.mxu0 0
    %774 = vmatprep.subr.bf16.mxu0 0
    %775 = vmatpush1.bf16.msra.mxu0 0
    %776 = vmatprep.subr.bf16.mxu0 0
    %777 = vmatpush1.bf16.msra.mxu0 0
    %778 = vmatprep.subr.bf16.mxu0 0
    %779 = vmatpush1.bf16.msra.mxu0 0
    %780 = vmatprep.subr.bf16.mxu0 0
    %781 = vmatpush1.bf16.msra.mxu0 0
    %782 = vmatprep.subr.bf16.mxu0 0
    %783 = vmatpush1.bf16.msra.mxu0 0
    %784 = vmatprep.subr.bf16.mxu0 0
    %785 = vmatpush1.bf16.msra.mxu0 0
    %786 = vmatprep.subr.bf16.mxu0 0
    %787 = vmatpush1.bf16.msra.mxu0 0
    %788 = vmatprep.subr.bf16.mxu0 0
    %789 = vmatpush1.bf16.msra.mxu0 0
    %790 = vmatprep.mubr.bf16.mxu0 0
    %791 = vmatmul.mubr.bf16.gmra.mrb[0].mxu0 %v756
    %v792 = vpop.f32.mrb[0].mxu0
    %v793 = vadd.f32 0.0, %v792
    %v794 = vpop.f32.mrb[0].mxu0
    %v795 = vpop.f32.mrb[0].mxu0
    %v796 = vadd.f32 0.0, %v795
    %v797 = vpop.f32.mrb[0].mxu0
    %798 = vdwg.mxu0
    %v799 = vpack.c.bf16 %v664, %v661
    %v800 = vpack.c.bf16 %v708, %v705
    %v801 = vpack.c.bf16 %v752, %v749
    %v802 = vpack.c.bf16 %v796, %v793
    %803 = vst.msk [vmem:[#allocation3] sm:$0xff] %vm160, %v799
    %805 = vrot.lane.b32.xlu0 %v800, 8
    %v806 = vpop.permute.xlu0 %805
    %vm808 = vcmask 130112
    %809 = vst.msk [vmem:[#allocation3] sm:$0xff] %vm808, %v806
    %811 = vrot.lane.b32.xlu0 %v801, 16
    %v812 = vpop.permute.xlu0 %811
    %vm814 = vcmask 195712
    %815 = vst.msk [vmem:[#allocation3] sm:$0xff] %vm814, %v812
    %817 = vrot.lane.b32.xlu0 %v802, 24
    %v818 = vpop.permute.xlu0 %817
    %vm820 = vcmask 261312
    %821 = vst.msk [vmem:[#allocation3] sm:$0xff] %vm820, %v818
    %v822 = vld [vmem:[#allocation3] sm:$0xff]
    %v823 = vld [vmem:[%s3] sm:$0xf]
    %v824 = vld [vmem:[%s3 + $0x4] sm:$0xf]
    %v825 = vld [vmem:[%s3 + $0x8] sm:$0xf]
    %v826 = vld [vmem:[%s3 + $0xc] sm:$0xf]
    %v827 = vlaneseq
    %v828 = vshrl.u32 %v827, 7
    %v829 = vsub.s32 3, %v828
    %v830 = vrot.slane %v82, %v829
    %v835 = vunpack.c.l.b16 %v823
    %v836 = vunpack.c.l.b16 %v824
    %v837 = vunpack.c.l.b16 %v825
    %v838 = vunpack.c.l.b16 %v826
    %v839 = vpack.c.b16 %v836, %v835
    %v840 = vpack.c.b16 %v838, %v837
    %v844 = vsel %vm40, %v822, 0
    %846 = vmatprep.subr.bf16.mxu0 0
    %847 = vmatpush1.bf16.msra.mxu0 %v839
    %848 = vmatprep.subr.bf16.mxu0 0
    %849 = vmatpush1.bf16.msra.mxu0 %v840
    %850 = vmatprep.subr.bf16.mxu0 0
    %851 = vmatpush1.bf16.msra.mxu0 0
    %852 = vmatprep.subr.bf16.mxu0 0
    %853 = vmatpush1.bf16.msra.mxu0 0
    %854 = vmatprep.subr.bf16.mxu0 0
    %855 = vmatpush1.bf16.msra.mxu0 0
    %856 = vmatprep.subr.bf16.mxu0 0
    %857 = vmatpush1.bf16.msra.mxu0 0
    %858 = vmatprep.subr.bf16.mxu0 0
    %859 = vmatpush1.bf16.msra.mxu0 0
    %860 = vmatprep.subr.bf16.mxu0 0
    %861 = vmatpush1.bf16.msra.mxu0 0
    %862 = vmatprep.subr.bf16.mxu0 0
    %863 = vmatpush1.bf16.msra.mxu0 0
    %864 = vmatprep.subr.bf16.mxu0 0
    %865 = vmatpush1.bf16.msra.mxu0 0
    %866 = vmatprep.subr.bf16.mxu0 0
    %867 = vmatpush1.bf16.msra.mxu0 0
    %868 = vmatprep.subr.bf16.mxu0 0
    %869 = vmatpush1.bf16.msra.mxu0 0
    %870 = vmatprep.subr.bf16.mxu0 0
    %871 = vmatpush1.bf16.msra.mxu0 0
    %872 = vmatprep.subr.bf16.mxu0 0
    %873 = vmatpush1.bf16.msra.mxu0 0
    %874 = vmatprep.subr.bf16.mxu0 0
    %875 = vmatpush1.bf16.msra.mxu0 0
    %876 = vmatprep.subr.bf16.mxu0 0
    %877 = vmatpush1.bf16.msra.mxu0 0
    %878 = vmatprep.mubr.bf16.mxu0 0
    %879 = vmatmul.mubr.bf16.gmra.mrb[0].mxu0 %v844
    %v880 = vpop.f32.mrb[0].mxu0
    %v881 = vadd.f32 %v830, %v880
    %v882 = vpop.f32.mrb[0].mxu0
    %v883 = vpop.f32.mrb[0].mxu0
    %v884 = vadd.f32 %v830, %v883
    %v885 = vpop.f32.mrb[0].mxu0
    %886 = vdwg.mxu0
    %v887 = vadd.f32 %v881, %v78
    %v888 = vadd.f32 %v884, %v79
    %v889 = vsel %vm40, %v887, 0.0
    %890 = vadd.xlane.f32.xlu0 %v889
    %v891 = vpop.xlane.xlu0 %890
    %v892 = vsel %vm40, %v888, 0.0
    %893 = vadd.xlane.f32.xlu0 %v892
    %v894 = vpop.xlane.xlu0 %893
    %v895 = vmul.f32 %v891, %v47
    %v896 = vmul.f32 %v894, %v47
    %v897 = vsub.f32 %v887, %v895
    %v898 = vsub.f32 %v888, %v896
    %v899 = vmul.f32 %v897, %v897
    %v900 = vmul.f32 %v898, %v898
    %v901 = vsel %vm40, %v899, 0.0
    %902 = vadd.xlane.f32.xlu0 %v901
    %v903 = vpop.xlane.xlu0 %902
    %v904 = vsel %vm40, %v900, 0.0
    %905 = vadd.xlane.f32.xlu0 %v904
    %v906 = vpop.xlane.xlu0 %905
    %v907 = vmul.f32 %v903, %v47
    %v908 = vmul.f32 %v906, %v47
    %v909 = vadd.f32 %v907, 1e-12
    %v910 = vadd.f32 %v908, 1e-12
    %v911 = vrsqrt.pop %v909
    %v912 = vrsqrt.pop %v910
    %v913 = vmul.f32 %v897, %v911
    %v914 = vmul.f32 %v898, %v912
    %v915 = vlaneseq
    %v916 = vshrl.u32 %v915, 7
    %v917 = vsub.s32 4, %v916
    %v918 = vrot.slane %v82, %v917
    %v919 = vmul.f32 %v913, %v918
    %v920 = vmul.f32 %v914, %v918
    %v921 = vlaneseq
    %v922 = vshrl.u32 %v921, 7
    %v923 = vsub.s32 5, %v922
    %v924 = vrot.slane %v82, %v923
    %v925 = vadd.f32 %v919, %v924
    %v926 = vadd.f32 %v920, %v924
    %v927 = vpack.c.bf16 %v926, %v925
    %v928 = vld [vmem:[%s4] sm:$0xf]
    %v929 = vld [vmem:[%s4 + $0x4] sm:$0xf]
    %v930 = vld [vmem:[%s4 + $0x8] sm:$0xf]
    %v931 = vld [vmem:[%s4 + $0xc] sm:$0xf]
    %v932 = vlaneseq
    %v933 = vshrl.u32 %v932, 7
    %v934 = vsub.s32 6, %v933
    %v935 = vrot.slane %v82, %v934
    %v940 = vunpack.c.l.b16 %v928
    %v941 = vunpack.c.l.b16 %v929
    %v942 = vunpack.c.l.b16 %v930
    %v943 = vunpack.c.l.b16 %v931
    %v944 = vpack.c.b16 %v941, %v940
    %v945 = vpack.c.b16 %v943, %v942
    %v949 = vsel %vm40, %v927, 0
    %951 = vmatprep.subr.bf16.mxu0 0
    %952 = vmatpush1.bf16.msra.mxu0 %v944
    %953 = vmatprep.subr.bf16.mxu0 0
    %954 = vmatpush1.bf16.msra.mxu0 %v945
    %955 = vmatprep.subr.bf16.mxu0 0
    %956 = vmatpush1.bf16.msra.mxu0 0
    %957 = vmatprep.subr.bf16.mxu0 0
    %958 = vmatpush1.bf16.msra.mxu0 0
    %959 = vmatprep.subr.bf16.mxu0 0
    %960 = vmatpush1.bf16.msra.mxu0 0
    %961 = vmatprep.subr.bf16.mxu0 0
    %962 = vmatpush1.bf16.msra.mxu0 0
    %963 = vmatprep.subr.bf16.mxu0 0
    %964 = vmatpush1.bf16.msra.mxu0 0
    %965 = vmatprep.subr.bf16.mxu0 0
    %966 = vmatpush1.bf16.msra.mxu0 0
    %967 = vmatprep.subr.bf16.mxu0 0
    %968 = vmatpush1.bf16.msra.mxu0 0
    %969 = vmatprep.subr.bf16.mxu0 0
    %970 = vmatpush1.bf16.msra.mxu0 0
    %971 = vmatprep.subr.bf16.mxu0 0
    %972 = vmatpush1.bf16.msra.mxu0 0
    %973 = vmatprep.subr.bf16.mxu0 0
    %974 = vmatpush1.bf16.msra.mxu0 0
    %975 = vmatprep.subr.bf16.mxu0 0
    %976 = vmatpush1.bf16.msra.mxu0 0
    %977 = vmatprep.subr.bf16.mxu0 0
    %978 = vmatpush1.bf16.msra.mxu0 0
    %979 = vmatprep.subr.bf16.mxu0 0
    %980 = vmatpush1.bf16.msra.mxu0 0
    %981 = vmatprep.subr.bf16.mxu0 0
    %982 = vmatpush1.bf16.msra.mxu0 0
    %983 = vmatprep.mubr.bf16.mxu0 0
    %984 = vmatmul.mubr.bf16.gmra.mrb[0].mxu0 %v949
    %v985 = vpop.f32.mrb[0].mxu0
    %v986 = vadd.f32 %v935, %v985
    %v987 = vpop.f32.mrb[0].mxu0
    %v988 = vpop.f32.mrb[0].mxu0
    %v989 = vadd.f32 %v935, %v988
    %v990 = vpop.f32.mrb[0].mxu0
    %991 = vdwg.mxu0
    %v992 = vmul.f32 %v986, %v986
    %v993 = vmul.f32 %v989, %v989
    %v994 = vmul.f32 %v986, %v992
    %v995 = vmul.f32 %v989, %v993
    %v996 = vmul.f32 %v994, 0.044715
    %v997 = vmul.f32 %v995, 0.044715
    %v998 = vadd.f32 %v986, %v996
    %v999 = vadd.f32 %v989, %v997
    %v1000 = vmul.f32 %v998, 0.7978846
    %v1001 = vmul.f32 %v999, 0.7978846
    %v1002 = vtanh.pop %v1000
    %v1003 = vtanh.pop %v1001
    %v1004 = vadd.f32 %v1002, 1.0
    %v1005 = vadd.f32 %v1003, 1.0
    %v1006 = vmul.f32 %v1004, 0.5
    %v1007 = vmul.f32 %v1005, 0.5
    %v1008 = vmul.f32 %v986, %v1006
    %v1009 = vmul.f32 %v989, %v1007
    %v1010 = vpack.c.bf16 %v1009, %v1008
    %v1011 = vld [vmem:[%s5] sm:$0xf]
    %v1012 = vld [vmem:[%s5 + $0x4] sm:$0xf]
    %v1013 = vld [vmem:[%s5 + $0x8] sm:$0xf]
    %v1014 = vld [vmem:[%s5 + $0xc] sm:$0xf]
    %v1015 = vld [vmem:[%s5 + $0x10] sm:$0xf]
    %v1016 = vld [vmem:[%s5 + $0x14] sm:$0xf]
    %v1017 = vld [vmem:[%s5 + $0x18] sm:$0xf]
    %v1018 = vld [vmem:[%s5 + $0x1c] sm:$0xf]
    %v1019 = vlaneseq
    %v1020 = vshrl.u32 %v1019, 7
    %v1021 = vsub.s32 7, %v1020
    %v1022 = vrot.slane %v82, %v1021
    %v1031 = vunpack.c.l.b16 %v1011
    %v1032 = vunpack.c.l.b16 %v1012
    %v1033 = vunpack.c.l.b16 %v1013
    %v1034 = vunpack.c.l.b16 %v1014
    %v1035 = vunpack.c.l.b16 %v1015
    %v1036 = vunpack.c.l.b16 %v1016
    %v1037 = vunpack.c.l.b16 %v1017
    %v1038 = vunpack.c.l.b16 %v1018
    %v1039 = vpack.c.b16 %v1032, %v1031
    %v1040 = vpack.c.b16 %v1034, %v1033
    %v1041 = vpack.c.b16 %v1036, %v1035
    %v1042 = vpack.c.b16 %v1038, %v1037
    %vm1047 = vcmask 523264
    %v1049 = vsel %vm1047, %v1010, 0
    %1051 = vmatprep.subr.bf16.mxu0 0
    %1052 = vmatpush1.bf16.msra.mxu0 %v1039
    %1053 = vmatprep.subr.bf16.mxu0 0
    %1054 = vmatpush1.bf16.msra.mxu0 %v1040
    %1055 = vmatprep.subr.bf16.mxu0 0
    %1056 = vmatpush1.bf16.msra.mxu0 %v1041
    %1057 = vmatprep.subr.bf16.mxu0 0
    %1058 = vmatpush1.bf16.msra.mxu0 %v1042
    %1059 = vmatprep.subr.bf16.mxu0 0
    %1060 = vmatpush1.bf16.msra.mxu0 0
    %1061 = vmatprep.subr.bf16.mxu0 0
    %1062 = vmatpush1.bf16.msra.mxu0 0
    %1063 = vmatprep.subr.bf16.mxu0 0
    %1064 = vmatpush1.bf16.msra.mxu0 0
    %1065 = vmatprep.subr.bf16.mxu0 0
    %1066 = vmatpush1.bf16.msra.mxu0 0
    %1067 = vmatprep.subr.bf16.mxu0 0
    %1068 = vmatpush1.bf16.msra.mxu0 0
    %1069 = vmatprep.subr.bf16.mxu0 0
    %1070 = vmatpush1.bf16.msra.mxu0 0
    %1071 = vmatprep.subr.bf16.mxu0 0
    %1072 = vmatpush1.bf16.msra.mxu0 0
    %1073 = vmatprep.subr.bf16.mxu0 0
    %1074 = vmatpush1.bf16.msra.mxu0 0
    %1075 = vmatprep.subr.bf16.mxu0 0
    %1076 = vmatpush1.bf16.msra.mxu0 0
    %1077 = vmatprep.subr.bf16.mxu0 0
    %1078 = vmatpush1.bf16.msra.mxu0 0
    %1079 = vmatprep.subr.bf16.mxu0 0
    %1080 = vmatpush1.bf16.msra.mxu0 0
    %1081 = vmatprep.subr.bf16.mxu0 0
    %1082 = vmatpush1.bf16.msra.mxu0 0
    %1083 = vmatprep.mubr.bf16.mxu0 0
    %1084 = vmatmul.mubr.bf16.gmra.mrb[0].mxu0 %v1049
    %v1085 = vpop.f32.mrb[0].mxu0
    %v1086 = vadd.f32 %v1022, %v1085
    %v1087 = vpop.f32.mrb[0].mxu0
    %v1088 = vpop.f32.mrb[0].mxu0
    %v1089 = vadd.f32 %v1022, %v1088
    %v1090 = vpop.f32.mrb[0].mxu0
    %1091 = vdwg.mxu0
    %v1092 = vadd.f32 %v1086, %v925
    %v1093 = vadd.f32 %v1089, %v926
    %v1094 = vsel %vm40, %v1092, 0.0
    %1095 = vadd.xlane.f32.xlu0 %v1094
    %v1096 = vpop.xlane.xlu0 %1095
    %v1097 = vsel %vm40, %v1093, 0.0
    %1098 = vadd.xlane.f32.xlu0 %v1097
    %v1099 = vpop.xlane.xlu0 %1098
    %v1100 = vmul.f32 %v1096, %v47
    %v1101 = vmul.f32 %v1099, %v47
    %v1102 = vsub.f32 %v1092, %v1100
    %v1103 = vsub.f32 %v1093, %v1101
    %v1104 = vmul.f32 %v1102, %v1102
    %v1105 = vmul.f32 %v1103, %v1103
    %v1106 = vsel %vm40, %v1104, 0.0
    %1107 = vadd.xlane.f32.xlu0 %v1106
    %v1108 = vpop.xlane.xlu0 %1107
    %v1109 = vsel %vm40, %v1105, 0.0
    %1110 = vadd.xlane.f32.xlu0 %v1109
    %v1111 = vpop.xlane.xlu0 %1110
    %v1112 = vmul.f32 %v1108, %v47
    %v1113 = vmul.f32 %v1111, %v47
    %v1114 = vadd.f32 %v1112, 1e-12
    %v1115 = vadd.f32 %v1113, 1e-12
    %v1116 = vrsqrt.pop %v1114
    %v1117 = vrsqrt.pop %v1115
    %v1118 = vmul.f32 %v1102, %v1116
    %v1119 = vmul.f32 %v1103, %v1117
    %v1120 = vlaneseq
    %v1121 = vshrl.u32 %v1120, 7
    %v1122 = vsub.s32 0, %v1121
    %v1123 = vrot.slane %v83, %v1122
    %v1124 = vmul.f32 %v1118, %v1123
    %v1125 = vmul.f32 %v1119, %v1123
    %v1126 = vlaneseq
    %v1127 = vshrl.u32 %v1126, 7
    %v1128 = vsub.s32 1, %v1127
    %v1129 = vrot.slane %v83, %v1128
    %v1130 = vadd.f32 %v1124, %v1129
    %v1131 = vadd.f32 %v1125, %v1129
    %s1132 = scalar_lea.vmem %s6, 16
    %v1133 = vld [vmem:[%s1132] sm:$0xff]
    %v1134 = vld [vmem:[%s1132 + $0x8] sm:$0x3]
    %s1135 = scalar_lea.vmem %s2, 48
    %v1136 = vld [vmem:[%s1135] sm:$0xf]
    %v1137 = vld [vmem:[%s1135 + $0x4] sm:$0xf]
    %v1138 = vld [vmem:[%s1135 + $0x8] sm:$0xf]
    %v1139 = vld [vmem:[%s1135 + $0xc] sm:$0xf]
    %v1140 = vld [vmem:[%s1135 + $0x10] sm:$0xf]
    %v1141 = vld [vmem:[%s1135 + $0x14] sm:$0xf]
    %v1142 = vld [vmem:[%s1135 + $0x18] sm:$0xf]
    %v1143 = vld [vmem:[%s1135 + $0x1c] sm:$0xf]
    %v1144 = vld [vmem:[%s1135 + $0x20] sm:$0xf]
    %v1145 = vld [vmem:[%s1135 + $0x24] sm:$0xf]
    %v1146 = vld [vmem:[%s1135 + $0x28] sm:$0xf]
    %v1147 = vld [vmem:[%s1135 + $0x2c] sm:$0xf]
    %v1148 = vpack.c.bf16 %v1131, %v1130
    %v1149 = vlaneseq
    %v1150 = vshrl.u32 %v1149, 7
    %v1151 = vsub.s32 0, %v1150
    %v1152 = vrot.slane %v1133, %v1151
    %v1157 = vunpack.c.l.b16 %v1136
    %v1158 = vunpack.c.l.b16 %v1137
    %v1159 = vunpack.c.l.b16 %v1138
    %v1160 = vunpack.c.l.b16 %v1139
    %v1161 = vpack.c.b16 %v1158, %v1157
    %v1162 = vpack.c.b16 %v1160, %v1159
    %v1166 = vsel %vm40, %v1148, 0
    %1168 = vmatprep.subr.bf16.mxu0 0
    %1169 = vmatpush1.bf16.msra.mxu0 %v1161
    %1170 = vmatprep.subr.bf16.mxu0 0
    %1171 = vmatpush1.bf16.msra.mxu0 %v1162
    %1172 = vmatprep.subr.bf16.mxu0 0
    %1173 = vmatpush1.bf16.msra.mxu0 0
    %1174 = vmatprep.subr.bf16.mxu0 0
    %1175 = vmatpush1.bf16.msra.mxu0 0
    %1176 = vmatprep.subr.bf16.mxu0 0
    %1177 = vmatpush1.bf16.msra.mxu0 0
    %1178 = vmatprep.subr.bf16.mxu0 0
    %1179 = vmatpush1.bf16.msra.mxu0 0
    %1180 = vmatprep.subr.bf16.mxu0 0
    %1181 = vmatpush1.bf16.msra.mxu0 0
    %1182 = vmatprep.subr.bf16.mxu0 0
    %1183 = vmatpush1.bf16.msra.mxu0 0
    %1184 = vmatprep.subr.bf16.mxu0 0
    %1185 = vmatpush1.bf16.msra.mxu0 0
    %1186 = vmatprep.subr.bf16.mxu0 0
    %1187 = vmatpush1.bf16.msra.mxu0 0
    %1188 = vmatprep.subr.bf16.mxu0 0
    %1189 = vmatpush1.bf16.msra.mxu0 0
    %1190 = vmatprep.subr.bf16.mxu0 0
    %1191 = vmatpush1.bf16.msra.mxu0 0
    %1192 = vmatprep.subr.bf16.mxu0 0
    %1193 = vmatpush1.bf16.msra.mxu0 0
    %1194 = vmatprep.subr.bf16.mxu0 0
    %1195 = vmatpush1.bf16.msra.mxu0 0
    %1196 = vmatprep.subr.bf16.mxu0 0
    %1197 = vmatpush1.bf16.msra.mxu0 0
    %1198 = vmatprep.subr.bf16.mxu0 0
    %1199 = vmatpush1.bf16.msra.mxu0 0
    %1200 = vmatprep.mubr.bf16.mxu0 0
    %1201 = vmatmul.mubr.bf16.gmra.mrb[0].mxu0 %v1166
    %v1202 = vpop.f32.mrb[0].mxu0
    %v1203 = vadd.f32 %v1152, %v1202
    %v1204 = vpop.f32.mrb[0].mxu0
    %v1205 = vpop.f32.mrb[0].mxu0
    %v1206 = vadd.f32 %v1152, %v1205
    %v1207 = vpop.f32.mrb[0].mxu0
    %1208 = vdwg.mxu0
    %v1209 = vmul.f32 %v1203, 0.35355338
    %v1210 = vmul.f32 %v1206, 0.35355338
    %v1211 = vpack.c.bf16 %v1210, %v1209
    %1212 = vst.msk [vmem:[#allocation2] sm:$0xff] %vm160, %v1211
    %1214 = vrot.lane.b32.xlu0 %v1211, 120
    %v1215 = vpop.permute.xlu0 %1214
    %1217 = vst.msk [vmem:[%s166] sm:$0xff] %vm160, %v1215
    %1218 = vrot.lane.b32.xlu0 %v1211, 112
    %v1219 = vpop.permute.xlu0 %1218
    %1221 = vst.msk [vmem:[%s171] sm:$0xff] %vm160, %v1219
    %1222 = vrot.lane.b32.xlu0 %v1211, 104
    %v1223 = vpop.permute.xlu0 %1222
    %1225 = vst.msk [vmem:[%s176] sm:$0xff] %vm160, %v1223
    %v1226 = vlaneseq
    %v1227 = vshrl.u32 %v1226, 7
    %v1228 = vsub.s32 1, %v1227
    %v1229 = vrot.slane %v1133, %v1228
    %v1234 = vunpack.c.l.b16 %v1140
    %v1235 = vunpack.c.l.b16 %v1141
    %v1236 = vunpack.c.l.b16 %v1142
    %v1237 = vunpack.c.l.b16 %v1143
    %v1238 = vpack.c.b16 %v1235, %v1234
    %v1239 = vpack.c.b16 %v1237, %v1236
    %1242 = vmatprep.subr.bf16.mxu0 0
    %1243 = vmatpush1.bf16.msra.mxu0 %v1238
    %1244 = vmatprep.subr.bf16.mxu0 0
    %1245 = vmatpush1.bf16.msra.mxu0 %v1239
    %1246 = vmatprep.subr.bf16.mxu0 0
    %1247 = vmatpush1.bf16.msra.mxu0 0
    %1248 = vmatprep.subr.bf16.mxu0 0
    %1249 = vmatpush1.bf16.msra.mxu0 0
    %1250 = vmatprep.subr.bf16.mxu0 0
    %1251 = vmatpush1.bf16.msra.mxu0 0
    %1252 = vmatprep.subr.bf16.mxu0 0
    %1253 = vmatpush1.bf16.msra.mxu0 0
    %1254 = vmatprep.subr.bf16.mxu0 0
    %1255 = vmatpush1.bf16.msra.mxu0 0
    %1256 = vmatprep.subr.bf16.mxu0 0
    %1257 = vmatpush1.bf16.msra.mxu0 0
    %1258 = vmatprep.subr.bf16.mxu0 0
    %1259 = vmatpush1.bf16.msra.mxu0 0
    %1260 = vmatprep.subr.bf16.mxu0 0
    %1261 = vmatpush1.bf16.msra.mxu0 0
    %1262 = vmatprep.subr.bf16.mxu0 0
    %1263 = vmatpush1.bf16.msra.mxu0 0
    %1264 = vmatprep.subr.bf16.mxu0 0
    %1265 = vmatpush1.bf16.msra.mxu0 0
    %1266 = vmatprep.subr.bf16.mxu0 0
    %1267 = vmatpush1.bf16.msra.mxu0 0
    %1268 = vmatprep.subr.bf16.mxu0 0
    %1269 = vmatpush1.bf16.msra.mxu0 0
    %1270 = vmatprep.subr.bf16.mxu0 0
    %1271 = vmatpush1.bf16.msra.mxu0 0
    %1272 = vmatprep.subr.bf16.mxu0 0
    %1273 = vmatpush1.bf16.msra.mxu0 0
    %1274 = vmatprep.mubr.bf16.mxu0 0
    %1275 = vmatmul.mubr.bf16.gmra.mrb[0].mxu0 %v1166
    %v1276 = vpop.f32.mrb[0].mxu0
    %v1277 = vadd.f32 %v1229, %v1276
    %v1278 = vpop.f32.mrb[0].mxu0
    %v1279 = vpop.f32.mrb[0].mxu0
    %v1280 = vadd.f32 %v1229, %v1279
    %v1281 = vpop.f32.mrb[0].mxu0
    %1282 = vdwg.mxu0
    %v1283 = vpack.c.bf16 %v1280, %v1277
    %1284 = vst.msk [vmem:[%s236] sm:$0xff] %vm160, %v1283
    %1286 = vrot.lane.b32.xlu0 %v1283, 120
    %v1287 = vpop.permute.xlu0 %1286
    %1289 = vst.msk [vmem:[%s242] sm:$0xff] %vm160, %v1287
    %1290 = vrot.lane.b32.xlu0 %v1283, 112
    %v1291 = vpop.permute.xlu0 %1290
    %1293 = vst.msk [vmem:[%s247] sm:$0xff] %vm160, %v1291
    %1294 = vrot.lane.b32.xlu0 %v1283, 104
    %v1295 = vpop.permute.xlu0 %1294
    %1297 = vst.msk [vmem:[%s252] sm:$0xff] %vm160, %v1295
    %v1298 = vlaneseq
    %v1299 = vshrl.u32 %v1298, 7
    %v1300 = vsub.s32 2, %v1299
    %v1301 = vrot.slane %v1133, %v1300
    %v1306 = vunpack.c.l.b16 %v1144
    %v1307 = vunpack.c.l.b16 %v1145
    %v1308 = vunpack.c.l.b16 %v1146
    %v1309 = vunpack.c.l.b16 %v1147
    %v1310 = vpack.c.b16 %v1307, %v1306
    %v1311 = vpack.c.b16 %v1309, %v1308
    %1314 = vmatprep.subr.bf16.mxu0 0
    %1315 = vmatpush1.bf16.msra.mxu0 %v1310
    %1316 = vmatprep.subr.bf16.mxu0 0
    %1317 = vmatpush1.bf16.msra.mxu0 %v1311
    %1318 = vmatprep.subr.bf16.mxu0 0
    %1319 = vmatpush1.bf16.msra.mxu0 0
    %1320 = vmatprep.subr.bf16.mxu0 0
    %1321 = vmatpush1.bf16.msra.mxu0 0
    %1322 = vmatprep.subr.bf16.mxu0 0
    %1323 = vmatpush1.bf16.msra.mxu0 0
    %1324 = vmatprep.subr.bf16.mxu0 0
    %1325 = vmatpush1.bf16.msra.mxu0 0
    %1326 = vmatprep.subr.bf16.mxu0 0
    %1327 = vmatpush1.bf16.msra.mxu0 0
    %1328 = vmatprep.subr.bf16.mxu0 0
    %1329 = vmatpush1.bf16.msra.mxu0 0
    %1330 = vmatprep.subr.bf16.mxu0 0
    %1331 = vmatpush1.bf16.msra.mxu0 0
    %1332 = vmatprep.subr.bf16.mxu0 0
    %1333 = vmatpush1.bf16.msra.mxu0 0
    %1334 = vmatprep.subr.bf16.mxu0 0
    %1335 = vmatpush1.bf16.msra.mxu0 0
    %1336 = vmatprep.subr.bf16.mxu0 0
    %1337 = vmatpush1.bf16.msra.mxu0 0
    %1338 = vmatprep.subr.bf16.mxu0 0
    %1339 = vmatpush1.bf16.msra.mxu0 0
    %1340 = vmatprep.subr.bf16.mxu0 0
    %1341 = vmatpush1.bf16.msra.mxu0 0
    %1342 = vmatprep.subr.bf16.mxu0 0
    %1343 = vmatpush1.bf16.msra.mxu0 0
    %1344 = vmatprep.subr.bf16.mxu0 0
    %1345 = vmatpush1.bf16.msra.mxu0 0
    %1346 = vmatprep.mubr.bf16.mxu0 0
    %1347 = vmatmul.mubr.bf16.gmra.mrb[0].mxu0 %v1166
    %v1348 = vpop.f32.mrb[0].mxu0
    %v1349 = vadd.f32 %v1301, %v1348
    %v1350 = vpop.f32.mrb[0].mxu0
    %v1351 = vpop.f32.mrb[0].mxu0
    %v1352 = vadd.f32 %v1301, %v1351
    %v1353 = vpop.f32.mrb[0].mxu0
    %1354 = vdwg.mxu0
    %v1355 = vpack.c.bf16 %v1352, %v1349
    %1356 = vst.msk [vmem:[%s312] sm:$0xff] %vm160, %v1355
    %1358 = vrot.lane.b32.xlu0 %v1355, 120
    %v1359 = vpop.permute.xlu0 %1358
    %1361 = vst.msk [vmem:[%s318] sm:$0xff] %vm160, %v1359
    %1362 = vrot.lane.b32.xlu0 %v1355, 112
    %v1363 = vpop.permute.xlu0 %1362
    %1365 = vst.msk [vmem:[%s323] sm:$0xff] %vm160, %v1363
    %1366 = vrot.lane.b32.xlu0 %v1355, 104
    %v1367 = vpop.permute.xlu0 %1366
    %1369 = vst.msk [vmem:[%s328] sm:$0xff] %vm160, %v1367
    %v1370 = vld [vmem:[#allocation2] sm:$0xff]
    %v1371 = vld [vmem:[#allocation2 + $0x8] sm:$0xff]
    %v1372 = vld [vmem:[#allocation2 + $0x10] sm:$0xff]
    %v1373 = vld [vmem:[#allocation2 + $0x18] sm:$0xff]
    %v1374 = vld [vmem:[%s236] sm:$0xff]
    %v1375 = vld [vmem:[%s236 + $0x8] sm:$0xff]
    %v1376 = vld [vmem:[%s236 + $0x10] sm:$0xff]
    %v1377 = vld [vmem:[%s236 + $0x18] sm:$0xff]
    %v1378 = vld [vmem:[%s312] sm:$0xff]
    %v1379 = vld [vmem:[%s312 + $0x8] sm:$0xff]
    %v1380 = vld [vmem:[%s312 + $0x10] sm:$0xff]
    %v1381 = vld [vmem:[%s312 + $0x18] sm:$0xff]
    %v1383 = vsel %vm160, %v1370, 0
    %v1386 = vsel %vm160, %v1374, 0
    %1388 = vmatprep.subr.bf16.mxu0 0
    %1389 = vmatpush1.bf16.xpose.msra.mxu0 %v1386
    %1390 = vmatprep.subr.bf16.mxu0 0
    %1391 = vmatpush1.bf16.xpose.msra.mxu0 0
    %1392 = vmatprep.subr.bf16.mxu0 0
    %1393 = vmatpush1.bf16.xpose.msra.mxu0 0
    %1394 = vmatprep.subr.bf16.mxu0 0
    %1395 = vmatpush1.bf16.xpose.msra.mxu0 0
    %1396 = vmatprep.subr.bf16.mxu0 0
    %1397 = vmatpush1.bf16.xpose.msra.mxu0 0
    %1398 = vmatprep.subr.bf16.mxu0 0
    %1399 = vmatpush1.bf16.xpose.msra.mxu0 0
    %1400 = vmatprep.subr.bf16.mxu0 0
    %1401 = vmatpush1.bf16.xpose.msra.mxu0 0
    %1402 = vmatprep.subr.bf16.mxu0 0
    %1403 = vmatpush1.bf16.xpose.msra.mxu0 0
    %1404 = vmatprep.subr.bf16.mxu0 0
    %1405 = vmatpush1.bf16.xpose.msra.mxu0 0
    %1406 = vmatprep.subr.bf16.mxu0 0
    %1407 = vmatpush1.bf16.xpose.msra.mxu0 0
    %1408 = vmatprep.subr.bf16.mxu0 0
    %1409 = vmatpush1.bf16.xpose.msra.mxu0 0
    %1410 = vmatprep.subr.bf16.mxu0 0
    %1411 = vmatpush1.bf16.xpose.msra.mxu0 0
    %1412 = vmatprep.subr.bf16.mxu0 0
    %1413 = vmatpush1.bf16.xpose.msra.mxu0 0
    %1414 = vmatprep.subr.bf16.mxu0 0
    %1415 = vmatpush1.bf16.xpose.msra.mxu0 0
    %1416 = vmatprep.subr.bf16.mxu0 0
    %1417 = vmatpush1.bf16.xpose.msra.mxu0 0
    %1418 = vmatprep.subr.bf16.mxu0 0
    %1419 = vmatpush1.bf16.xpose.msra.mxu0 0
    %1420 = vmatprep.mubr.bf16.mxu0 0
    %1421 = vmatmul.mubr.bf16.gmra.mrb[0].mxu0 %v1383
    %v1422 = vpop.f32.mrb[0].mxu0
    %v1423 = vadd.f32 %v80, %v1422
    %v1424 = vpop.f32.mrb[0].mxu0
    %v1425 = vpop.f32.mrb[0].mxu0
    %v1426 = vadd.f32 %v81, %v1425
    %v1427 = vpop.f32.mrb[0].mxu0
    %1428 = vdwg.mxu0
    %v1430 = vsel %vm160, %v1371, 0
    %v1433 = vsel %vm160, %v1375, 0
    %1435 = vmatprep.subr.bf16.mxu0 0
    %1436 = vmatpush1.bf16.xpose.msra.mxu0 %v1433
    %1437 = vmatprep.subr.bf16.mxu0 0
    %1438 = vmatpush1.bf16.xpose.msra.mxu0 0
    %1439 = vmatprep.subr.bf16.mxu0 0
    %1440 = vmatpush1.bf16.xpose.msra.mxu0 0
    %1441 = vmatprep.subr.bf16.mxu0 0
    %1442 = vmatpush1.bf16.xpose.msra.mxu0 0
    %1443 = vmatprep.subr.bf16.mxu0 0
    %1444 = vmatpush1.bf16.xpose.msra.mxu0 0
    %1445 = vmatprep.subr.bf16.mxu0 0
    %1446 = vmatpush1.bf16.xpose.msra.mxu0 0
    %1447 = vmatprep.subr.bf16.mxu0 0
    %1448 = vmatpush1.bf16.xpose.msra.mxu0 0
    %1449 = vmatprep.subr.bf16.mxu0 0
    %1450 = vmatpush1.bf16.xpose.msra.mxu0 0
    %1451 = vmatprep.subr.bf16.mxu0 0
    %1452 = vmatpush1.bf16.xpose.msra.mxu0 0
    %1453 = vmatprep.subr.bf16.mxu0 0
    %1454 = vmatpush1.bf16.xpose.msra.mxu0 0
    %1455 = vmatprep.subr.bf16.mxu0 0
    %1456 = vmatpush1.bf16.xpose.msra.mxu0 0
    %1457 = vmatprep.subr.bf16.mxu0 0
    %1458 = vmatpush1.bf16.xpose.msra.mxu0 0
    %1459 = vmatprep.subr.bf16.mxu0 0
    %1460 = vmatpush1.bf16.xpose.msra.mxu0 0
    %1461 = vmatprep.subr.bf16.mxu0 0
    %1462 = vmatpush1.bf16.xpose.msra.mxu0 0
    %1463 = vmatprep.subr.bf16.mxu0 0
    %1464 = vmatpush1.bf16.xpose.msra.mxu0 0
    %1465 = vmatprep.subr.bf16.mxu0 0
    %1466 = vmatpush1.bf16.xpose.msra.mxu0 0
    %1467 = vmatprep.mubr.bf16.mxu0 0
    %1468 = vmatmul.mubr.bf16.gmra.mrb[0].mxu0 %v1430
    %v1469 = vpop.f32.mrb[0].mxu0
    %v1470 = vadd.f32 %v80, %v1469
    %v1471 = vpop.f32.mrb[0].mxu0
    %v1472 = vpop.f32.mrb[0].mxu0
    %v1473 = vadd.f32 %v81, %v1472
    %v1474 = vpop.f32.mrb[0].mxu0
    %1475 = vdwg.mxu0
    %v1477 = vsel %vm160, %v1372, 0
    %v1480 = vsel %vm160, %v1376, 0
    %1482 = vmatprep.subr.bf16.mxu0 0
    %1483 = vmatpush1.bf16.xpose.msra.mxu0 %v1480
    %1484 = vmatprep.subr.bf16.mxu0 0
    %1485 = vmatpush1.bf16.xpose.msra.mxu0 0
    %1486 = vmatprep.subr.bf16.mxu0 0
    %1487 = vmatpush1.bf16.xpose.msra.mxu0 0
    %1488 = vmatprep.subr.bf16.mxu0 0
    %1489 = vmatpush1.bf16.xpose.msra.mxu0 0
    %1490 = vmatprep.subr.bf16.mxu0 0
    %1491 = vmatpush1.bf16.xpose.msra.mxu0 0
    %1492 = vmatprep.subr.bf16.mxu0 0
    %1493 = vmatpush1.bf16.xpose.msra.mxu0 0
    %1494 = vmatprep.subr.bf16.mxu0 0
    %1495 = vmatpush1.bf16.xpose.msra.mxu0 0
    %1496 = vmatprep.subr.bf16.mxu0 0
    %1497 = vmatpush1.bf16.xpose.msra.mxu0 0
    %1498 = vmatprep.subr.bf16.mxu0 0
    %1499 = vmatpush1.bf16.xpose.msra.mxu0 0
    %1500 = vmatprep.subr.bf16.mxu0 0
    %1501 = vmatpush1.bf16.xpose.msra.mxu0 0
    %1502 = vmatprep.subr.bf16.mxu0 0
    %1503 = vmatpush1.bf16.xpose.msra.mxu0 0
    %1504 = vmatprep.subr.bf16.mxu0 0
    %1505 = vmatpush1.bf16.xpose.msra.mxu0 0
    %1506 = vmatprep.subr.bf16.mxu0 0
    %1507 = vmatpush1.bf16.xpose.msra.mxu0 0
    %1508 = vmatprep.subr.bf16.mxu0 0
    %1509 = vmatpush1.bf16.xpose.msra.mxu0 0
    %1510 = vmatprep.subr.bf16.mxu0 0
    %1511 = vmatpush1.bf16.xpose.msra.mxu0 0
    %1512 = vmatprep.subr.bf16.mxu0 0
    %1513 = vmatpush1.bf16.xpose.msra.mxu0 0
    %1514 = vmatprep.mubr.bf16.mxu0 0
    %1515 = vmatmul.mubr.bf16.gmra.mrb[0].mxu0 %v1477
    %v1516 = vpop.f32.mrb[0].mxu0
    %v1517 = vadd.f32 %v80, %v1516
    %v1518 = vpop.f32.mrb[0].mxu0
    %v1519 = vpop.f32.mrb[0].mxu0
    %v1520 = vadd.f32 %v81, %v1519
    %v1521 = vpop.f32.mrb[0].mxu0
    %1522 = vdwg.mxu0
    %v1524 = vsel %vm160, %v1373, 0
    %v1527 = vsel %vm160, %v1377, 0
    %1529 = vmatprep.subr.bf16.mxu0 0
    %1530 = vmatpush1.bf16.xpose.msra.mxu0 %v1527
    %1531 = vmatprep.subr.bf16.mxu0 0
    %1532 = vmatpush1.bf16.xpose.msra.mxu0 0
    %1533 = vmatprep.subr.bf16.mxu0 0
    %1534 = vmatpush1.bf16.xpose.msra.mxu0 0
    %1535 = vmatprep.subr.bf16.mxu0 0
    %1536 = vmatpush1.bf16.xpose.msra.mxu0 0
    %1537 = vmatprep.subr.bf16.mxu0 0
    %1538 = vmatpush1.bf16.xpose.msra.mxu0 0
    %1539 = vmatprep.subr.bf16.mxu0 0
    %1540 = vmatpush1.bf16.xpose.msra.mxu0 0
    %1541 = vmatprep.subr.bf16.mxu0 0
    %1542 = vmatpush1.bf16.xpose.msra.mxu0 0
    %1543 = vmatprep.subr.bf16.mxu0 0
    %1544 = vmatpush1.bf16.xpose.msra.mxu0 0
    %1545 = vmatprep.subr.bf16.mxu0 0
    %1546 = vmatpush1.bf16.xpose.msra.mxu0 0
    %1547 = vmatprep.subr.bf16.mxu0 0
    %1548 = vmatpush1.bf16.xpose.msra.mxu0 0
    %1549 = vmatprep.subr.bf16.mxu0 0
    %1550 = vmatpush1.bf16.xpose.msra.mxu0 0
    %1551 = vmatprep.subr.bf16.mxu0 0
    %1552 = vmatpush1.bf16.xpose.msra.mxu0 0
    %1553 = vmatprep.subr.bf16.mxu0 0
    %1554 = vmatpush1.bf16.xpose.msra.mxu0 0
    %1555 = vmatprep.subr.bf16.mxu0 0
    %1556 = vmatpush1.bf16.xpose.msra.mxu0 0
    %1557 = vmatprep.subr.bf16.mxu0 0
    %1558 = vmatpush1.bf16.xpose.msra.mxu0 0
    %1559 = vmatprep.subr.bf16.mxu0 0
    %1560 = vmatpush1.bf16.xpose.msra.mxu0 0
    %1561 = vmatprep.mubr.bf16.mxu0 0
    %1562 = vmatmul.mubr.bf16.gmra.mrb[0].mxu0 %v1524
    %v1563 = vpop.f32.mrb[0].mxu0
    %v1564 = vadd.f32 %v80, %v1563
    %v1565 = vpop.f32.mrb[0].mxu0
    %v1566 = vpop.f32.mrb[0].mxu0
    %v1567 = vadd.f32 %v81, %v1566
    %v1568 = vpop.f32.mrb[0].mxu0
    %1569 = vdwg.mxu0
    %v1570 = vsel %vm530, %v1423, -inf
    %1571 = vmax.xlane.f32.xlu0 %v1570
    %v1572 = vpop.xlane.xlu0 %1571
    %v1573 = vsel %vm530, %v1426, -inf
    %1574 = vmax.xlane.f32.xlu0 %v1573
    %v1575 = vpop.xlane.xlu0 %1574
    %v1576 = vsel %vm530, %v1470, -inf
    %1577 = vmax.xlane.f32.xlu0 %v1576
    %v1578 = vpop.xlane.xlu0 %1577
    %v1579 = vsel %vm530, %v1473, -inf
    %1580 = vmax.xlane.f32.xlu0 %v1579
    %v1581 = vpop.xlane.xlu0 %1580
    %v1582 = vsel %vm530, %v1517, -inf
    %1583 = vmax.xlane.f32.xlu0 %v1582
    %v1584 = vpop.xlane.xlu0 %1583
    %v1585 = vsel %vm530, %v1520, -inf
    %1586 = vmax.xlane.f32.xlu0 %v1585
    %v1587 = vpop.xlane.xlu0 %1586
    %v1588 = vsel %vm530, %v1564, -inf
    %1589 = vmax.xlane.f32.xlu0 %v1588
    %v1590 = vpop.xlane.xlu0 %1589
    %v1591 = vsel %vm530, %v1567, -inf
    %1592 = vmax.xlane.f32.xlu0 %v1591
    %v1593 = vpop.xlane.xlu0 %1592
    %v1594 = vsub.f32 %v1423, %v1572
    %v1595 = vsub.f32 %v1426, %v1575
    %v1596 = vsub.f32 %v1470, %v1578
    %v1597 = vsub.f32 %v1473, %v1581
    %v1598 = vsub.f32 %v1517, %v1584
    %v1599 = vsub.f32 %v1520, %v1587
    %v1600 = vsub.f32 %v1564, %v1590
    %v1601 = vsub.f32 %v1567, %v1593
    %v1602 = vmul.f32 %v1594, 1.442695
    %v1603 = vpow.pop %v1602
    %v1604 = vmul.f32 %v1595, 1.442695
    %v1605 = vpow.pop %v1604
    %v1606 = vmul.f32 %v1596, 1.442695
    %v1607 = vpow.pop %v1606
    %v1608 = vmul.f32 %v1597, 1.442695
    %v1609 = vpow.pop %v1608
    %v1610 = vmul.f32 %v1598, 1.442695
    %v1611 = vpow.pop %v1610
    %v1612 = vmul.f32 %v1599, 1.442695
    %v1613 = vpow.pop %v1612
    %v1614 = vmul.f32 %v1600, 1.442695
    %v1615 = vpow.pop %v1614
    %v1616 = vmul.f32 %v1601, 1.442695
    %v1617 = vpow.pop %v1616
    %v1618 = vsel %vm530, %v1603, 0.0
    %1619 = vadd.xlane.f32.xlu0 %v1618
    %v1620 = vpop.xlane.xlu0 %1619
    %v1621 = vsel %vm530, %v1605, 0.0
    %1622 = vadd.xlane.f32.xlu0 %v1621
    %v1623 = vpop.xlane.xlu0 %1622
    %v1624 = vsel %vm530, %v1607, 0.0
    %1625 = vadd.xlane.f32.xlu0 %v1624
    %v1626 = vpop.xlane.xlu0 %1625
    %v1627 = vsel %vm530, %v1609, 0.0
    %1628 = vadd.xlane.f32.xlu0 %v1627
    %v1629 = vpop.xlane.xlu0 %1628
    %v1630 = vsel %vm530, %v1611, 0.0
    %1631 = vadd.xlane.f32.xlu0 %v1630
    %v1632 = vpop.xlane.xlu0 %1631
    %v1633 = vsel %vm530, %v1613, 0.0
    %1634 = vadd.xlane.f32.xlu0 %v1633
    %v1635 = vpop.xlane.xlu0 %1634
    %v1636 = vsel %vm530, %v1615, 0.0
    %1637 = vadd.xlane.f32.xlu0 %v1636
    %v1638 = vpop.xlane.xlu0 %1637
    %v1639 = vsel %vm530, %v1617, 0.0
    %1640 = vadd.xlane.f32.xlu0 %v1639
    %v1641 = vpop.xlane.xlu0 %1640
    %v1642 = vrcp.pop %v1620
    %v1643 = vrcp.pop %v1623
    %v1644 = vrcp.pop %v1626
    %v1645 = vrcp.pop %v1629
    %v1646 = vrcp.pop %v1632
    %v1647 = vrcp.pop %v1635
    %v1648 = vrcp.pop %v1638
    %v1649 = vrcp.pop %v1641
    %v1650 = vmul.f32 %v1603, %v1642
    %v1651 = vmul.f32 %v1605, %v1643
    %v1652 = vmul.f32 %v1607, %v1644
    %v1653 = vmul.f32 %v1609, %v1645
    %v1654 = vmul.f32 %v1611, %v1646
    %v1655 = vmul.f32 %v1613, %v1647
    %v1656 = vmul.f32 %v1615, %v1648
    %v1657 = vmul.f32 %v1617, %v1649
    %v1658 = vpack.c.bf16 %v1651, %v1650
    %v1659 = vpack.c.bf16 %v1653, %v1652
    %v1660 = vpack.c.bf16 %v1655, %v1654
    %v1661 = vpack.c.bf16 %v1657, %v1656
    %v1663 = vsel %vm530, %v1658, 0
    %1665 = vmatprep.subr.bf16.mxu0 0
    %1666 = vmatpush1.bf16.msra.mxu0 %v1378
    %1667 = vmatprep.subr.bf16.mxu0 0
    %1668 = vmatpush1.bf16.msra.mxu0 0
    %1669 = vmatprep.subr.bf16.mxu0 0
    %1670 = vmatpush1.bf16.msra.mxu0 0
    %1671 = vmatprep.subr.bf16.mxu0 0
    %1672 = vmatpush1.bf16.msra.mxu0 0
    %1673 = vmatprep.subr.bf16.mxu0 0
    %1674 = vmatpush1.bf16.msra.mxu0 0
    %1675 = vmatprep.subr.bf16.mxu0 0
    %1676 = vmatpush1.bf16.msra.mxu0 0
    %1677 = vmatprep.subr.bf16.mxu0 0
    %1678 = vmatpush1.bf16.msra.mxu0 0
    %1679 = vmatprep.subr.bf16.mxu0 0
    %1680 = vmatpush1.bf16.msra.mxu0 0
    %1681 = vmatprep.subr.bf16.mxu0 0
    %1682 = vmatpush1.bf16.msra.mxu0 0
    %1683 = vmatprep.subr.bf16.mxu0 0
    %1684 = vmatpush1.bf16.msra.mxu0 0
    %1685 = vmatprep.subr.bf16.mxu0 0
    %1686 = vmatpush1.bf16.msra.mxu0 0
    %1687 = vmatprep.subr.bf16.mxu0 0
    %1688 = vmatpush1.bf16.msra.mxu0 0
    %1689 = vmatprep.subr.bf16.mxu0 0
    %1690 = vmatpush1.bf16.msra.mxu0 0
    %1691 = vmatprep.subr.bf16.mxu0 0
    %1692 = vmatpush1.bf16.msra.mxu0 0
    %1693 = vmatprep.subr.bf16.mxu0 0
    %1694 = vmatpush1.bf16.msra.mxu0 0
    %1695 = vmatprep.subr.bf16.mxu0 0
    %1696 = vmatpush1.bf16.msra.mxu0 0
    %1697 = vmatprep.mubr.bf16.mxu0 0
    %1698 = vmatmul.mubr.bf16.gmra.mrb[0].mxu0 %v1663
    %v1699 = vpop.f32.mrb[0].mxu0
    %v1700 = vadd.f32 0.0, %v1699
    %v1701 = vpop.f32.mrb[0].mxu0
    %v1702 = vpop.f32.mrb[0].mxu0
    %v1703 = vadd.f32 0.0, %v1702
    %v1704 = vpop.f32.mrb[0].mxu0
    %1705 = vdwg.mxu0
    %v1707 = vsel %vm530, %v1659, 0
    %1709 = vmatprep.subr.bf16.mxu0 0
    %1710 = vmatpush1.bf16.msra.mxu0 %v1379
    %1711 = vmatprep.subr.bf16.mxu0 0
    %1712 = vmatpush1.bf16.msra.mxu0 0
    %1713 = vmatprep.subr.bf16.mxu0 0
    %1714 = vmatpush1.bf16.msra.mxu0 0
    %1715 = vmatprep.subr.bf16.mxu0 0
    %1716 = vmatpush1.bf16.msra.mxu0 0
    %1717 = vmatprep.subr.bf16.mxu0 0
    %1718 = vmatpush1.bf16.msra.mxu0 0
    %1719 = vmatprep.subr.bf16.mxu0 0
    %1720 = vmatpush1.bf16.msra.mxu0 0
    %1721 = vmatprep.subr.bf16.mxu0 0
    %1722 = vmatpush1.bf16.msra.mxu0 0
    %1723 = vmatprep.subr.bf16.mxu0 0
    %1724 = vmatpush1.bf16.msra.mxu0 0
    %1725 = vmatprep.subr.bf16.mxu0 0
    %1726 = vmatpush1.bf16.msra.mxu0 0
    %1727 = vmatprep.subr.bf16.mxu0 0
    %1728 = vmatpush1.bf16.msra.mxu0 0
    %1729 = vmatprep.subr.bf16.mxu0 0
    %1730 = vmatpush1.bf16.msra.mxu0 0
    %1731 = vmatprep.subr.bf16.mxu0 0
    %1732 = vmatpush1.bf16.msra.mxu0 0
    %1733 = vmatprep.subr.bf16.mxu0 0
    %1734 = vmatpush1.bf16.msra.mxu0 0
    %1735 = vmatprep.subr.bf16.mxu0 0
    %1736 = vmatpush1.bf16.msra.mxu0 0
    %1737 = vmatprep.subr.bf16.mxu0 0
    %1738 = vmatpush1.bf16.msra.mxu0 0
    %1739 = vmatprep.subr.bf16.mxu0 0
    %1740 = vmatpush1.bf16.msra.mxu0 0
    %1741 = vmatprep.mubr.bf16.mxu0 0
    %1742 = vmatmul.mubr.bf16.gmra.mrb[0].mxu0 %v1707
    %v1743 = vpop.f32.mrb[0].mxu0
    %v1744 = vadd.f32 0.0, %v1743
    %v1745 = vpop.f32.mrb[0].mxu0
    %v1746 = vpop.f32.mrb[0].mxu0
    %v1747 = vadd.f32 0.0, %v1746
    %v1748 = vpop.f32.mrb[0].mxu0
    %1749 = vdwg.mxu0
    %v1751 = vsel %vm530, %v1660, 0
    %1753 = vmatprep.subr.bf16.mxu0 0
    %1754 = vmatpush1.bf16.msra.mxu0 %v1380
    %1755 = vmatprep.subr.bf16.mxu0 0
    %1756 = vmatpush1.bf16.msra.mxu0 0
    %1757 = vmatprep.subr.bf16.mxu0 0
    %1758 = vmatpush1.bf16.msra.mxu0 0
    %1759 = vmatprep.subr.bf16.mxu0 0
    %1760 = vmatpush1.bf16.msra.mxu0 0
    %1761 = vmatprep.subr.bf16.mxu0 0
    %1762 = vmatpush1.bf16.msra.mxu0 0
    %1763 = vmatprep.subr.bf16.mxu0 0
    %1764 = vmatpush1.bf16.msra.mxu0 0
    %1765 = vmatprep.subr.bf16.mxu0 0
    %1766 = vmatpush1.bf16.msra.mxu0 0
    %1767 = vmatprep.subr.bf16.mxu0 0
    %1768 = vmatpush1.bf16.msra.mxu0 0
    %1769 = vmatprep.subr.bf16.mxu0 0
    %1770 = vmatpush1.bf16.msra.mxu0 0
    %1771 = vmatprep.subr.bf16.mxu0 0
    %1772 = vmatpush1.bf16.msra.mxu0 0
    %1773 = vmatprep.subr.bf16.mxu0 0
    %1774 = vmatpush1.bf16.msra.mxu0 0
    %1775 = vmatprep.subr.bf16.mxu0 0
    %1776 = vmatpush1.bf16.msra.mxu0 0
    %1777 = vmatprep.subr.bf16.mxu0 0
    %1778 = vmatpush1.bf16.msra.mxu0 0
    %1779 = vmatprep.subr.bf16.mxu0 0
    %1780 = vmatpush1.bf16.msra.mxu0 0
    %1781 = vmatprep.subr.bf16.mxu0 0
    %1782 = vmatpush1.bf16.msra.mxu0 0
    %1783 = vmatprep.subr.bf16.mxu0 0
    %1784 = vmatpush1.bf16.msra.mxu0 0
    %1785 = vmatprep.mubr.bf16.mxu0 0
    %1786 = vmatmul.mubr.bf16.gmra.mrb[0].mxu0 %v1751
    %v1787 = vpop.f32.mrb[0].mxu0
    %v1788 = vadd.f32 0.0, %v1787
    %v1789 = vpop.f32.mrb[0].mxu0
    %v1790 = vpop.f32.mrb[0].mxu0
    %v1791 = vadd.f32 0.0, %v1790
    %v1792 = vpop.f32.mrb[0].mxu0
    %1793 = vdwg.mxu0
    %v1795 = vsel %vm530, %v1661, 0
    %1797 = vmatprep.subr.bf16.mxu0 0
    %1798 = vmatpush1.bf16.msra.mxu0 %v1381
    %1799 = vmatprep.subr.bf16.mxu0 0
    %1800 = vmatpush1.bf16.msra.mxu0 0
    %1801 = vmatprep.subr.bf16.mxu0 0
    %1802 = vmatpush1.bf16.msra.mxu0 0
    %1803 = vmatprep.subr.bf16.mxu0 0
    %1804 = vmatpush1.bf16.msra.mxu0 0
    %1805 = vmatprep.subr.bf16.mxu0 0
    %1806 = vmatpush1.bf16.msra.mxu0 0
    %1807 = vmatprep.subr.bf16.mxu0 0
    %1808 = vmatpush1.bf16.msra.mxu0 0
    %1809 = vmatprep.subr.bf16.mxu0 0
    %1810 = vmatpush1.bf16.msra.mxu0 0
    %1811 = vmatprep.subr.bf16.mxu0 0
    %1812 = vmatpush1.bf16.msra.mxu0 0
    %1813 = vmatprep.subr.bf16.mxu0 0
    %1814 = vmatpush1.bf16.msra.mxu0 0
    %1815 = vmatprep.subr.bf16.mxu0 0
    %1816 = vmatpush1.bf16.msra.mxu0 0
    %1817 = vmatprep.subr.bf16.mxu0 0
    %1818 = vmatpush1.bf16.msra.mxu0 0
    %1819 = vmatprep.subr.bf16.mxu0 0
    %1820 = vmatpush1.bf16.msra.mxu0 0
    %1821 = vmatprep.subr.bf16.mxu0 0
    %1822 = vmatpush1.bf16.msra.mxu0 0
    %1823 = vmatprep.subr.bf16.mxu0 0
    %1824 = vmatpush1.bf16.msra.mxu0 0
    %1825 = vmatprep.subr.bf16.mxu0 0
    %1826 = vmatpush1.bf16.msra.mxu0 0
    %1827 = vmatprep.subr.bf16.mxu0 0
    %1828 = vmatpush1.bf16.msra.mxu0 0
    %1829 = vmatprep.mubr.bf16.mxu0 0
    %1830 = vmatmul.mubr.bf16.gmra.mrb[0].mxu0 %v1795
    %v1831 = vpop.f32.mrb[0].mxu0
    %v1832 = vadd.f32 0.0, %v1831
    %v1833 = vpop.f32.mrb[0].mxu0
    %v1834 = vpop.f32.mrb[0].mxu0
    %v1835 = vadd.f32 0.0, %v1834
    %v1836 = vpop.f32.mrb[0].mxu0
    %1837 = vdwg.mxu0
    %v1838 = vpack.c.bf16 %v1703, %v1700
    %v1839 = vpack.c.bf16 %v1747, %v1744
    %v1840 = vpack.c.bf16 %v1791, %v1788
    %v1841 = vpack.c.bf16 %v1835, %v1832
    %1842 = vst.msk [vmem:[#allocation3] sm:$0xff] %vm160, %v1838
    %1844 = vrot.lane.b32.xlu0 %v1839, 8
    %v1845 = vpop.permute.xlu0 %1844
    %1847 = vst.msk [vmem:[#allocation3] sm:$0xff] %vm808, %v1845
    %1849 = vrot.lane.b32.xlu0 %v1840, 16
    %v1850 = vpop.permute.xlu0 %1849
    %1852 = vst.msk [vmem:[#allocation3] sm:$0xff] %vm814, %v1850
    %1854 = vrot.lane.b32.xlu0 %v1841, 24
    %v1855 = vpop.permute.xlu0 %1854
    %1857 = vst.msk [vmem:[#allocation3] sm:$0xff] %vm820, %v1855
    %v1858 = vld [vmem:[#allocation3] sm:$0xff]
    %s1859 = scalar_lea.vmem %s3, 16
    %v1860 = vld [vmem:[%s1859] sm:$0xf]
    %v1861 = vld [vmem:[%s1859 + $0x4] sm:$0xf]
    %v1862 = vld [vmem:[%s1859 + $0x8] sm:$0xf]
    %v1863 = vld [vmem:[%s1859 + $0xc] sm:$0xf]
    %v1864 = vlaneseq
    %v1865 = vshrl.u32 %v1864, 7
    %v1866 = vsub.s32 3, %v1865
    %v1867 = vrot.slane %v1133, %v1866
    %v1872 = vunpack.c.l.b16 %v1860
    %v1873 = vunpack.c.l.b16 %v1861
    %v1874 = vunpack.c.l.b16 %v1862
    %v1875 = vunpack.c.l.b16 %v1863
    %v1876 = vpack.c.b16 %v1873, %v1872
    %v1877 = vpack.c.b16 %v1875, %v1874
    %v1881 = vsel %vm40, %v1858, 0
    %1883 = vmatprep.subr.bf16.mxu0 0
    %1884 = vmatpush1.bf16.msra.mxu0 %v1876
    %1885 = vmatprep.subr.bf16.mxu0 0
    %1886 = vmatpush1.bf16.msra.mxu0 %v1877
    %1887 = vmatprep.subr.bf16.mxu0 0
    %1888 = vmatpush1.bf16.msra.mxu0 0
    %1889 = vmatprep.subr.bf16.mxu0 0
    %1890 = vmatpush1.bf16.msra.mxu0 0
    %1891 = vmatprep.subr.bf16.mxu0 0
    %1892 = vmatpush1.bf16.msra.mxu0 0
    %1893 = vmatprep.subr.bf16.mxu0 0
    %1894 = vmatpush1.bf16.msra.mxu0 0
    %1895 = vmatprep.subr.bf16.mxu0 0
    %1896 = vmatpush1.bf16.msra.mxu0 0
    %1897 = vmatprep.subr.bf16.mxu0 0
    %1898 = vmatpush1.bf16.msra.mxu0 0
    %1899 = vmatprep.subr.bf16.mxu0 0
    %1900 = vmatpush1.bf16.msra.mxu0 0
    %1901 = vmatprep.subr.bf16.mxu0 0
    %1902 = vmatpush1.bf16.msra.mxu0 0
    %1903 = vmatprep.subr.bf16.mxu0 0
    %1904 = vmatpush1.bf16.msra.mxu0 0
    %1905 = vmatprep.subr.bf16.mxu0 0
    %1906 = vmatpush1.bf16.msra.mxu0 0
    %1907 = vmatprep.subr.bf16.mxu0 0
    %1908 = vmatpush1.bf16.msra.mxu0 0
    %1909 = vmatprep.subr.bf16.mxu0 0
    %1910 = vmatpush1.bf16.msra.mxu0 0
    %1911 = vmatprep.subr.bf16.mxu0 0
    %1912 = vmatpush1.bf16.msra.mxu0 0
    %1913 = vmatprep.subr.bf16.mxu0 0
    %1914 = vmatpush1.bf16.msra.mxu0 0
    %1915 = vmatprep.mubr.bf16.mxu0 0
    %1916 = vmatmul.mubr.bf16.gmra.mrb[0].mxu0 %v1881
    %v1917 = vpop.f32.mrb[0].mxu0
    %v1918 = vadd.f32 %v1867, %v1917
    %v1919 = vpop.f32.mrb[0].mxu0
    %v1920 = vpop.f32.mrb[0].mxu0
    %v1921 = vadd.f32 %v1867, %v1920
    %v1922 = vpop.f32.mrb[0].mxu0
    %1923 = vdwg.mxu0
    %v1924 = vadd.f32 %v1918, %v1130
    %v1925 = vadd.f32 %v1921, %v1131
    %v1926 = vsel %vm40, %v1924, 0.0
    %1927 = vadd.xlane.f32.xlu0 %v1926
    %v1928 = vpop.xlane.xlu0 %1927
    %v1929 = vsel %vm40, %v1925, 0.0
    %1930 = vadd.xlane.f32.xlu0 %v1929
    %v1931 = vpop.xlane.xlu0 %1930
    %v1932 = vmul.f32 %v1928, %v47
    %v1933 = vmul.f32 %v1931, %v47
    %v1934 = vsub.f32 %v1924, %v1932
    %v1935 = vsub.f32 %v1925, %v1933
    %v1936 = vmul.f32 %v1934, %v1934
    %v1937 = vmul.f32 %v1935, %v1935
    %v1938 = vsel %vm40, %v1936, 0.0
    %1939 = vadd.xlane.f32.xlu0 %v1938
    %v1940 = vpop.xlane.xlu0 %1939
    %v1941 = vsel %vm40, %v1937, 0.0
    %1942 = vadd.xlane.f32.xlu0 %v1941
    %v1943 = vpop.xlane.xlu0 %1942
    %v1944 = vmul.f32 %v1940, %v47
    %v1945 = vmul.f32 %v1943, %v47
    %v1946 = vadd.f32 %v1944, 1e-12
    %v1947 = vadd.f32 %v1945, 1e-12
    %v1948 = vrsqrt.pop %v1946
    %v1949 = vrsqrt.pop %v1947
    %v1950 = vmul.f32 %v1934, %v1948
    %v1951 = vmul.f32 %v1935, %v1949
    %v1952 = vlaneseq
    %v1953 = vshrl.u32 %v1952, 7
    %v1954 = vsub.s32 4, %v1953
    %v1955 = vrot.slane %v1133, %v1954
    %v1956 = vmul.f32 %v1950, %v1955
    %v1957 = vmul.f32 %v1951, %v1955
    %v1958 = vlaneseq
    %v1959 = vshrl.u32 %v1958, 7
    %v1960 = vsub.s32 5, %v1959
    %v1961 = vrot.slane %v1133, %v1960
    %v1962 = vadd.f32 %v1956, %v1961
    %v1963 = vadd.f32 %v1957, %v1961
    %v1964 = vpack.c.bf16 %v1963, %v1962
    %s1965 = scalar_lea.vmem %s4, 16
    %v1966 = vld [vmem:[%s1965] sm:$0xf]
    %v1967 = vld [vmem:[%s1965 + $0x4] sm:$0xf]
    %v1968 = vld [vmem:[%s1965 + $0x8] sm:$0xf]
    %v1969 = vld [vmem:[%s1965 + $0xc] sm:$0xf]
    %v1970 = vlaneseq
    %v1971 = vshrl.u32 %v1970, 7
    %v1972 = vsub.s32 6, %v1971
    %v1973 = vrot.slane %v1133, %v1972
    %v1978 = vunpack.c.l.b16 %v1966
    %v1979 = vunpack.c.l.b16 %v1967
    %v1980 = vunpack.c.l.b16 %v1968
    %v1981 = vunpack.c.l.b16 %v1969
    %v1982 = vpack.c.b16 %v1979, %v1978
    %v1983 = vpack.c.b16 %v1981, %v1980
    %v1987 = vsel %vm40, %v1964, 0
    %1989 = vmatprep.subr.bf16.mxu0 0
    %1990 = vmatpush1.bf16.msra.mxu0 %v1982
    %1991 = vmatprep.subr.bf16.mxu0 0
    %1992 = vmatpush1.bf16.msra.mxu0 %v1983
    %1993 = vmatprep.subr.bf16.mxu0 0
    %1994 = vmatpush1.bf16.msra.mxu0 0
    %1995 = vmatprep.subr.bf16.mxu0 0
    %1996 = vmatpush1.bf16.msra.mxu0 0
    %1997 = vmatprep.subr.bf16.mxu0 0
    %1998 = vmatpush1.bf16.msra.mxu0 0
    %1999 = vmatprep.subr.bf16.mxu0 0
    %2000 = vmatpush1.bf16.msra.mxu0 0
    %2001 = vmatprep.subr.bf16.mxu0 0
    %2002 = vmatpush1.bf16.msra.mxu0 0
    %2003 = vmatprep.subr.bf16.mxu0 0
    %2004 = vmatpush1.bf16.msra.mxu0 0
    %2005 = vmatprep.subr.bf16.mxu0 0
    %2006 = vmatpush1.bf16.msra.mxu0 0
    %2007 = vmatprep.subr.bf16.mxu0 0
    %2008 = vmatpush1.bf16.msra.mxu0 0
    %2009 = vmatprep.subr.bf16.mxu0 0
    %2010 = vmatpush1.bf16.msra.mxu0 0
    %2011 = vmatprep.subr.bf16.mxu0 0
    %2012 = vmatpush1.bf16.msra.mxu0 0
    %2013 = vmatprep.subr.bf16.mxu0 0
    %2014 = vmatpush1.bf16.msra.mxu0 0
    %2015 = vmatprep.subr.bf16.mxu0 0
    %2016 = vmatpush1.bf16.msra.mxu0 0
    %2017 = vmatprep.subr.bf16.mxu0 0
    %2018 = vmatpush1.bf16.msra.mxu0 0
    %2019 = vmatprep.subr.bf16.mxu0 0
    %2020 = vmatpush1.bf16.msra.mxu0 0
    %2021 = vmatprep.mubr.bf16.mxu0 0
    %2022 = vmatmul.mubr.bf16.gmra.mrb[0].mxu0 %v1987
    %v2023 = vpop.f32.mrb[0].mxu0
    %v2024 = vadd.f32 %v1973, %v2023
    %v2025 = vpop.f32.mrb[0].mxu0
    %v2026 = vpop.f32.mrb[0].mxu0
    %v2027 = vadd.f32 %v1973, %v2026
    %v2028 = vpop.f32.mrb[0].mxu0
    %2029 = vdwg.mxu0
    %v2030 = vmul.f32 %v2024, %v2024
    %v2031 = vmul.f32 %v2027, %v2027
    %v2032 = vmul.f32 %v2024, %v2030
    %v2033 = vmul.f32 %v2027, %v2031
    %v2034 = vmul.f32 %v2032, 0.044715
    %v2035 = vmul.f32 %v2033, 0.044715
    %v2036 = vadd.f32 %v2024, %v2034
    %v2037 = vadd.f32 %v2027, %v2035
    %v2038 = vmul.f32 %v2036, 0.7978846
    %v2039 = vmul.f32 %v2037, 0.7978846
    %v2040 = vtanh.pop %v2038
    %v2041 = vtanh.pop %v2039
    %v2042 = vadd.f32 %v2040, 1.0
    %v2043 = vadd.f32 %v2041, 1.0
    %v2044 = vmul.f32 %v2042, 0.5
    %v2045 = vmul.f32 %v2043, 0.5
    %v2046 = vmul.f32 %v2024, %v2044
    %v2047 = vmul.f32 %v2027, %v2045
    %v2048 = vpack.c.bf16 %v2047, %v2046
    %s2049 = scalar_lea.vmem %s5, 32
    %v2050 = vld [vmem:[%s2049] sm:$0xf]
    %v2051 = vld [vmem:[%s2049 + $0x4] sm:$0xf]
    %v2052 = vld [vmem:[%s2049 + $0x8] sm:$0xf]
    %v2053 = vld [vmem:[%s2049 + $0xc] sm:$0xf]
    %v2054 = vld [vmem:[%s2049 + $0x10] sm:$0xf]
    %v2055 = vld [vmem:[%s2049 + $0x14] sm:$0xf]
    %v2056 = vld [vmem:[%s2049 + $0x18] sm:$0xf]
    %v2057 = vld [vmem:[%s2049 + $0x1c] sm:$0xf]
    %v2058 = vlaneseq
    %v2059 = vshrl.u32 %v2058, 7
    %v2060 = vsub.s32 7, %v2059
    %v2061 = vrot.slane %v1133, %v2060
    %v2070 = vunpack.c.l.b16 %v2050
    %v2071 = vunpack.c.l.b16 %v2051
    %v2072 = vunpack.c.l.b16 %v2052
    %v2073 = vunpack.c.l.b16 %v2053
    %v2074 = vunpack.c.l.b16 %v2054
    %v2075 = vunpack.c.l.b16 %v2055
    %v2076 = vunpack.c.l.b16 %v2056
    %v2077 = vunpack.c.l.b16 %v2057
    %v2078 = vpack.c.b16 %v2071, %v2070
    %v2079 = vpack.c.b16 %v2073, %v2072
    %v2080 = vpack.c.b16 %v2075, %v2074
    %v2081 = vpack.c.b16 %v2077, %v2076
    %v2087 = vsel %vm1047, %v2048, 0
    %2089 = vmatprep.subr.bf16.mxu0 0
    %2090 = vmatpush1.bf16.msra.mxu0 %v2078
    %2091 = vmatprep.subr.bf16.mxu0 0
    %2092 = vmatpush1.bf16.msra.mxu0 %v2079
    %2093 = vmatprep.subr.bf16.mxu0 0
    %2094 = vmatpush1.bf16.msra.mxu0 %v2080
    %2095 = vmatprep.subr.bf16.mxu0 0
    %2096 = vmatpush1.bf16.msra.mxu0 %v2081
    %2097 = vmatprep.subr.bf16.mxu0 0
    %2098 = vmatpush1.bf16.msra.mxu0 0
    %2099 = vmatprep.subr.bf16.mxu0 0
    %2100 = vmatpush1.bf16.msra.mxu0 0
    %2101 = vmatprep.subr.bf16.mxu0 0
    %2102 = vmatpush1.bf16.msra.mxu0 0
    %2103 = vmatprep.subr.bf16.mxu0 0
    %2104 = vmatpush1.bf16.msra.mxu0 0
    %2105 = vmatprep.subr.bf16.mxu0 0
    %2106 = vmatpush1.bf16.msra.mxu0 0
    %2107 = vmatprep.subr.bf16.mxu0 0
    %2108 = vmatpush1.bf16.msra.mxu0 0
    %2109 = vmatprep.subr.bf16.mxu0 0
    %2110 = vmatpush1.bf16.msra.mxu0 0
    %2111 = vmatprep.subr.bf16.mxu0 0
    %2112 = vmatpush1.bf16.msra.mxu0 0
    %2113 = vmatprep.subr.bf16.mxu0 0
    %2114 = vmatpush1.bf16.msra.mxu0 0
    %2115 = vmatprep.subr.bf16.mxu0 0
    %2116 = vmatpush1.bf16.msra.mxu0 0
    %2117 = vmatprep.subr.bf16.mxu0 0
    %2118 = vmatpush1.bf16.msra.mxu0 0
    %2119 = vmatprep.subr.bf16.mxu0 0
    %2120 = vmatpush1.bf16.msra.mxu0 0
    %2121 = vmatprep.mubr.bf16.mxu0 0
    %2122 = vmatmul.mubr.bf16.gmra.mrb[0].mxu0 %v2087
    %v2123 = vpop.f32.mrb[0].mxu0
    %v2124 = vadd.f32 %v2061, %v2123
    %v2125 = vpop.f32.mrb[0].mxu0
    %v2126 = vpop.f32.mrb[0].mxu0
    %v2127 = vadd.f32 %v2061, %v2126
    %v2128 = vpop.f32.mrb[0].mxu0
    %2129 = vdwg.mxu0
    %v2130 = vadd.f32 %v2124, %v1962
    %v2131 = vadd.f32 %v2127, %v1963
    %v2132 = vsel %vm40, %v2130, 0.0
    %2133 = vadd.xlane.f32.xlu0 %v2132
    %v2134 = vpop.xlane.xlu0 %2133
    %v2135 = vsel %vm40, %v2131, 0.0
    %2136 = vadd.xlane.f32.xlu0 %v2135
    %v2137 = vpop.xlane.xlu0 %2136
    %v2138 = vmul.f32 %v2134, %v47
    %v2139 = vmul.f32 %v2137, %v47
    %v2140 = vsub.f32 %v2130, %v2138
    %v2141 = vsub.f32 %v2131, %v2139
    %v2142 = vmul.f32 %v2140, %v2140
    %v2143 = vmul.f32 %v2141, %v2141
    %v2144 = vsel %vm40, %v2142, 0.0
    %2145 = vadd.xlane.f32.xlu0 %v2144
    %v2146 = vpop.xlane.xlu0 %2145
    %v2147 = vsel %vm40, %v2143, 0.0
    %2148 = vadd.xlane.f32.xlu0 %v2147
    %v2149 = vpop.xlane.xlu0 %2148
    %v2150 = vmul.f32 %v2146, %v47
    %v2151 = vmul.f32 %v2149, %v47
    %v2152 = vadd.f32 %v2150, 1e-12
    %v2153 = vadd.f32 %v2151, 1e-12
    %v2154 = vrsqrt.pop %v2152
    %v2155 = vrsqrt.pop %v2153
    %v2156 = vmul.f32 %v2140, %v2154
    %v2157 = vmul.f32 %v2141, %v2155
    %v2158 = vlaneseq
    %v2159 = vshrl.u32 %v2158, 7
    %v2160 = vsub.s32 0, %v2159
    %v2161 = vrot.slane %v1134, %v2160
    %v2162 = vmul.f32 %v2156, %v2161
    %v2163 = vmul.f32 %v2157, %v2161
    %v2164 = vlaneseq
    %v2165 = vshrl.u32 %v2164, 7
    %v2166 = vsub.s32 1, %v2165
    %v2167 = vrot.slane %v1134, %v2166
    %v2168 = vadd.f32 %v2162, %v2167
    %v2169 = vadd.f32 %v2163, %v2167
    %v2171 = vrot.slane %v2169, 7
    %vm2173 = vcmask 1040384
    %v2174 = vsel %vm2173, %v2168, %v2171
    %v2175 = vpack.c.bf16 %v2174, %v2174
    %v2176 = vld [vmem:[%s7] sm:$0xf]
    %v2177 = vld [vmem:[%s7 + $0x4] sm:$0xf]
    %v2178 = vld [vmem:[%s7 + $0x8] sm:$0xf]
    %v2179 = vld [vmem:[%s7 + $0xc] sm:$0xf]
    %v2180 = vlaneseq
    %v2181 = vshrl.u32 %v2180, 7
    %v2182 = vsub.s32 2, %v2181
    %v2183 = vrot.slane %v37, %v2182
    %v2188 = vunpack.c.l.b16 %v2176
    %v2189 = vunpack.c.l.b16 %v2177
    %v2190 = vunpack.c.l.b16 %v2178
    %v2191 = vunpack.c.l.b16 %v2179
    %v2192 = vpack.c.b16 %v2189, %v2188
    %v2193 = vpack.c.b16 %v2191, %v2190
    %v2197 = vsel %vm40, %v2175, 0
    %2199 = vmatprep.subr.bf16.mxu0 0
    %2200 = vmatpush1.bf16.msra.mxu0 %v2192
    %2201 = vmatprep.subr.bf16.mxu0 0
    %2202 = vmatpush1.bf16.msra.mxu0 %v2193
    %2203 = vmatprep.subr.bf16.mxu0 0
    %2204 = vmatpush1.bf16.msra.mxu0 0
    %2205 = vmatprep.subr.bf16.mxu0 0
    %2206 = vmatpush1.bf16.msra.mxu0 0
    %2207 = vmatprep.subr.bf16.mxu0 0
    %2208 = vmatpush1.bf16.msra.mxu0 0
    %2209 = vmatprep.subr.bf16.mxu0 0
    %2210 = vmatpush1.bf16.msra.mxu0 0
    %2211 = vmatprep.subr.bf16.mxu0 0
    %2212 = vmatpush1.bf16.msra.mxu0 0
    %2213 = vmatprep.subr.bf16.mxu0 0
    %2214 = vmatpush1.bf16.msra.mxu0 0
    %2215 = vmatprep.subr.bf16.mxu0 0
    %2216 = vmatpush1.bf16.msra.mxu0 0
    %2217 = vmatprep.subr.bf16.mxu0 0
    %2218 = vmatpush1.bf16.msra.mxu0 0
    %2219 = vmatprep.subr.bf16.mxu0 0
    %2220 = vmatpush1.bf16.msra.mxu0 0
    %2221 = vmatprep.subr.bf16.mxu0 0
    %2222 = vmatpush1.bf16.msra.mxu0 0
    %2223 = vmatprep.subr.bf16.mxu0 0
    %2224 = vmatpush1.bf16.msra.mxu0 0
    %2225 = vmatprep.subr.bf16.mxu0 0
    %2226 = vmatpush1.bf16.msra.mxu0 0
    %2227 = vmatprep.subr.bf16.mxu0 0
    %2228 = vmatpush1.bf16.msra.mxu0 0
    %2229 = vmatprep.subr.bf16.mxu0 0
    %2230 = vmatpush1.bf16.msra.mxu0 0
    %2231 = vmatprep.mubr.bf16.mxu0 0
    %2232 = vmatmul.mubr.bf16.gmra.mrb[0].mxu0 %v2197
    %v2233 = vpop.f32.mrb[0].mxu0
    %v2234 = vadd.f32 %v2183, %v2233
    %v2235 = vpop.f32.mrb[0].mxu0
    %v2236 = vpop.f32.mrb[0].mxu0
    %v2237 = vpop.f32.mrb[0].mxu0
    %2238 = vdwg.mxu0
    %v2239 = vmax.f32 %v2234, 0.0
    %v2240 = vpack.c.bf16 %v2239, %v2239
    %v2241 = vld [vmem:[%s8] sm:$0xf]
    %v2242 = vld [vmem:[%s8 + $0x4] sm:$0xf]
    %v2243 = vlaneseq
    %v2244 = vshrl.u32 %v2243, 7
    %v2245 = vsub.s32 3, %v2244
    %v2246 = vrot.slane %v37, %v2245
    %v2249 = vunpack.c.l.b16 %v2241
    %v2250 = vunpack.c.l.b16 %v2242
    %v2251 = vpack.c.b16 %v2250, %v2249
    %v2254 = vsel %vm530, %v2240, 0
    %2256 = vmatprep.subr.bf16.mxu0 0
    %2257 = vmatpush1.bf16.msra.mxu0 %v2251
    %2258 = vmatprep.subr.bf16.mxu0 0
    %2259 = vmatpush1.bf16.msra.mxu0 0
    %2260 = vmatprep.subr.bf16.mxu0 0
    %2261 = vmatpush1.bf16.msra.mxu0 0
    %2262 = vmatprep.subr.bf16.mxu0 0
    %2263 = vmatpush1.bf16.msra.mxu0 0
    %2264 = vmatprep.subr.bf16.mxu0 0
    %2265 = vmatpush1.bf16.msra.mxu0 0
    %2266 = vmatprep.subr.bf16.mxu0 0
    %2267 = vmatpush1.bf16.msra.mxu0 0
    %2268 = vmatprep.subr.bf16.mxu0 0
    %2269 = vmatpush1.bf16.msra.mxu0 0
    %2270 = vmatprep.subr.bf16.mxu0 0
    %2271 = vmatpush1.bf16.msra.mxu0 0
    %2272 = vmatprep.subr.bf16.mxu0 0
    %2273 = vmatpush1.bf16.msra.mxu0 0
    %2274 = vmatprep.subr.bf16.mxu0 0
    %2275 = vmatpush1.bf16.msra.mxu0 0
    %2276 = vmatprep.subr.bf16.mxu0 0
    %2277 = vmatpush1.bf16.msra.mxu0 0
    %2278 = vmatprep.subr.bf16.mxu0 0
    %2279 = vmatpush1.bf16.msra.mxu0 0
    %2280 = vmatprep.subr.bf16.mxu0 0
    %2281 = vmatpush1.bf16.msra.mxu0 0
    %2282 = vmatprep.subr.bf16.mxu0 0
    %2283 = vmatpush1.bf16.msra.mxu0 0
    %2284 = vmatprep.subr.bf16.mxu0 0
    %2285 = vmatpush1.bf16.msra.mxu0 0
    %2286 = vmatprep.subr.bf16.mxu0 0
    %2287 = vmatpush1.bf16.msra.mxu0 0
    %2288 = vmatprep.mubr.bf16.mxu0 0
    %2289 = vmatmul.mubr.bf16.gmra.mrb[0].mxu0 %v2254
    %v2290 = vpop.f32.mrb[0].mxu0
    %v2291 = vadd.f32 %v2246, %v2290
    %v2292 = vpop.f32.mrb[0].mxu0
    %v2293 = vpop.f32.mrb[0].mxu0
    %v2294 = vpop.f32.mrb[0].mxu0
    %2295 = vdwg.mxu0
    %vm2296 = vcmask 1041408
    %v2297 = vsel %vm2296, %v2291, -inf
    %2298 = vmax.xlane.f32.xlu0 %v2297
    %v2299 = vpop.xlane.xlu0 %2298
    %v2300 = vsub.f32 %v2291, %v2299
    %v2301 = vmul.f32 %v2300, 1.442695
    %v2302 = vpow.pop %v2301
    %v2303 = vsel %vm2296, %v2302, 0.0
    %2304 = vadd.xlane.f32.xlu0 %v2303
    %v2305 = vpop.xlane.xlu0 %2304
    %v2306 = vlog2.pop %v2305
    %v2307 = vmul.f32 %v2306, 0.6931472
    %v2308 = vsub.f32 %v2300, %v2307
    %2309 = vst [vmem:[#allocation4] sm:$0x3] %v2308
    // Predicated region
    $region42: #{bert_fe_forward.1} parent=1 // pred_check
      _
    $region43: #{bert_fe_forward.1} parent=1 // pred_check_branch
      %2311 = sbr.rel (0) target = $region45
    $region44: #{bert_fe_forward.1} parent=1 // pred_region
      %s2313 = ssub.s32 32, 32
      %2314 = vsyncadd [#allocation5], %s2313
      %s2316 = sshll.u32 [#allocation4], 4
      %s2317 = int_to_ptr.vmem [resolvable:$true] %s2316
      %2319 = dma.vmem_to_hbm [thread:$0]  %s2317, 32, %s10, [#allocation5]
    $region45: #{bert_fe_forward.1} parent=1 // pred_fallthru
      _
    // Predicated region
    $region46: #{bert_fe_forward.1} parent=1 // pred_check
      _
    $region47: #{bert_fe_forward.1} parent=1 // pred_check_branch
      %2321 = sbr.rel (0) target = $region49
    $region48: #{bert_fe_forward.1} parent=1 // pred_region
      %2322 = dma.done [#allocation5], 32
    $region49: #{bert_fe_forward.1} parent=1 // pred_fallthru
      _
    %2323 = vsyncpa [#allocation5], 1

</llo_original>
